<compile_context>
chip_gen: v5e
topology: v5e:2x2
jax: 0.10.0
libtpu: 0.0.40
codegen_flags: <defaults>
</compile_context>

<pallas_src>
import numpy as np
import jax
import jax.numpy as jnp
from jax import lax
from jax.experimental import pallas as pl
from jax.experimental.pallas import tpu as pltpu

# ---- configuration (mirrors pp.alpha, pp.model_n, prep.channels, length) ----
A = 8            # pp.alpha -> spatial size a x a
N = 2            # pp.model_n
C0 = 4           # channels produced by PrepareInputLayer (assumed)
L = 2            # Data['length'] (batch size)
H = W = A
C8 = 8 * N       # 16
PROC = N * A * A # process_channels = 128
R = L * H        # 16 kernel rows
LW = W * C8      # 128 kernel lanes for a 16-channel activation

# packed weight-buffer geometry
NBLK = 30                    # number of (128,128) matmul blocks in wmain
W1_OFF = NBLK * 128          # 3840: rows of the (32,128) convA1 weight
W7B_OFF = W1_OFF + W * C0    # 3872: rows of the (16,128) yC2-part of convA7
WMAIN_ROWS = W7B_OFF + W * N # 3888
BIAS_ROW0 = 48               # bias block inside vbuf


# ----------------------------- Pallas kernel --------------------------------
def sgnet_kernel(x_ref, wmain_ref, wnarrow_ref, vbuf_ref, out_ref):
    bf16 = jnp.bfloat16

    def mm(a, w):
        # bf16 x bf16 -> f32 accumulate (same numerics as default-precision
        # f32 MXU matmuls, half the weight bytes).
        return jnp.dot(a.astype(bf16), w, preferred_element_type=jnp.float32)

    def lrl(v):
        return jnp.maximum(v, 0.01 * v)          # LeakyReLU(0.01), 2 VPU ops

    def wblk(i):                                  # (128, 128) bf16 weight block
        return wmain_ref[i * 128:(i + 1) * 128, :]

    def nblk(i):                                  # (128, 16) bf16 weight block
        return wnarrow_ref[i * 128:(i + 1) * 128, :]

    biasblk = vbuf_ref[BIAS_ROW0:BIAS_ROW0 + 16, :]   # (16, 128) f32

    def bias(i, n=LW):
        return biasblk[i:i + 1, :n]

    def roll_h(v, d):
        # circular shift by +d along h; each batch's h-block is exactly one
        # (8,128) vreg -> one static sublane roll per batch, no masks.
        s = (-d) % H
        parts = [pltpu.roll(v[l * H:(l + 1) * H, :], s, 0) for l in range(L)]
        return jnp.concatenate(parts, axis=0)

    def hconv(x, blk0, b_i):
        # grouped circular [5,1] conv: split-K sum of 5 small matmuls, the
        # non-centre taps see an h-rolled copy of the input.
        acc = mm(x, wblk(blk0 + 2))               # centre tap, no shift
        for k in (0, 1, 3, 4):
            acc = acc + mm(roll_h(x, k - 2), wblk(blk0 + k))
        return lrl(acc + bias(b_i))

    def wconv(x, blk, b_i):
        # grouped circular [1,5] conv: w lives on the lane axis, so the whole
        # conv (all 5 taps + wrap) is one matmul with a circulant weight.
        return lrl(mm(x, wblk(blk)) + bias(b_i))

    x = x_ref[...]                                # (16, 32) f32

    yA1 = lrl(mm(x, wmain_ref[W1_OFF:W1_OFF + W * C0, :]) + bias(0))
    yA2 = hconv(yA1, 0, 1)
    yA3 = wconv(yA2, 20, 2)
    yA4 = hconv(yA3, 5, 3)
    yA5 = wconv(yA4, 21, 4)

    # convA5tg: 1x1 over cat(yA1..yA5) == split-K sum of 5 matmuls (no concat)
    acc = mm(yA1, wblk(24))
    for s, ys in enumerate((yA2, yA3, yA4, yA5), start=1):
        acc = acc + mm(ys, wblk(24 + s))
    yA5tg = lrl(acc + bias(5))

    yA6 = hconv(yA5tg, 10, 6)

    # ---- convC1 / convC2 side branch --------------------------------------
    wc1m = vbuf_ref[0:16, :]                      # (16,128) f32
    wc2m = vbuf_ref[16:32, :]                     # (16,128) f32
    bc2m = vbuf_ref[32:48, :][:, :N * W]          # (16,16)  f32
    t = yA4 * wc1m
    ssum = jnp.concatenate(
        [jnp.sum(t[l * H:(l + 1) * H, :], axis=0, keepdims=True)
         for l in range(L)], axis=0)              # (L, 128): per-batch h-sums
    # w-sum + broadcast-over-w in one matmul (block 29), then C1 bias + lrelu
    yc1row = lrl(mm(ssum, wblk(29)) + bias(10))   # (L, 128)
    yC1f = jnp.concatenate(
        [jnp.broadcast_to(yc1row[l:l + 1, :], (H, LW)) for l in range(L)],
        axis=0)                                   # (16, 128)
    yC2 = lrl(mm(yC1f * wc2m, nblk(5)) + bc2m)    # (16, 16), lanes (w, g)

    # convA7: [1,5] over cat(yA6, yC2) == two matmuls (no lane interleave)
    yA7 = lrl(mm(yA6, wblk(23))
              + mm(yC2, wmain_ref[W7B_OFF:W7B_OFF + N * W, :])
              + bias(7))
    yA8 = hconv(yA7, 15, 8)
    yA9 = wconv(yA8, 22, 9)

    # convB: 1x1 over cat(yA1, yA3, yA5tg, yA7, yA9) == split-K sum
    accB = mm(yA1, nblk(0))
    for s, ys in enumerate((yA3, yA5tg, yA7, yA9), start=1):
        accB = accB + mm(ys, nblk(s))
    out_ref[...] = lrl(accB + bias(11, N * W))    # (16, 16), lanes (w, g)


# ------------------------- parameter construction ---------------------------
def make_params(key):
    ks = iter(jax.random.split(key, 32))
    scale = 0.2

    def init(shape):
        return scale * jax.random.normal(next(ks), shape, dtype=jnp.float32)

    p = {}
    p['A1_w'] = init((C8, C0, 1, 1)); p['A1_b'] = init((C8,))
    for name, ksh in [('A2', (5, 1)), ('A3', (1, 5)), ('A4', (5, 1)),
                      ('A5', (1, 5)), ('A6', (5, 1)), ('A8', (5, 1)),
                      ('A9', (1, 5))]:
        p[f'{name}_w'] = init((C8, 8) + ksh)
        p[f'{name}_b'] = init((C8,))
    p['A5tg_w'] = init((C8, 5 * C8, 1, 1)); p['A5tg_b'] = init((C8,))
    p['A7_w'] = init((C8, 9, 1, 5));        p['A7_b'] = init((C8,))
    p['B_w'] = init((N, 5 * C8, 1, 1));     p['B_b'] = init((N,))
    p['C1_w'] = init((C8, A * A, 1));       p['C1_b'] = init((C8,))
    p['C2_w'] = init((N * A * A, 8, 1));    p['C2_b'] = init((N * A * A,))
    return p


def build_consts(p):
    pn = {k: np.asarray(v, np.float32) for k, v in p.items()}

    def blockdiag_w(cm):
        # cm: (cin, cout) channel mix applied at every w -> (W*cin, W*cout)
        cin, cout = cm.shape
        M = np.zeros((W * cin, W * cout), np.float32)
        for w in range(W):
            M[w * cin:(w + 1) * cin, w * cout:(w + 1) * cout] = cm
        return M

    def group_cm_tap(w4, k):
        # w4: (16, 8, 5, 1) grouped [5,1] conv; per-tap (16,16) mix cm[ci,co]
        cm = np.zeros((C8, C8), np.float32)
        for co in range(C8):
            g = co // 8
            for ci_loc in range(8):
                cm[g * 8 + ci_loc, co] = w4[co, ci_loc, k, 0]
        return cm

    def wconv_simple(w4):
        # w4: (16, 8, 1, 5) grouped circular [1,5] conv -> (128, 128)
        M = np.zeros((W * C8, W * C8), np.float32)
        for co in range(C8):
            g = co // 8
            for wout in range(W):
                for k in range(5):
                    win = (wout + k - 2) % W
                    for ci_loc in range(8):
                        ci = g * 8 + ci_loc
                        M[win * C8 + ci, wout * C8 + co] += w4[co, ci_loc, 0, k]
        return M

    def wconv_a7(w4):
        # w4: (16, 9, 1, 5); input = cat18([yA6(16ch), yC2(2ch)]) -> (144,128)
        M = np.zeros((W * C8 + W * N, W * C8), np.float32)
        for co in range(C8):
            g = co // 8
            for wout in range(W):
                for k in range(5):
                    win = (wout + k - 2) % W
                    for ci_loc in range(9):
                        ci = g * 9 + ci_loc
                        if ci < C8:
                            lane = win * C8 + ci
                        else:
                            lane = W * C8 + win * N + (ci - C8)
                        M[lane, wout * C8 + co] += w4[co, ci_loc, 0, k]
        return M

    # -------- wmain: 30 x (128,128) blocks + (32,128) A1 + (16,128) A7b -----
    blocks = []
    for nm in ['A2', 'A4', 'A6', 'A8']:              # blocks 0..19 (5 taps ea)
        for k in range(5):
            blocks.append(blockdiag_w(group_cm_tap(pn[f'{nm}_w'], k)))
    for nm in ['A3', 'A5', 'A9']:                    # blocks 20, 21, 22
        blocks.append(wconv_simple(pn[f'{nm}_w']))
    w7full = wconv_a7(pn['A7_w'])                    # (144, 128)
    blocks.append(w7full[:W * C8])                   # block 23 (yA6 part)
    a5tg = pn['A5tg_w'][:, :, 0, 0]                  # (16, 80)
    for s in range(5):                               # blocks 24..28
        blocks.append(blockdiag_w(a5tg[:, s * C8:(s + 1) * C8].T))
    blocks.append(np.tile(np.eye(C8, dtype=np.float32), (W, W)))   # block 29
    wmain = np.concatenate(blocks, axis=0)                         # (3840,128)
    wmain = np.concatenate(
        [wmain, blockdiag_w(pn['A1_w'][:, :, 0, 0].T)], axis=0)    # +(32,128)
    wmain = np.concatenate([wmain, w7full[W * C8:]], axis=0)       # +(16,128)
    assert wmain.shape == (WMAIN_ROWS, 128)

    # -------- wnarrow: 5 x (128,16) convB blocks + (128,16) group-sum -------
    bw = pn['B_w'][:, :, 0, 0]                       # (2, 80)
    nblocks = [blockdiag_w(bw[:, s * C8:(s + 1) * C8].T) for s in range(5)]
    P = np.zeros((C8, N), np.float32)
    for g in range(N):
        P[g * 8:(g + 1) * 8, g] = 1.0
    nblocks.append(blockdiag_w(P))                   # Gg
    wnarrow = np.concatenate(nblocks, axis=0)        # (768, 16)

    # -------- vbuf: elementwise weights + all bias rows (f32) ---------------
    c1w = pn['C1_w'][:, :, 0]                        # (16, 64)
    base1 = np.zeros((H, LW), np.float32)
    for h in range(H):
        for w in range(W):
            base1[h, w * C8:(w + 1) * C8] = c1w[:, h * W + w]
    wc1m = np.tile(base1, (L, 1))                    # (16, 128)

    c2w = pn['C2_w'][:, :, 0]                        # (128, 8)
    base2 = np.zeros((H, LW), np.float32)
    for h in range(H):
        for w in range(W):
            for g in range(N):
                base2[h, w * C8 + g * 8:w * C8 + g * 8 + 8] = \
                    c2w[g * A * A + h * W + w, :]
    wc2m = np.tile(base2, (L, 1))                    # (16, 128)

    basebc2 = np.zeros((H, 128), np.float32)
    for h in range(H):
        for w in range(W):
            for g in range(N):
                basebc2[h, w * N + g] = pn['C2_b'][g * A * A + h * W + w]
    bc2m = np.tile(basebc2, (L, 1))                  # (16, 128), data in :16

    vbuf = np.zeros((64, 128), np.float32)
    vbuf[0:16] = wc1m
    vbuf[16:32] = wc2m
    vbuf[32:48] = bc2m
    border = ['A1', 'A2', 'A3', 'A4', 'A5', 'A5tg', 'A6', 'A7', 'A8', 'A9']
    for i, nm in enumerate(border):
        vbuf[BIAS_ROW0 + i] = np.tile(pn[f'{nm}_b'], W)
    vbuf[BIAS_ROW0 + 10] = np.tile(pn['C1_b'], W)
    vbuf[BIAS_ROW0 + 11, :N * W] = np.tile(pn['B_b'], W)

    return [jnp.asarray(wmain, jnp.bfloat16),
            jnp.asarray(wnarrow, jnp.bfloat16),
            jnp.asarray(vbuf, jnp.float32)]


# ------------------------------- wrapper -------------------------------------
@jax.jit
def sgnet_forward(initial_data, consts):
    # NCHW (L, C0, A, A) -> kernel layout (L*H, W*C0)
    x_cl = jnp.transpose(initial_data, (0, 2, 3, 1)).reshape(R, W * C0)
    args = [x_cl] + list(consts)
    yb = pl.pallas_call(
        sgnet_kernel,
        out_shape=jax.ShapeDtypeStruct((R, W * N), jnp.float32),
        in_specs=[pl.BlockSpec(memory_space=pltpu.MemorySpace.VMEM)] * len(args),
        out_specs=pl.BlockSpec(memory_space=pltpu.MemorySpace.VMEM),
    )(*args)
    # kernel layout (l*H+h, w*N+g) -> PyTorch yB.view(length, n*a*a)
    return jnp.transpose(yb.reshape(L, H, W, N), (0, 3, 1, 2)).reshape(L, PROC)


# ----------------------- plain-JAX reference (NCHW) --------------------------
def reference_forward(x, p):
    HI = lax.Precision.HIGHEST

    def lrl(v):
        return jnp.where(v > 0, v, 0.01 * v)

    def pconv(x, w, b):
        y = jnp.einsum('lchw,oc->lohw', x, w[:, :, 0, 0], precision=HI)
        return y + b[None, :, None, None]

    def gconv(x, w, b, groups, pad):
        xp = jnp.pad(x, ((0, 0), (0, 0), (pad[0], pad[0]), (pad[1], pad[1])),
                     mode='wrap')
        y = lax.conv_general_dilated(
            xp, w, (1, 1), 'VALID',
            dimension_numbers=('NCHW', 'OIHW', 'NCHW'),
            feature_group_count=groups, precision=HI)
        return y + b[None, :, None, None]

    yA1 = lrl(pconv(x, p['A1_w'], p['A1_b']))
    yA2 = lrl(gconv(yA1, p['A2_w'], p['A2_b'], N, (2, 0)))
    yA3 = lrl(gconv(yA2, p['A3_w'], p['A3_b'], N, (0, 2)))
    yA4 = lrl(gconv(yA3, p['A4_w'], p['A4_b'], N, (2, 0)))
    yA5 = lrl(gconv(yA4, p['A5_w'], p['A5_b'], N, (0, 2)))
    yA5tg = lrl(pconv(jnp.concatenate([yA1, yA2, yA3, yA4, yA5], 1),
                      p['A5tg_w'], p['A5tg_b']))
    yA6 = lrl(gconv(yA5tg, p['A6_w'], p['A6_b'], N, (2, 0)))

    wc1 = p['C1_w'][:, :, 0]                         # (C8, A*A)
    yC1 = lrl(jnp.einsum('lcj,cj->lc', yA4.reshape(L, C8, A * A), wc1,
                         precision=HI) + p['C1_b'][None])
    wc2g = p['C2_w'][:, :, 0].reshape(N, A * A, 8)
    yC2 = lrl(jnp.einsum('lgi,gji->lgj', yC1.reshape(L, N, 8), wc2g,
                         precision=HI) + p['C2_b'].reshape(1, N, A * A))
    yC2 = yC2.reshape(L, N, A, A)

    yA6side = jnp.concatenate([yA6, yC2], 1)
    yA7 = lrl(gconv(yA6side, p['A7_w'], p['A7_b'], N, (0, 2)))
    yA8 = lrl(gconv(yA7, p['A8_w'], p['A8_b'], N, (2, 0)))
    yA9 = lrl(gconv(yA8, p['A9_w'], p['A9_b'], N, (0, 2)))
    yB = lrl(pconv(jnp.concatenate([yA1, yA3, yA5tg, yA7, yA9], 1),
                   p['B_w'], p['B_b']))
    return yB.reshape(L, PROC)


if __name__ == "__main__":
    key = jax.random.PRNGKey(0)
    pkey, xkey = jax.random.split(key)
    params = make_params(pkey)
    consts = build_consts(params)

    initial_data = jax.random.normal(xkey, (L, C0, A, A), dtype=jnp.float32)

    out = sgnet_forward(initial_data, consts)
    out = jax.block_until_ready(out)
    assert out.shape == (L, PROC)

    ref = reference_forward(initial_data, params)
    err = float(jnp.max(jnp.abs(out - ref)))
    denom = float(jnp.max(jnp.abs(ref))) + 1e-6
    # Kernel matmuls run bf16xbf16->f32 (equivalent to default MXU precision);
    # the reference runs f32 HIGHEST, so across ~14 chained layers a ~1%
    # relative drift is expected -- gate at 5e-2 (structural bugs show >>10%).
    if err / denom > 5e-2:
        raise AssertionError(f"kernel/reference mismatch: max abs err {err}")

    print("KERNEL_OK")
</pallas_src>

<mosaic_0001>
module attributes {stable_mosaic.version = 11 : i64} {
  func.func @sgnet_kernel(%arg0: memref<16x32xf32, #tpu.memory_space<vmem>>, %arg1: memref<3888x128xbf16, #tpu.memory_space<vmem>>, %arg2: memref<768x16xbf16, #tpu.memory_space<vmem>>, %arg3: memref<64x128xf32, #tpu.memory_space<vmem>>, %arg4: memref<16x16xf32, #tpu.memory_space<vmem>>) attributes {dimension_semantics = [], scalar_prefetch = 0 : i64, scratch_operands = 0 : i64, tpu.core_type = #tpu.core_type<tc>} {
    %c48 = arith.constant 48 : index
    %c0 = arith.constant 0 : index
    %0 = vector.load %arg3[%c48, %c0] : memref<64x128xf32, #tpu.memory_space<vmem>>, vector<16x128xf32>
    %c0_0 = arith.constant 0 : index
    %c0_1 = arith.constant 0 : index
    %1 = vector.load %arg0[%c0_0, %c0_1] : memref<16x32xf32, #tpu.memory_space<vmem>>, vector<16x32xf32>
    %c3840 = arith.constant 3840 : index
    %c0_2 = arith.constant 0 : index
    %2 = vector.load %arg1[%c3840, %c0_2] : memref<3888x128xbf16, #tpu.memory_space<vmem>>, vector<32x128xbf16>
    %3 = arith.truncf %1 : vector<16x32xf32> to vector<16x32xbf16>
    %cst = arith.constant dense<0.000000e+00> : vector<16x128xf32>
    %4 = tpu.matmul %3, %2, %cst {dimension_numbers = #tpu.dot_dimension_numbers<[1], [0], [0], [1], [0, 0, 1, 1], [], []>} : vector<16x32xbf16>, vector<32x128xbf16>, vector<16x128xf32> -> vector<16x128xf32>
    %5 = vector.extract_strided_slice %0 {offsets = [0, 0], sizes = [1, 128], strides = [1, 1]} : vector<16x128xf32> to vector<1x128xf32>
    %6 = vector.broadcast %5 : vector<1x128xf32> to vector<16x128xf32>
    %7 = arith.addf %4, %6 : vector<16x128xf32>
    %cst_3 = arith.constant 0.00999999977 : f32
    %8 = vector.broadcast %cst_3 : f32 to vector<16x128xf32>
    %9 = arith.mulf %8, %7 : vector<16x128xf32>
    %10 = arith.maximumf %7, %9 : vector<16x128xf32>
    %c256 = arith.constant 256 : index
    %c0_4 = arith.constant 0 : index
    %11 = vector.load %arg1[%c256, %c0_4] : memref<3888x128xbf16, #tpu.memory_space<vmem>>, vector<128x128xbf16>
    %12 = arith.truncf %10 : vector<16x128xf32> to vector<16x128xbf16>
    %cst_5 = arith.constant dense<0.000000e+00> : vector<16x128xf32>
    %13 = tpu.matmul %12, %11, %cst_5 {dimension_numbers = #tpu.dot_dimension_numbers<[1], [0], [0], [1], [0, 0, 1, 1], [], []>} : vector<16x128xbf16>, vector<128x128xbf16>, vector<16x128xf32> -> vector<16x128xf32>
    %14 = vector.extract_strided_slice %10 {offsets = [0, 0], sizes = [8, 128], strides = [1, 1]} : vector<16x128xf32> to vector<8x128xf32>
    %c2_i32 = arith.constant 2 : i32
    %15 = tpu.dynamic_rotate %14 by %c2_i32 dim 0 : vector<8x128xf32>, i32 -> vector<8x128xf32>
    %16 = vector.extract_strided_slice %10 {offsets = [8, 0], sizes = [8, 128], strides = [1, 1]} : vector<16x128xf32> to vector<8x128xf32>
    %c2_i32_6 = arith.constant 2 : i32
    %17 = tpu.dynamic_rotate %16 by %c2_i32_6 dim 0 : vector<8x128xf32>, i32 -> vector<8x128xf32>
    %18 = tpu.concatenate %15, %17 in 0 : vector<8x128xf32>, vector<8x128xf32> -> vector<16x128xf32>
    %c0_7 = arith.constant 0 : index
    %c0_8 = arith.constant 0 : index
    %19 = vector.load %arg1[%c0_7, %c0_8] : memref<3888x128xbf16, #tpu.memory_space<vmem>>, vector<128x128xbf16>
    %20 = arith.truncf %18 : vector<16x128xf32> to vector<16x128xbf16>
    %cst_9 = arith.constant dense<0.000000e+00> : vector<16x128xf32>
    %21 = tpu.matmul %20, %19, %cst_9 {dimension_numbers = #tpu.dot_dimension_numbers<[1], [0], [0], [1], [0, 0, 1, 1], [], []>} : vector<16x128xbf16>, vector<128x128xbf16>, vector<16x128xf32> -> vector<16x128xf32>
    %22 = arith.addf %13, %21 : vector<16x128xf32>
    %23 = vector.extract_strided_slice %10 {offsets = [0, 0], sizes = [8, 128], strides = [1, 1]} : vector<16x128xf32> to vector<8x128xf32>
    %c1_i32 = arith.constant 1 : i32
    %24 = tpu.dynamic_rotate %23 by %c1_i32 dim 0 : vector<8x128xf32>, i32 -> vector<8x128xf32>
    %25 = vector.extract_strided_slice %10 {offsets = [8, 0], sizes = [8, 128], strides = [1, 1]} : vector<16x128xf32> to vector<8x128xf32>
    %c1_i32_10 = arith.constant 1 : i32
    %26 = tpu.dynamic_rotate %25 by %c1_i32_10 dim 0 : vector<8x128xf32>, i32 -> vector<8x128xf32>
    %27 = tpu.concatenate %24, %26 in 0 : vector<8x128xf32>, vector<8x128xf32> -> vector<16x128xf32>
    %c128 = arith.constant 128 : index
    %c0_11 = arith.constant 0 : index
    %28 = vector.load %arg1[%c128, %c0_11] : memref<3888x128xbf16, #tpu.memory_space<vmem>>, vector<128x128xbf16>
    %29 = arith.truncf %27 : vector<16x128xf32> to vector<16x128xbf16>
    %cst_12 = arith.constant dense<0.000000e+00> : vector<16x128xf32>
    %30 = tpu.matmul %29, %28, %cst_12 {dimension_numbers = #tpu.dot_dimension_numbers<[1], [0], [0], [1], [0, 0, 1, 1], [], []>} : vector<16x128xbf16>, vector<128x128xbf16>, vector<16x128xf32> -> vector<16x128xf32>
    %31 = arith.addf %22, %30 : vector<16x128xf32>
    %32 = vector.extract_strided_slice %10 {offsets = [0, 0], sizes = [8, 128], strides = [1, 1]} : vector<16x128xf32> to vector<8x128xf32>
    %c7_i32 = arith.constant 7 : i32
    %33 = tpu.dynamic_rotate %32 by %c7_i32 dim 0 : vector<8x128xf32>, i32 -> vector<8x128xf32>
    %34 = vector.extract_strided_slice %10 {offsets = [8, 0], sizes = [8, 128], strides = [1, 1]} : vector<16x128xf32> to vector<8x128xf32>
    %c7_i32_13 = arith.constant 7 : i32
    %35 = tpu.dynamic_rotate %34 by %c7_i32_13 dim 0 : vector<8x128xf32>, i32 -> vector<8x128xf32>
    %36 = tpu.concatenate %33, %35 in 0 : vector<8x128xf32>, vector<8x128xf32> -> vector<16x128xf32>
    %c384 = arith.constant 384 : index
    %c0_14 = arith.constant 0 : index
    %37 = vector.load %arg1[%c384, %c0_14] : memref<3888x128xbf16, #tpu.memory_space<vmem>>, vector<128x128xbf16>
    %38 = arith.truncf %36 : vector<16x128xf32> to vector<16x128xbf16>
    %cst_15 = arith.constant dense<0.000000e+00> : vector<16x128xf32>
    %39 = tpu.matmul %38, %37, %cst_15 {dimension_numbers = #tpu.dot_dimension_numbers<[1], [0], [0], [1], [0, 0, 1, 1], [], []>} : vector<16x128xbf16>, vector<128x128xbf16>, vector<16x128xf32> -> vector<16x128xf32>
    %40 = arith.addf %31, %39 : vector<16x128xf32>
    %41 = vector.extract_strided_slice %10 {offsets = [0, 0], sizes = [8, 128], strides = [1, 1]} : vector<16x128xf32> to vector<8x128xf32>
    %c6_i32 = arith.constant 6 : i32
    %42 = tpu.dynamic_rotate %41 by %c6_i32 dim 0 : vector<8x128xf32>, i32 -> vector<8x128xf32>
    %43 = vector.extract_strided_slice %10 {offsets = [8, 0], sizes = [8, 128], strides = [1, 1]} : vector<16x128xf32> to vector<8x128xf32>
    %c6_i32_16 = arith.constant 6 : i32
    %44 = tpu.dynamic_rotate %43 by %c6_i32_16 dim 0 : vector<8x128xf32>, i32 -> vector<8x128xf32>
    %45 = tpu.concatenate %42, %44 in 0 : vector<8x128xf32>, vector<8x128xf32> -> vector<16x128xf32>
    %c512 = arith.constant 512 : index
    %c0_17 = arith.constant 0 : index
    %46 = vector.load %arg1[%c512, %c0_17] : memref<3888x128xbf16, #tpu.memory_space<vmem>>, vector<128x128xbf16>
    %47 = arith.truncf %45 : vector<16x128xf32> to vector<16x128xbf16>
    %cst_18 = arith.constant dense<0.000000e+00> : vector<16x128xf32>
    %48 = tpu.matmul %47, %46, %cst_18 {dimension_numbers = #tpu.dot_dimension_numbers<[1], [0], [0], [1], [0, 0, 1, 1], [], []>} : vector<16x128xbf16>, vector<128x128xbf16>, vector<16x128xf32> -> vector<16x128xf32>
    %49 = arith.addf %40, %48 : vector<16x128xf32>
    %50 = vector.extract_strided_slice %0 {offsets = [1, 0], sizes = [1, 128], strides = [1, 1]} : vector<16x128xf32> to vector<1x128xf32>
    %51 = vector.broadcast %50 : vector<1x128xf32> to vector<16x128xf32>
    %52 = arith.addf %49, %51 : vector<16x128xf32>
    %cst_19 = arith.constant 0.00999999977 : f32
    %53 = vector.broadcast %cst_19 : f32 to vector<16x128xf32>
    %54 = arith.mulf %53, %52 : vector<16x128xf32>
    %55 = arith.maximumf %52, %54 : vector<16x128xf32>
    %c2560 = arith.constant 2560 : index
    %c0_20 = arith.constant 0 : index
    %56 = vector.load %arg1[%c2560, %c0_20] : memref<3888x128xbf16, #tpu.memory_space<vmem>>, vector<128x128xbf16>
    %57 = arith.truncf %55 : vector<16x128xf32> to vector<16x128xbf16>
    %cst_21 = arith.constant dense<0.000000e+00> : vector<16x128xf32>
    %58 = tpu.matmul %57, %56, %cst_21 {dimension_numbers = #tpu.dot_dimension_numbers<[1], [0], [0], [1], [0, 0, 1, 1], [], []>} : vector<16x128xbf16>, vector<128x128xbf16>, vector<16x128xf32> -> vector<16x128xf32>
    %59 = vector.extract_strided_slice %0 {offsets = [2, 0], sizes = [1, 128], strides = [1, 1]} : vector<16x128xf32> to vector<1x128xf32>
    %60 = vector.broadcast %59 : vector<1x128xf32> to vector<16x128xf32>
    %61 = arith.addf %58, %60 : vector<16x128xf32>
    %cst_22 = arith.constant 0.00999999977 : f32
    %62 = vector.broadcast %cst_22 : f32 to vector<16x128xf32>
    %63 = arith.mulf %62, %61 : vector<16x128xf32>
    %64 = arith.maximumf %61, %63 : vector<16x128xf32>
    %c896 = arith.constant 896 : index
    %c0_23 = arith.constant 0 : index
    %65 = vector.load %arg1[%c896, %c0_23] : memref<3888x128xbf16, #tpu.memory_space<vmem>>, vector<128x128xbf16>
    %66 = arith.truncf %64 : vector<16x128xf32> to vector<16x128xbf16>
    %cst_24 = arith.constant dense<0.000000e+00> : vector<16x128xf32>
    %67 = tpu.matmul %66, %65, %cst_24 {dimension_numbers = #tpu.dot_dimension_numbers<[1], [0], [0], [1], [0, 0, 1, 1], [], []>} : vector<16x128xbf16>, vector<128x128xbf16>, vector<16x128xf32> -> vector<16x128xf32>
    %68 = vector.extract_strided_slice %64 {offsets = [0, 0], sizes = [8, 128], strides = [1, 1]} : vector<16x128xf32> to vector<8x128xf32>
    %c2_i32_25 = arith.constant 2 : i32
    %69 = tpu.dynamic_rotate %68 by %c2_i32_25 dim 0 : vector<8x128xf32>, i32 -> vector<8x128xf32>
    %70 = vector.extract_strided_slice %64 {offsets = [8, 0], sizes = [8, 128], strides = [1, 1]} : vector<16x128xf32> to vector<8x128xf32>
    %c2_i32_26 = arith.constant 2 : i32
    %71 = tpu.dynamic_rotate %70 by %c2_i32_26 dim 0 : vector<8x128xf32>, i32 -> vector<8x128xf32>
    %72 = tpu.concatenate %69, %71 in 0 : vector<8x128xf32>, vector<8x128xf32> -> vector<16x128xf32>
    %c640 = arith.constant 640 : index
    %c0_27 = arith.constant 0 : index
    %73 = vector.load %arg1[%c640, %c0_27] : memref<3888x128xbf16, #tpu.memory_space<vmem>>, vector<128x128xbf16>
    %74 = arith.truncf %72 : vector<16x128xf32> to vector<16x128xbf16>
    %cst_28 = arith.constant dense<0.000000e+00> : vector<16x128xf32>
    %75 = tpu.matmul %74, %73, %cst_28 {dimension_numbers = #tpu.dot_dimension_numbers<[1], [0], [0], [1], [0, 0, 1, 1], [], []>} : vector<16x128xbf16>, vector<128x128xbf16>, vector<16x128xf32> -> vector<16x128xf32>
    %76 = arith.addf %67, %75 : vector<16x128xf32>
    %77 = vector.extract_strided_slice %64 {offsets = [0, 0], sizes = [8, 128], strides = [1, 1]} : vector<16x128xf32> to vector<8x128xf32>
    %c1_i32_29 = arith.constant 1 : i32
    %78 = tpu.dynamic_rotate %77 by %c1_i32_29 dim 0 : vector<8x128xf32>, i32 -> vector<8x128xf32>
    %79 = vector.extract_strided_slice %64 {offsets = [8, 0], sizes = [8, 128], strides = [1, 1]} : vector<16x128xf32> to vector<8x128xf32>
    %c1_i32_30 = arith.constant 1 : i32
    %80 = tpu.dynamic_rotate %79 by %c1_i32_30 dim 0 : vector<8x128xf32>, i32 -> vector<8x128xf32>
    %81 = tpu.concatenate %78, %80 in 0 : vector<8x128xf32>, vector<8x128xf32> -> vector<16x128xf32>
    %c768 = arith.constant 768 : index
    %c0_31 = arith.constant 0 : index
    %82 = vector.load %arg1[%c768, %c0_31] : memref<3888x128xbf16, #tpu.memory_space<vmem>>, vector<128x128xbf16>
    %83 = arith.truncf %81 : vector<16x128xf32> to vector<16x128xbf16>
    %cst_32 = arith.constant dense<0.000000e+00> : vector<16x128xf32>
    %84 = tpu.matmul %83, %82, %cst_32 {dimension_numbers = #tpu.dot_dimension_numbers<[1], [0], [0], [1], [0, 0, 1, 1], [], []>} : vector<16x128xbf16>, vector<128x128xbf16>, vector<16x128xf32> -> vector<16x128xf32>
    %85 = arith.addf %76, %84 : vector<16x128xf32>
    %86 = vector.extract_strided_slice %64 {offsets = [0, 0], sizes = [8, 128], strides = [1, 1]} : vector<16x128xf32> to vector<8x128xf32>
    %c7_i32_33 = arith.constant 7 : i32
    %87 = tpu.dynamic_rotate %86 by %c7_i32_33 dim 0 : vector<8x128xf32>, i32 -> vector<8x128xf32>
    %88 = vector.extract_strided_slice %64 {offsets = [8, 0], sizes = [8, 128], strides = [1, 1]} : vector<16x128xf32> to vector<8x128xf32>
    %c7_i32_34 = arith.constant 7 : i32
    %89 = tpu.dynamic_rotate %88 by %c7_i32_34 dim 0 : vector<8x128xf32>, i32 -> vector<8x128xf32>
    %90 = tpu.concatenate %87, %89 in 0 : vector<8x128xf32>, vector<8x128xf32> -> vector<16x128xf32>
    %c1024 = arith.constant 1024 : index
    %c0_35 = arith.constant 0 : index
    %91 = vector.load %arg1[%c1024, %c0_35] : memref<3888x128xbf16, #tpu.memory_space<vmem>>, vector<128x128xbf16>
    %92 = arith.truncf %90 : vector<16x128xf32> to vector<16x128xbf16>
    %cst_36 = arith.constant dense<0.000000e+00> : vector<16x128xf32>
    %93 = tpu.matmul %92, %91, %cst_36 {dimension_numbers = #tpu.dot_dimension_numbers<[1], [0], [0], [1], [0, 0, 1, 1], [], []>} : vector<16x128xbf16>, vector<128x128xbf16>, vector<16x128xf32> -> vector<16x128xf32>
    %94 = arith.addf %85, %93 : vector<16x128xf32>
    %95 = vector.extract_strided_slice %64 {offsets = [0, 0], sizes = [8, 128], strides = [1, 1]} : vector<16x128xf32> to vector<8x128xf32>
    %c6_i32_37 = arith.constant 6 : i32
    %96 = tpu.dynamic_rotate %95 by %c6_i32_37 dim 0 : vector<8x128xf32>, i32 -> vector<8x128xf32>
    %97 = vector.extract_strided_slice %64 {offsets = [8, 0], sizes = [8, 128], strides = [1, 1]} : vector<16x128xf32> to vector<8x128xf32>
    %c6_i32_38 = arith.constant 6 : i32
    %98 = tpu.dynamic_rotate %97 by %c6_i32_38 dim 0 : vector<8x128xf32>, i32 -> vector<8x128xf32>
    %99 = tpu.concatenate %96, %98 in 0 : vector<8x128xf32>, vector<8x128xf32> -> vector<16x128xf32>
    %c1152 = arith.constant 1152 : index
    %c0_39 = arith.constant 0 : index
    %100 = vector.load %arg1[%c1152, %c0_39] : memref<3888x128xbf16, #tpu.memory_space<vmem>>, vector<128x128xbf16>
    %101 = arith.truncf %99 : vector<16x128xf32> to vector<16x128xbf16>
    %cst_40 = arith.constant dense<0.000000e+00> : vector<16x128xf32>
    %102 = tpu.matmul %101, %100, %cst_40 {dimension_numbers = #tpu.dot_dimension_numbers<[1], [0], [0], [1], [0, 0, 1, 1], [], []>} : vector<16x128xbf16>, vector<128x128xbf16>, vector<16x128xf32> -> vector<16x128xf32>
    %103 = arith.addf %94, %102 : vector<16x128xf32>
    %104 = vector.extract_strided_slice %0 {offsets = [3, 0], sizes = [1, 128], strides = [1, 1]} : vector<16x128xf32> to vector<1x128xf32>
    %105 = vector.broadcast %104 : vector<1x128xf32> to vector<16x128xf32>
    %106 = arith.addf %103, %105 : vector<16x128xf32>
    %cst_41 = arith.constant 0.00999999977 : f32
    %107 = vector.broadcast %cst_41 : f32 to vector<16x128xf32>
    %108 = arith.mulf %107, %106 : vector<16x128xf32>
    %109 = arith.maximumf %106, %108 : vector<16x128xf32>
    %c2688 = arith.constant 2688 : index
    %c0_42 = arith.constant 0 : index
    %110 = vector.load %arg1[%c2688, %c0_42] : memref<3888x128xbf16, #tpu.memory_space<vmem>>, vector<128x128xbf16>
    %111 = arith.truncf %109 : vector<16x128xf32> to vector<16x128xbf16>
    %cst_43 = arith.constant dense<0.000000e+00> : vector<16x128xf32>
    %112 = tpu.matmul %111, %110, %cst_43 {dimension_numbers = #tpu.dot_dimension_numbers<[1], [0], [0], [1], [0, 0, 1, 1], [], []>} : vector<16x128xbf16>, vector<128x128xbf16>, vector<16x128xf32> -> vector<16x128xf32>
    %113 = vector.extract_strided_slice %0 {offsets = [4, 0], sizes = [1, 128], strides = [1, 1]} : vector<16x128xf32> to vector<1x128xf32>
    %114 = vector.broadcast %113 : vector<1x128xf32> to vector<16x128xf32>
    %115 = arith.addf %112, %114 : vector<16x128xf32>
    %cst_44 = arith.constant 0.00999999977 : f32
    %116 = vector.broadcast %cst_44 : f32 to vector<16x128xf32>
    %117 = arith.mulf %116, %115 : vector<16x128xf32>
    %118 = arith.maximumf %115, %117 : vector<16x128xf32>
    %c3072 = arith.constant 3072 : index
    %c0_45 = arith.constant 0 : index
    %119 = vector.load %arg1[%c3072, %c0_45] : memref<3888x128xbf16, #tpu.memory_space<vmem>>, vector<128x128xbf16>
    %120 = arith.truncf %10 : vector<16x128xf32> to vector<16x128xbf16>
    %cst_46 = arith.constant dense<0.000000e+00> : vector<16x128xf32>
    %121 = tpu.matmul %120, %119, %cst_46 {dimension_numbers = #tpu.dot_dimension_numbers<[1], [0], [0], [1], [0, 0, 1, 1], [], []>} : vector<16x128xbf16>, vector<128x128xbf16>, vector<16x128xf32> -> vector<16x128xf32>
    %c3200 = arith.constant 3200 : index
    %c0_47 = arith.constant 0 : index
    %122 = vector.load %arg1[%c3200, %c0_47] : memref<3888x128xbf16, #tpu.memory_space<vmem>>, vector<128x128xbf16>
    %123 = arith.truncf %55 : vector<16x128xf32> to vector<16x128xbf16>
    %cst_48 = arith.constant dense<0.000000e+00> : vector<16x128xf32>
    %124 = tpu.matmul %123, %122, %cst_48 {dimension_numbers = #tpu.dot_dimension_numbers<[1], [0], [0], [1], [0, 0, 1, 1], [], []>} : vector<16x128xbf16>, vector<128x128xbf16>, vector<16x128xf32> -> vector<16x128xf32>
    %125 = arith.addf %121, %124 : vector<16x128xf32>
    %c3328 = arith.constant 3328 : index
    %c0_49 = arith.constant 0 : index
    %126 = vector.load %arg1[%c3328, %c0_49] : memref<3888x128xbf16, #tpu.memory_space<vmem>>, vector<128x128xbf16>
    %127 = arith.truncf %64 : vector<16x128xf32> to vector<16x128xbf16>
    %cst_50 = arith.constant dense<0.000000e+00> : vector<16x128xf32>
    %128 = tpu.matmul %127, %126, %cst_50 {dimension_numbers = #tpu.dot_dimension_numbers<[1], [0], [0], [1], [0, 0, 1, 1], [], []>} : vector<16x128xbf16>, vector<128x128xbf16>, vector<16x128xf32> -> vector<16x128xf32>
    %129 = arith.addf %125, %128 : vector<16x128xf32>
    %c3456 = arith.constant 3456 : index
    %c0_51 = arith.constant 0 : index
    %130 = vector.load %arg1[%c3456, %c0_51] : memref<3888x128xbf16, #tpu.memory_space<vmem>>, vector<128x128xbf16>
    %131 = arith.truncf %109 : vector<16x128xf32> to vector<16x128xbf16>
    %cst_52 = arith.constant dense<0.000000e+00> : vector<16x128xf32>
    %132 = tpu.matmul %131, %130, %cst_52 {dimension_numbers = #tpu.dot_dimension_numbers<[1], [0], [0], [1], [0, 0, 1, 1], [], []>} : vector<16x128xbf16>, vector<128x128xbf16>, vector<16x128xf32> -> vector<16x128xf32>
    %133 = arith.addf %129, %132 : vector<16x128xf32>
    %c3584 = arith.constant 3584 : index
    %c0_53 = arith.constant 0 : index
    %134 = vector.load %arg1[%c3584, %c0_53] : memref<3888x128xbf16, #tpu.memory_space<vmem>>, vector<128x128xbf16>
    %135 = arith.truncf %118 : vector<16x128xf32> to vector<16x128xbf16>
    %cst_54 = arith.constant dense<0.000000e+00> : vector<16x128xf32>
    %136 = tpu.matmul %135, %134, %cst_54 {dimension_numbers = #tpu.dot_dimension_numbers<[1], [0], [0], [1], [0, 0, 1, 1], [], []>} : vector<16x128xbf16>, vector<128x128xbf16>, vector<16x128xf32> -> vector<16x128xf32>
    %137 = arith.addf %133, %136 : vector<16x128xf32>
    %138 = vector.extract_strided_slice %0 {offsets = [5, 0], sizes = [1, 128], strides = [1, 1]} : vector<16x128xf32> to vector<1x128xf32>
    %139 = vector.broadcast %138 : vector<1x128xf32> to vector<16x128xf32>
    %140 = arith.addf %137, %139 : vector<16x128xf32>
    %cst_55 = arith.constant 0.00999999977 : f32
    %141 = vector.broadcast %cst_55 : f32 to vector<16x128xf32>
    %142 = arith.mulf %141, %140 : vector<16x128xf32>
    %143 = arith.maximumf %140, %142 : vector<16x128xf32>
    %c1536 = arith.constant 1536 : index
    %c0_56 = arith.constant 0 : index
    %144 = vector.load %arg1[%c1536, %c0_56] : memref<3888x128xbf16, #tpu.memory_space<vmem>>, vector<128x128xbf16>
    %145 = arith.truncf %143 : vector<16x128xf32> to vector<16x128xbf16>
    %cst_57 = arith.constant dense<0.000000e+00> : vector<16x128xf32>
    %146 = tpu.matmul %145, %144, %cst_57 {dimension_numbers = #tpu.dot_dimension_numbers<[1], [0], [0], [1], [0, 0, 1, 1], [], []>} : vector<16x128xbf16>, vector<128x128xbf16>, vector<16x128xf32> -> vector<16x128xf32>
    %147 = vector.extract_strided_slice %143 {offsets = [0, 0], sizes = [8, 128], strides = [1, 1]} : vector<16x128xf32> to vector<8x128xf32>
    %c2_i32_58 = arith.constant 2 : i32
    %148 = tpu.dynamic_rotate %147 by %c2_i32_58 dim 0 : vector<8x128xf32>, i32 -> vector<8x128xf32>
    %149 = vector.extract_strided_slice %143 {offsets = [8, 0], sizes = [8, 128], strides = [1, 1]} : vector<16x128xf32> to vector<8x128xf32>
    %c2_i32_59 = arith.constant 2 : i32
    %150 = tpu.dynamic_rotate %149 by %c2_i32_59 dim 0 : vector<8x128xf32>, i32 -> vector<8x128xf32>
    %151 = tpu.concatenate %148, %150 in 0 : vector<8x128xf32>, vector<8x128xf32> -> vector<16x128xf32>
    %c1280 = arith.constant 1280 : index
    %c0_60 = arith.constant 0 : index
    %152 = vector.load %arg1[%c1280, %c0_60] : memref<3888x128xbf16, #tpu.memory_space<vmem>>, vector<128x128xbf16>
    %153 = arith.truncf %151 : vector<16x128xf32> to vector<16x128xbf16>
    %cst_61 = arith.constant dense<0.000000e+00> : vector<16x128xf32>
    %154 = tpu.matmul %153, %152, %cst_61 {dimension_numbers = #tpu.dot_dimension_numbers<[1], [0], [0], [1], [0, 0, 1, 1], [], []>} : vector<16x128xbf16>, vector<128x128xbf16>, vector<16x128xf32> -> vector<16x128xf32>
    %155 = arith.addf %146, %154 : vector<16x128xf32>
    %156 = vector.extract_strided_slice %143 {offsets = [0, 0], sizes = [8, 128], strides = [1, 1]} : vector<16x128xf32> to vector<8x128xf32>
    %c1_i32_62 = arith.constant 1 : i32
    %157 = tpu.dynamic_rotate %156 by %c1_i32_62 dim 0 : vector<8x128xf32>, i32 -> vector<8x128xf32>
    %158 = vector.extract_strided_slice %143 {offsets = [8, 0], sizes = [8, 128], strides = [1, 1]} : vector<16x128xf32> to vector<8x128xf32>
    %c1_i32_63 = arith.constant 1 : i32
    %159 = tpu.dynamic_rotate %158 by %c1_i32_63 dim 0 : vector<8x128xf32>, i32 -> vector<8x128xf32>
    %160 = tpu.concatenate %157, %159 in 0 : vector<8x128xf32>, vector<8x128xf32> -> vector<16x128xf32>
    %c1408 = arith.constant 1408 : index
    %c0_64 = arith.constant 0 : index
    %161 = vector.load %arg1[%c1408, %c0_64] : memref<3888x128xbf16, #tpu.memory_space<vmem>>, vector<128x128xbf16>
    %162 = arith.truncf %160 : vector<16x128xf32> to vector<16x128xbf16>
    %cst_65 = arith.constant dense<0.000000e+00> : vector<16x128xf32>
    %163 = tpu.matmul %162, %161, %cst_65 {dimension_numbers = #tpu.dot_dimension_numbers<[1], [0], [0], [1], [0, 0, 1, 1], [], []>} : vector<16x128xbf16>, vector<128x128xbf16>, vector<16x128xf32> -> vector<16x128xf32>
    %164 = arith.addf %155, %163 : vector<16x128xf32>
    %165 = vector.extract_strided_slice %143 {offsets = [0, 0], sizes = [8, 128], strides = [1, 1]} : vector<16x128xf32> to vector<8x128xf32>
    %c7_i32_66 = arith.constant 7 : i32
    %166 = tpu.dynamic_rotate %165 by %c7_i32_66 dim 0 : vector<8x128xf32>, i32 -> vector<8x128xf32>
    %167 = vector.extract_strided_slice %143 {offsets = [8, 0], sizes = [8, 128], strides = [1, 1]} : vector<16x128xf32> to vector<8x128xf32>
    %c7_i32_67 = arith.constant 7 : i32
    %168 = tpu.dynamic_rotate %167 by %c7_i32_67 dim 0 : vector<8x128xf32>, i32 -> vector<8x128xf32>
    %169 = tpu.concatenate %166, %168 in 0 : vector<8x128xf32>, vector<8x128xf32> -> vector<16x128xf32>
    %c1664 = arith.constant 1664 : index
    %c0_68 = arith.constant 0 : index
    %170 = vector.load %arg1[%c1664, %c0_68] : memref<3888x128xbf16, #tpu.memory_space<vmem>>, vector<128x128xbf16>
    %171 = arith.truncf %169 : vector<16x128xf32> to vector<16x128xbf16>
    %cst_69 = arith.constant dense<0.000000e+00> : vector<16x128xf32>
    %172 = tpu.matmul %171, %170, %cst_69 {dimension_numbers = #tpu.dot_dimension_numbers<[1], [0], [0], [1], [0, 0, 1, 1], [], []>} : vector<16x128xbf16>, vector<128x128xbf16>, vector<16x128xf32> -> vector<16x128xf32>
    %173 = arith.addf %164, %172 : vector<16x128xf32>
    %174 = vector.extract_strided_slice %143 {offsets = [0, 0], sizes = [8, 128], strides = [1, 1]} : vector<16x128xf32> to vector<8x128xf32>
    %c6_i32_70 = arith.constant 6 : i32
    %175 = tpu.dynamic_rotate %174 by %c6_i32_70 dim 0 : vector<8x128xf32>, i32 -> vector<8x128xf32>
    %176 = vector.extract_strided_slice %143 {offsets = [8, 0], sizes = [8, 128], strides = [1, 1]} : vector<16x128xf32> to vector<8x128xf32>
    %c6_i32_71 = arith.constant 6 : i32
    %177 = tpu.dynamic_rotate %176 by %c6_i32_71 dim 0 : vector<8x128xf32>, i32 -> vector<8x128xf32>
    %178 = tpu.concatenate %175, %177 in 0 : vector<8x128xf32>, vector<8x128xf32> -> vector<16x128xf32>
    %c1792 = arith.constant 1792 : index
    %c0_72 = arith.constant 0 : index
    %179 = vector.load %arg1[%c1792, %c0_72] : memref<3888x128xbf16, #tpu.memory_space<vmem>>, vector<128x128xbf16>
    %180 = arith.truncf %178 : vector<16x128xf32> to vector<16x128xbf16>
    %cst_73 = arith.constant dense<0.000000e+00> : vector<16x128xf32>
    %181 = tpu.matmul %180, %179, %cst_73 {dimension_numbers = #tpu.dot_dimension_numbers<[1], [0], [0], [1], [0, 0, 1, 1], [], []>} : vector<16x128xbf16>, vector<128x128xbf16>, vector<16x128xf32> -> vector<16x128xf32>
    %182 = arith.addf %173, %181 : vector<16x128xf32>
    %183 = vector.extract_strided_slice %0 {offsets = [6, 0], sizes = [1, 128], strides = [1, 1]} : vector<16x128xf32> to vector<1x128xf32>
    %184 = vector.broadcast %183 : vector<1x128xf32> to vector<16x128xf32>
    %185 = arith.addf %182, %184 : vector<16x128xf32>
    %cst_74 = arith.constant 0.00999999977 : f32
    %186 = vector.broadcast %cst_74 : f32 to vector<16x128xf32>
    %187 = arith.mulf %186, %185 : vector<16x128xf32>
    %188 = arith.maximumf %185, %187 : vector<16x128xf32>
    %c0_75 = arith.constant 0 : index
    %c0_76 = arith.constant 0 : index
    %189 = vector.load %arg3[%c0_75, %c0_76] : memref<64x128xf32, #tpu.memory_space<vmem>>, vector<16x128xf32>
    %c16 = arith.constant 16 : index
    %c0_77 = arith.constant 0 : index
    %190 = vector.load %arg3[%c16, %c0_77] : memref<64x128xf32, #tpu.memory_space<vmem>>, vector<16x128xf32>
    %c32 = arith.constant 32 : index
    %c0_78 = arith.constant 0 : index
    %191 = vector.load %arg3[%c32, %c0_78] : memref<64x128xf32, #tpu.memory_space<vmem>>, vector<16x128xf32>
    %192 = vector.extract_strided_slice %191 {offsets = [0, 0], sizes = [16, 16], strides = [1, 1]} : vector<16x128xf32> to vector<16x16xf32>
    %193 = arith.mulf %109, %189 : vector<16x128xf32>
    %194 = vector.extract_strided_slice %193 {offsets = [0, 0], sizes = [8, 128], strides = [1, 1]} : vector<16x128xf32> to vector<8x128xf32>
    %cst_79 = arith.constant dense<0.000000e+00> : vector<128xf32>
    %195 = vector.multi_reduction <add>, %194, %cst_79 [0] : vector<8x128xf32> to vector<128xf32>
    %196 = vector.shape_cast %195 : vector<128xf32> to vector<1x128xf32>
    %197 = vector.extract_strided_slice %193 {offsets = [8, 0], sizes = [8, 128], strides = [1, 1]} : vector<16x128xf32> to vector<8x128xf32>
    %cst_80 = arith.constant dense<0.000000e+00> : vector<128xf32>
    %198 = vector.multi_reduction <add>, %197, %cst_80 [0] : vector<8x128xf32> to vector<128xf32>
    %199 = vector.shape_cast %198 : vector<128xf32> to vector<1x128xf32>
    %200 = tpu.concatenate %196, %199 in 0 : vector<1x128xf32>, vector<1x128xf32> -> vector<2x128xf32>
    %c3712 = arith.constant 3712 : index
    %c0_81 = arith.constant 0 : index
    %201 = vector.load %arg1[%c3712, %c0_81] : memref<3888x128xbf16, #tpu.memory_space<vmem>>, vector<128x128xbf16>
    %202 = arith.truncf %200 : vector<2x128xf32> to vector<2x128xbf16>
    %cst_82 = arith.constant dense<0.000000e+00> : vector<2x128xf32>
    %203 = tpu.matmul %202, %201, %cst_82 {dimension_numbers = #tpu.dot_dimension_numbers<[1], [0], [0], [1], [0, 0, 1, 1], [], []>} : vector<2x128xbf16>, vector<128x128xbf16>, vector<2x128xf32> -> vector<2x128xf32>
    %204 = vector.extract_strided_slice %0 {offsets = [10, 0], sizes = [1, 128], strides = [1, 1]} : vector<16x128xf32> to vector<1x128xf32>
    %205 = vector.broadcast %204 : vector<1x128xf32> to vector<2x128xf32>
    %206 = arith.addf %203, %205 : vector<2x128xf32>
    %cst_83 = arith.constant 0.00999999977 : f32
    %207 = vector.broadcast %cst_83 : f32 to vector<2x128xf32>
    %208 = arith.mulf %207, %206 : vector<2x128xf32>
    %209 = arith.maximumf %206, %208 : vector<2x128xf32>
    %210 = vector.extract_strided_slice %209 {offsets = [0, 0], sizes = [1, 128], strides = [1, 1]} : vector<2x128xf32> to vector<1x128xf32>
    %211 = vector.shape_cast %210 : vector<1x128xf32> to vector<1x128xf32>
    %212 = vector.broadcast %211 : vector<1x128xf32> to vector<8x128xf32>
    %213 = vector.extract_strided_slice %209 {offsets = [1, 0], sizes = [1, 128], strides = [1, 1]} : vector<2x128xf32> to vector<1x128xf32>
    %214 = vector.shape_cast %213 : vector<1x128xf32> to vector<1x128xf32>
    %215 = vector.broadcast %214 : vector<1x128xf32> to vector<8x128xf32>
    %216 = tpu.concatenate %212, %215 in 0 : vector<8x128xf32>, vector<8x128xf32> -> vector<16x128xf32>
    %217 = arith.mulf %216, %190 : vector<16x128xf32>
    %c640_84 = arith.constant 640 : index
    %c0_85 = arith.constant 0 : index
    %218 = vector.load %arg2[%c640_84, %c0_85] : memref<768x16xbf16, #tpu.memory_space<vmem>>, vector<128x16xbf16>
    %219 = arith.truncf %217 : vector<16x128xf32> to vector<16x128xbf16>
    %cst_86 = arith.constant dense<0.000000e+00> : vector<16x16xf32>
    %220 = tpu.matmul %219, %218, %cst_86 {dimension_numbers = #tpu.dot_dimension_numbers<[1], [0], [0], [1], [0, 0, 1, 1], [], []>} : vector<16x128xbf16>, vector<128x16xbf16>, vector<16x16xf32> -> vector<16x16xf32>
    %221 = arith.addf %220, %192 : vector<16x16xf32>
    %cst_87 = arith.constant 0.00999999977 : f32
    %222 = vector.broadcast %cst_87 : f32 to vector<16x16xf32>
    %223 = arith.mulf %222, %221 : vector<16x16xf32>
    %224 = arith.maximumf %221, %223 : vector<16x16xf32>
    %c2944 = arith.constant 2944 : index
    %c0_88 = arith.constant 0 : index
    %225 = vector.load %arg1[%c2944, %c0_88] : memref<3888x128xbf16, #tpu.memory_space<vmem>>, vector<128x128xbf16>
    %226 = arith.truncf %188 : vector<16x128xf32> to vector<16x128xbf16>
    %cst_89 = arith.constant dense<0.000000e+00> : vector<16x128xf32>
    %227 = tpu.matmul %226, %225, %cst_89 {dimension_numbers = #tpu.dot_dimension_numbers<[1], [0], [0], [1], [0, 0, 1, 1], [], []>} : vector<16x128xbf16>, vector<128x128xbf16>, vector<16x128xf32> -> vector<16x128xf32>
    %c3872 = arith.constant 3872 : index
    %c0_90 = arith.constant 0 : index
    %228 = vector.load %arg1[%c3872, %c0_90] : memref<3888x128xbf16, #tpu.memory_space<vmem>>, vector<16x128xbf16>
    %229 = arith.truncf %224 : vector<16x16xf32> to vector<16x16xbf16>
    %cst_91 = arith.constant dense<0.000000e+00> : vector<16x128xf32>
    %230 = tpu.matmul %229, %228, %cst_91 {dimension_numbers = #tpu.dot_dimension_numbers<[1], [0], [0], [1], [0, 0, 1, 1], [], []>} : vector<16x16xbf16>, vector<16x128xbf16>, vector<16x128xf32> -> vector<16x128xf32>
    %231 = arith.addf %227, %230 : vector<16x128xf32>
    %232 = vector.extract_strided_slice %0 {offsets = [7, 0], sizes = [1, 128], strides = [1, 1]} : vector<16x128xf32> to vector<1x128xf32>
    %233 = vector.broadcast %232 : vector<1x128xf32> to vector<16x128xf32>
    %234 = arith.addf %231, %233 : vector<16x128xf32>
    %cst_92 = arith.constant 0.00999999977 : f32
    %235 = vector.broadcast %cst_92 : f32 to vector<16x128xf32>
    %236 = arith.mulf %235, %234 : vector<16x128xf32>
    %237 = arith.maximumf %234, %236 : vector<16x128xf32>
    %c2176 = arith.constant 2176 : index
    %c0_93 = arith.constant 0 : index
    %238 = vector.load %arg1[%c2176, %c0_93] : memref<3888x128xbf16, #tpu.memory_space<vmem>>, vector<128x128xbf16>
    %239 = arith.truncf %237 : vector<16x128xf32> to vector<16x128xbf16>
    %cst_94 = arith.constant dense<0.000000e+00> : vector<16x128xf32>
    %240 = tpu.matmul %239, %238, %cst_94 {dimension_numbers = #tpu.dot_dimension_numbers<[1], [0], [0], [1], [0, 0, 1, 1], [], []>} : vector<16x128xbf16>, vector<128x128xbf16>, vector<16x128xf32> -> vector<16x128xf32>
    %241 = vector.extract_strided_slice %237 {offsets = [0, 0], sizes = [8, 128], strides = [1, 1]} : vector<16x128xf32> to vector<8x128xf32>
    %c2_i32_95 = arith.constant 2 : i32
    %242 = tpu.dynamic_rotate %241 by %c2_i32_95 dim 0 : vector<8x128xf32>, i32 -> vector<8x128xf32>
    %243 = vector.extract_strided_slice %237 {offsets = [8, 0], sizes = [8, 128], strides = [1, 1]} : vector<16x128xf32> to vector<8x128xf32>
    %c2_i32_96 = arith.constant 2 : i32
    %244 = tpu.dynamic_rotate %243 by %c2_i32_96 dim 0 : vector<8x128xf32>, i32 -> vector<8x128xf32>
    %245 = tpu.concatenate %242, %244 in 0 : vector<8x128xf32>, vector<8x128xf32> -> vector<16x128xf32>
    %c1920 = arith.constant 1920 : index
    %c0_97 = arith.constant 0 : index
    %246 = vector.load %arg1[%c1920, %c0_97] : memref<3888x128xbf16, #tpu.memory_space<vmem>>, vector<128x128xbf16>
    %247 = arith.truncf %245 : vector<16x128xf32> to vector<16x128xbf16>
    %cst_98 = arith.constant dense<0.000000e+00> : vector<16x128xf32>
    %248 = tpu.matmul %247, %246, %cst_98 {dimension_numbers = #tpu.dot_dimension_numbers<[1], [0], [0], [1], [0, 0, 1, 1], [], []>} : vector<16x128xbf16>, vector<128x128xbf16>, vector<16x128xf32> -> vector<16x128xf32>
    %249 = arith.addf %240, %248 : vector<16x128xf32>
    %250 = vector.extract_strided_slice %237 {offsets = [0, 0], sizes = [8, 128], strides = [1, 1]} : vector<16x128xf32> to vector<8x128xf32>
    %c1_i32_99 = arith.constant 1 : i32
    %251 = tpu.dynamic_rotate %250 by %c1_i32_99 dim 0 : vector<8x128xf32>, i32 -> vector<8x128xf32>
    %252 = vector.extract_strided_slice %237 {offsets = [8, 0], sizes = [8, 128], strides = [1, 1]} : vector<16x128xf32> to vector<8x128xf32>
    %c1_i32_100 = arith.constant 1 : i32
    %253 = tpu.dynamic_rotate %252 by %c1_i32_100 dim 0 : vector<8x128xf32>, i32 -> vector<8x128xf32>
    %254 = tpu.concatenate %251, %253 in 0 : vector<8x128xf32>, vector<8x128xf32> -> vector<16x128xf32>
    %c2048 = arith.constant 2048 : index
    %c0_101 = arith.constant 0 : index
    %255 = vector.load %arg1[%c2048, %c0_101] : memref<3888x128xbf16, #tpu.memory_space<vmem>>, vector<128x128xbf16>
    %256 = arith.truncf %254 : vector<16x128xf32> to vector<16x128xbf16>
    %cst_102 = arith.constant dense<0.000000e+00> : vector<16x128xf32>
    %257 = tpu.matmul %256, %255, %cst_102 {dimension_numbers = #tpu.dot_dimension_numbers<[1], [0], [0], [1], [0, 0, 1, 1], [], []>} : vector<16x128xbf16>, vector<128x128xbf16>, vector<16x128xf32> -> vector<16x128xf32>
    %258 = arith.addf %249, %257 : vector<16x128xf32>
    %259 = vector.extract_strided_slice %237 {offsets = [0, 0], sizes = [8, 128], strides = [1, 1]} : vector<16x128xf32> to vector<8x128xf32>
    %c7_i32_103 = arith.constant 7 : i32
    %260 = tpu.dynamic_rotate %259 by %c7_i32_103 dim 0 : vector<8x128xf32>, i32 -> vector<8x128xf32>
    %261 = vector.extract_strided_slice %237 {offsets = [8, 0], sizes = [8, 128], strides = [1, 1]} : vector<16x128xf32> to vector<8x128xf32>
    %c7_i32_104 = arith.constant 7 : i32
    %262 = tpu.dynamic_rotate %261 by %c7_i32_104 dim 0 : vector<8x128xf32>, i32 -> vector<8x128xf32>
    %263 = tpu.concatenate %260, %262 in 0 : vector<8x128xf32>, vector<8x128xf32> -> vector<16x128xf32>
    %c2304 = arith.constant 2304 : index
    %c0_105 = arith.constant 0 : index
    %264 = vector.load %arg1[%c2304, %c0_105] : memref<3888x128xbf16, #tpu.memory_space<vmem>>, vector<128x128xbf16>
    %265 = arith.truncf %263 : vector<16x128xf32> to vector<16x128xbf16>
    %cst_106 = arith.constant dense<0.000000e+00> : vector<16x128xf32>
    %266 = tpu.matmul %265, %264, %cst_106 {dimension_numbers = #tpu.dot_dimension_numbers<[1], [0], [0], [1], [0, 0, 1, 1], [], []>} : vector<16x128xbf16>, vector<128x128xbf16>, vector<16x128xf32> -> vector<16x128xf32>
    %267 = arith.addf %258, %266 : vector<16x128xf32>
    %268 = vector.extract_strided_slice %237 {offsets = [0, 0], sizes = [8, 128], strides = [1, 1]} : vector<16x128xf32> to vector<8x128xf32>
    %c6_i32_107 = arith.constant 6 : i32
    %269 = tpu.dynamic_rotate %268 by %c6_i32_107 dim 0 : vector<8x128xf32>, i32 -> vector<8x128xf32>
    %270 = vector.extract_strided_slice %237 {offsets = [8, 0], sizes = [8, 128], strides = [1, 1]} : vector<16x128xf32> to vector<8x128xf32>
    %c6_i32_108 = arith.constant 6 : i32
    %271 = tpu.dynamic_rotate %270 by %c6_i32_108 dim 0 : vector<8x128xf32>, i32 -> vector<8x128xf32>
    %272 = tpu.concatenate %269, %271 in 0 : vector<8x128xf32>, vector<8x128xf32> -> vector<16x128xf32>
    %c2432 = arith.constant 2432 : index
    %c0_109 = arith.constant 0 : index
    %273 = vector.load %arg1[%c2432, %c0_109] : memref<3888x128xbf16, #tpu.memory_space<vmem>>, vector<128x128xbf16>
    %274 = arith.truncf %272 : vector<16x128xf32> to vector<16x128xbf16>
    %cst_110 = arith.constant dense<0.000000e+00> : vector<16x128xf32>
    %275 = tpu.matmul %274, %273, %cst_110 {dimension_numbers = #tpu.dot_dimension_numbers<[1], [0], [0], [1], [0, 0, 1, 1], [], []>} : vector<16x128xbf16>, vector<128x128xbf16>, vector<16x128xf32> -> vector<16x128xf32>
    %276 = arith.addf %267, %275 : vector<16x128xf32>
    %277 = vector.extract_strided_slice %0 {offsets = [8, 0], sizes = [1, 128], strides = [1, 1]} : vector<16x128xf32> to vector<1x128xf32>
    %278 = vector.broadcast %277 : vector<1x128xf32> to vector<16x128xf32>
    %279 = arith.addf %276, %278 : vector<16x128xf32>
    %cst_111 = arith.constant 0.00999999977 : f32
    %280 = vector.broadcast %cst_111 : f32 to vector<16x128xf32>
    %281 = arith.mulf %280, %279 : vector<16x128xf32>
    %282 = arith.maximumf %279, %281 : vector<16x128xf32>
    %c2816 = arith.constant 2816 : index
    %c0_112 = arith.constant 0 : index
    %283 = vector.load %arg1[%c2816, %c0_112] : memref<3888x128xbf16, #tpu.memory_space<vmem>>, vector<128x128xbf16>
    %284 = arith.truncf %282 : vector<16x128xf32> to vector<16x128xbf16>
    %cst_113 = arith.constant dense<0.000000e+00> : vector<16x128xf32>
    %285 = tpu.matmul %284, %283, %cst_113 {dimension_numbers = #tpu.dot_dimension_numbers<[1], [0], [0], [1], [0, 0, 1, 1], [], []>} : vector<16x128xbf16>, vector<128x128xbf16>, vector<16x128xf32> -> vector<16x128xf32>
    %286 = vector.extract_strided_slice %0 {offsets = [9, 0], sizes = [1, 128], strides = [1, 1]} : vector<16x128xf32> to vector<1x128xf32>
    %287 = vector.broadcast %286 : vector<1x128xf32> to vector<16x128xf32>
    %288 = arith.addf %285, %287 : vector<16x128xf32>
    %cst_114 = arith.constant 0.00999999977 : f32
    %289 = vector.broadcast %cst_114 : f32 to vector<16x128xf32>
    %290 = arith.mulf %289, %288 : vector<16x128xf32>
    %291 = arith.maximumf %288, %290 : vector<16x128xf32>
    %c0_115 = arith.constant 0 : index
    %c0_116 = arith.constant 0 : index
    %292 = vector.load %arg2[%c0_115, %c0_116] : memref<768x16xbf16, #tpu.memory_space<vmem>>, vector<128x16xbf16>
    %293 = arith.truncf %10 : vector<16x128xf32> to vector<16x128xbf16>
    %cst_117 = arith.constant dense<0.000000e+00> : vector<16x16xf32>
    %294 = tpu.matmul %293, %292, %cst_117 {dimension_numbers = #tpu.dot_dimension_numbers<[1], [0], [0], [1], [0, 0, 1, 1], [], []>} : vector<16x128xbf16>, vector<128x16xbf16>, vector<16x16xf32> -> vector<16x16xf32>
    %c128_118 = arith.constant 128 : index
    %c0_119 = arith.constant 0 : index
    %295 = vector.load %arg2[%c128_118, %c0_119] : memref<768x16xbf16, #tpu.memory_space<vmem>>, vector<128x16xbf16>
    %296 = arith.truncf %64 : vector<16x128xf32> to vector<16x128xbf16>
    %cst_120 = arith.constant dense<0.000000e+00> : vector<16x16xf32>
    %297 = tpu.matmul %296, %295, %cst_120 {dimension_numbers = #tpu.dot_dimension_numbers<[1], [0], [0], [1], [0, 0, 1, 1], [], []>} : vector<16x128xbf16>, vector<128x16xbf16>, vector<16x16xf32> -> vector<16x16xf32>
    %298 = arith.addf %294, %297 : vector<16x16xf32>
    %c256_121 = arith.constant 256 : index
    %c0_122 = arith.constant 0 : index
    %299 = vector.load %arg2[%c256_121, %c0_122] : memref<768x16xbf16, #tpu.memory_space<vmem>>, vector<128x16xbf16>
    %300 = arith.truncf %143 : vector<16x128xf32> to vector<16x128xbf16>
    %cst_123 = arith.constant dense<0.000000e+00> : vector<16x16xf32>
    %301 = tpu.matmul %300, %299, %cst_123 {dimension_numbers = #tpu.dot_dimension_numbers<[1], [0], [0], [1], [0, 0, 1, 1], [], []>} : vector<16x128xbf16>, vector<128x16xbf16>, vector<16x16xf32> -> vector<16x16xf32>
    %302 = arith.addf %298, %301 : vector<16x16xf32>
    %c384_124 = arith.constant 384 : index
    %c0_125 = arith.constant 0 : index
    %303 = vector.load %arg2[%c384_124, %c0_125] : memref<768x16xbf16, #tpu.memory_space<vmem>>, vector<128x16xbf16>
    %304 = arith.truncf %237 : vector<16x128xf32> to vector<16x128xbf16>
    %cst_126 = arith.constant dense<0.000000e+00> : vector<16x16xf32>
    %305 = tpu.matmul %304, %303, %cst_126 {dimension_numbers = #tpu.dot_dimension_numbers<[1], [0], [0], [1], [0, 0, 1, 1], [], []>} : vector<16x128xbf16>, vector<128x16xbf16>, vector<16x16xf32> -> vector<16x16xf32>
    %306 = arith.addf %302, %305 : vector<16x16xf32>
    %c512_127 = arith.constant 512 : index
    %c0_128 = arith.constant 0 : index
    %307 = vector.load %arg2[%c512_127, %c0_128] : memref<768x16xbf16, #tpu.memory_space<vmem>>, vector<128x16xbf16>
    %308 = arith.truncf %291 : vector<16x128xf32> to vector<16x128xbf16>
    %cst_129 = arith.constant dense<0.000000e+00> : vector<16x16xf32>
    %309 = tpu.matmul %308, %307, %cst_129 {dimension_numbers = #tpu.dot_dimension_numbers<[1], [0], [0], [1], [0, 0, 1, 1], [], []>} : vector<16x128xbf16>, vector<128x16xbf16>, vector<16x16xf32> -> vector<16x16xf32>
    %310 = arith.addf %306, %309 : vector<16x16xf32>
    %311 = vector.extract_strided_slice %0 {offsets = [11, 0], sizes = [1, 16], strides = [1, 1]} : vector<16x128xf32> to vector<1x16xf32>
    %312 = vector.broadcast %311 : vector<1x16xf32> to vector<16x16xf32>
    %313 = arith.addf %310, %312 : vector<16x16xf32>
    %cst_130 = arith.constant 0.00999999977 : f32
    %314 = vector.broadcast %cst_130 : f32 to vector<16x16xf32>
    %315 = arith.mulf %314, %313 : vector<16x16xf32>
    %316 = arith.maximumf %313, %315 : vector<16x16xf32>
    %c0_131 = arith.constant 0 : index
    %c0_132 = arith.constant 0 : index
    %317 = vector.load %arg4[%c0_131, %c0_132] : memref<16x16xf32, #tpu.memory_space<vmem>>, vector<16x16xf32>
    tpu.vector_store %arg4[%c0_131, %c0_132], %316 {strides = array<i32>} : memref<16x16xf32, #tpu.memory_space<vmem>>, vector<16x16xf32>,
    return
  }
}

</mosaic_0001>

<llo_original>
// kernel: sgnet_forward.1
$region0: #{sgnet_forward.1}
  #allocation0 [shape = 'u32[]', space=smem, size = 0x4, offset = 0x4, fixed_abs, tag = 'smem constant byte address 0x4 - core index']
  #allocation1 [shape = 'u32[72,128]{1,0:T(1,128)}', space=vmem, size = 0x9000, scoped, tag = 'internal scratch']
  %s0 = inlined_call_operand.vmem [shape: f32[16,32], index: 0, kind: input, shape index: {}]
  %s1 = inlined_call_operand.hbm [shape: bf16[3888,128], index: 1, kind: input, shape index: {}]
  %s2 = inlined_call_operand.vmem [shape: bf16[768,16], index: 2, kind: input, shape index: {}]
  %s3 = inlined_call_operand.vmem [shape: f32[64,128], index: 3, kind: input, shape index: {}]
  %s4 = inlined_call_operand.vmem [shape: f32[16,16], index: 4, kind: output, shape index: {}]
  %s5 = sld [smem:[#allocation0]]
  $region30: #{sgnet_forward.1} parent=0
    _
  %s7 = ssub.s32 1, %s5
  %s8 = scalar_select 0, %s7, %s5
  $region1: #{sgnet_forward.1} parent=0
    #allocation2 [shape = 'u8[995328]{0}', space=vmem, size = 0xf3000, scoped, tag = 'input window, operand 1, single buffered']
    #allocation3 [shape = 's32[1]{0}', space=sflag, size = 0x4, scoped, tag = 'scoped memory for sgnet_forward.1']
    %9 = vsyncpa [#allocation3], 0
    // Predicated region
    $region2: #{sgnet_forward.1} parent=1 // pred_check
      _
    $region3: #{sgnet_forward.1} parent=1 // pred_check_branch
      %11 = sbr.rel (0) target = $region5
    $region4: #{sgnet_forward.1} parent=1 // pred_region
      _
    $region5: #{sgnet_forward.1} parent=1 // pred_fallthru
      _
    // Predicated region
    $region6: #{sgnet_forward.1} parent=1 // pred_check
      _
    $region7: #{sgnet_forward.1} parent=1 // pred_check_branch
      %13 = sbr.rel (0) target = $region9
    $region8: #{sgnet_forward.1} parent=1 // pred_region
      %15 = vsyncadd [#allocation3], 0
      %s16 = sshll.u32 %s1, 4
      %s17 = int_to_ptr.hbm [resolvable:$true] %s16
      %s18 = sshll.u32 [#allocation2], 4
      %s19 = int_to_ptr.vmem [resolvable:$true] %s18
      %24 = dma.hbm_to_vmem [thread:$0]  %s17, 31104, %s19, [#allocation3], 64, 64, 4
    $region9: #{sgnet_forward.1} parent=1 // pred_fallthru
      _
    // Predicated region
    $region10: #{sgnet_forward.1} parent=1 // pred_check
      _
    $region11: #{sgnet_forward.1} parent=1 // pred_check_branch
      %26 = sbr.rel (0) target = $region13
    $region12: #{sgnet_forward.1} parent=1 // pred_region
      _
    $region13: #{sgnet_forward.1} parent=1 // pred_fallthru
      _
    // Predicated region
    $region14: #{sgnet_forward.1} parent=1 // pred_check
      _
    $region15: #{sgnet_forward.1} parent=1 // pred_check_branch
      %28 = sbr.rel (0) target = $region17
    $region16: #{sgnet_forward.1} parent=1 // pred_region
      _
    $region17: #{sgnet_forward.1} parent=1 // pred_fallthru
      _
    // Predicated region
    $region18: #{sgnet_forward.1} parent=1 // pred_check
      _
    $region19: #{sgnet_forward.1} parent=1 // pred_check_branch
      %30 = sbr.rel (0) target = $region21
    $region20: #{sgnet_forward.1} parent=1 // pred_region
      %32 = dma.done [#allocation3], 31104
    $region21: #{sgnet_forward.1} parent=1 // pred_fallthru
      _
    %v34 = vld [vmem:[%s3 + $0x30] sm:$0xff]
    %v35 = vld [vmem:[%s3 + $0x38] sm:$0xff]
    %v36 = vld [vmem:[%s0] sm:$0xff]
    %v37 = vld [vmem:[%s0 + $0x8] sm:$0xff]
    %v38 = vld [vmem:[#allocation2 + $0x780] sm:$0xf]
    %v39 = vld [vmem:[#allocation2 + $0x784] sm:$0xf]
    %v40 = vld [vmem:[#allocation2 + $0x788] sm:$0xf]
    %v41 = vld [vmem:[#allocation2 + $0x78c] sm:$0xf]
    %v42 = vpack.c.bf16 %v37, %v36
    %v43 = vperm.slane %v34, 0
    %v48 = vunpack.c.l.b16 %v38
    %v49 = vunpack.c.l.b16 %v39
    %v50 = vunpack.c.l.b16 %v40
    %v51 = vunpack.c.l.b16 %v41
    %v52 = vpack.c.b16 %v49, %v48
    %v53 = vpack.c.b16 %v51, %v50
    %vm56 = vcmask 261120
    %v58 = vsel %vm56, %v42, 0
    %60 = vmatpush.bf16.msra.mxu0 0
    %61 = vmatpush.bf16.msra.mxu0 0
    %62 = vmatpush.bf16.msra.mxu0 0
    %63 = vmatpush.bf16.msra.mxu0 0
    %64 = vmatpush.bf16.msra.mxu0 0
    %65 = vmatpush.bf16.msra.mxu0 0
    %66 = vmatpush.bf16.msra.mxu0 %v53
    %67 = vmatpush.bf16.msra.mxu0 %v52
    %68 = vmatmul.bf16.gmra.mxu0 %v58
    %v69 = vpop.f32.mrf.mxu0
    %v70 = vadd.f32 %v43, %v69
    %v71 = vpop.f32.mrf.mxu0
    %v72 = vadd.f32 %v43, %v71
    %73 = vdwg.mxu0
    %v74 = vmul.f32 %v70, 0.01
    %v75 = vmul.f32 %v72, 0.01
    %v76 = vmax.f32 %v70, %v74
    %v77 = vmax.f32 %v72, %v75
    %v78 = vld [vmem:[#allocation2 + $0x80] sm:$0xf]
    %v79 = vld [vmem:[#allocation2 + $0x84] sm:$0xf]
    %v80 = vld [vmem:[#allocation2 + $0x88] sm:$0xf]
    %v81 = vld [vmem:[#allocation2 + $0x8c] sm:$0xf]
    %v82 = vld [vmem:[#allocation2 + $0x90] sm:$0xf]
    %v83 = vld [vmem:[#allocation2 + $0x94] sm:$0xf]
    %v84 = vld [vmem:[#allocation2 + $0x98] sm:$0xf]
    %v85 = vld [vmem:[#allocation2 + $0x9c] sm:$0xf]
    %v86 = vld [vmem:[#allocation2 + $0xa0] sm:$0xf]
    %v87 = vld [vmem:[#allocation2 + $0xa4] sm:$0xf]
    %v88 = vld [vmem:[#allocation2 + $0xa8] sm:$0xf]
    %v89 = vld [vmem:[#allocation2 + $0xac] sm:$0xf]
    %v90 = vld [vmem:[#allocation2 + $0xb0] sm:$0xf]
    %v91 = vld [vmem:[#allocation2 + $0xb4] sm:$0xf]
    %v92 = vld [vmem:[#allocation2 + $0xb8] sm:$0xf]
    %v93 = vld [vmem:[#allocation2 + $0xbc] sm:$0xf]
    %v94 = vpack.c.bf16 %v77, %v76
    %v95 = vrot.slane %v76, 6
    %v96 = vrot.slane %v77, 6
    %v97 = vld [vmem:[#allocation2] sm:$0xf]
    %v98 = vld [vmem:[#allocation2 + $0x4] sm:$0xf]
    %v99 = vld [vmem:[#allocation2 + $0x8] sm:$0xf]
    %v100 = vld [vmem:[#allocation2 + $0xc] sm:$0xf]
    %v101 = vld [vmem:[#allocation2 + $0x10] sm:$0xf]
    %v102 = vld [vmem:[#allocation2 + $0x14] sm:$0xf]
    %v103 = vld [vmem:[#allocation2 + $0x18] sm:$0xf]
    %v104 = vld [vmem:[#allocation2 + $0x1c] sm:$0xf]
    %v105 = vld [vmem:[#allocation2 + $0x20] sm:$0xf]
    %v106 = vld [vmem:[#allocation2 + $0x24] sm:$0xf]
    %v107 = vld [vmem:[#allocation2 + $0x28] sm:$0xf]
    %v108 = vld [vmem:[#allocation2 + $0x2c] sm:$0xf]
    %v109 = vld [vmem:[#allocation2 + $0x30] sm:$0xf]
    %v110 = vld [vmem:[#allocation2 + $0x34] sm:$0xf]
    %v111 = vld [vmem:[#allocation2 + $0x38] sm:$0xf]
    %v112 = vld [vmem:[#allocation2 + $0x3c] sm:$0xf]
    %v113 = vpack.c.bf16 %v96, %v95
    %v130 = vunpack.c.l.b16 %v97
    %v131 = vunpack.c.l.b16 %v98
    %v132 = vunpack.c.l.b16 %v99
    %v133 = vunpack.c.l.b16 %v100
    %v134 = vunpack.c.l.b16 %v101
    %v135 = vunpack.c.l.b16 %v102
    %v136 = vunpack.c.l.b16 %v103
    %v137 = vunpack.c.l.b16 %v104
    %v138 = vunpack.c.l.b16 %v105
    %v139 = vunpack.c.l.b16 %v106
    %v140 = vunpack.c.l.b16 %v107
    %v141 = vunpack.c.l.b16 %v108
    %v142 = vunpack.c.l.b16 %v109
    %v143 = vunpack.c.l.b16 %v110
    %v144 = vunpack.c.l.b16 %v111
    %v145 = vunpack.c.l.b16 %v112
    %v146 = vpack.c.b16 %v131, %v130
    %v147 = vpack.c.b16 %v133, %v132
    %v148 = vpack.c.b16 %v135, %v134
    %v149 = vpack.c.b16 %v137, %v136
    %v150 = vpack.c.b16 %v139, %v138
    %v151 = vpack.c.b16 %v141, %v140
    %v152 = vpack.c.b16 %v143, %v142
    %v153 = vpack.c.b16 %v145, %v144
    %162 = vmatpush.bf16.msra.mxu0 %v153
    %163 = vmatpush.bf16.msra.mxu0 %v152
    %164 = vmatpush.bf16.msra.mxu0 %v151
    %165 = vmatpush.bf16.msra.mxu0 %v150
    %166 = vmatpush.bf16.msra.mxu0 %v149
    %167 = vmatpush.bf16.msra.mxu0 %v148
    %168 = vmatpush.bf16.msra.mxu0 %v147
    %169 = vmatpush.bf16.msra.mxu0 %v146
    %170 = vmatmul.bf16.gmra.mxu0 %v113
    %v171 = vpop.f32.mrf.mxu0
    %v172 = vadd.f32 0.0, %v171
    %v173 = vpop.f32.mrf.mxu0
    %v174 = vadd.f32 0.0, %v173
    %175 = vdwg.mxu0
    %v192 = vunpack.c.l.b16 %v78
    %v193 = vunpack.c.l.b16 %v79
    %v194 = vunpack.c.l.b16 %v80
    %v195 = vunpack.c.l.b16 %v81
    %v196 = vunpack.c.l.b16 %v82
    %v197 = vunpack.c.l.b16 %v83
    %v198 = vunpack.c.l.b16 %v84
    %v199 = vunpack.c.l.b16 %v85
    %v200 = vunpack.c.l.b16 %v86
    %v201 = vunpack.c.l.b16 %v87
    %v202 = vunpack.c.l.b16 %v88
    %v203 = vunpack.c.l.b16 %v89
    %v204 = vunpack.c.l.b16 %v90
    %v205 = vunpack.c.l.b16 %v91
    %v206 = vunpack.c.l.b16 %v92
    %v207 = vunpack.c.l.b16 %v93
    %v208 = vpack.c.b16 %v193, %v192
    %v209 = vpack.c.b16 %v195, %v194
    %v210 = vpack.c.b16 %v197, %v196
    %v211 = vpack.c.b16 %v199, %v198
    %v212 = vpack.c.b16 %v201, %v200
    %v213 = vpack.c.b16 %v203, %v202
    %v214 = vpack.c.b16 %v205, %v204
    %v215 = vpack.c.b16 %v207, %v206
    %224 = vmatpush.bf16.msra.mxu0 %v215
    %225 = vmatpush.bf16.msra.mxu0 %v214
    %226 = vmatpush.bf16.msra.mxu0 %v213
    %227 = vmatpush.bf16.msra.mxu0 %v212
    %228 = vmatpush.bf16.msra.mxu0 %v211
    %229 = vmatpush.bf16.msra.mxu0 %v210
    %230 = vmatpush.bf16.msra.mxu0 %v209
    %231 = vmatpush.bf16.msra.mxu0 %v208
    %232 = vmatmul.bf16.gmra.mxu0 %v94
    %v233 = vpop.f32.mrf.mxu0
    %v234 = vadd.f32 %v172, %v233
    %v235 = vpop.f32.mrf.mxu0
    %v236 = vadd.f32 %v174, %v235
    %237 = vdwg.mxu0
    %v238 = vrot.slane %v76, 7
    %v239 = vrot.slane %v77, 7
    %v240 = vld [vmem:[#allocation2 + $0x40] sm:$0xf]
    %v241 = vld [vmem:[#allocation2 + $0x44] sm:$0xf]
    %v242 = vld [vmem:[#allocation2 + $0x48] sm:$0xf]
    %v243 = vld [vmem:[#allocation2 + $0x4c] sm:$0xf]
    %v244 = vld [vmem:[#allocation2 + $0x50] sm:$0xf]
    %v245 = vld [vmem:[#allocation2 + $0x54] sm:$0xf]
    %v246 = vld [vmem:[#allocation2 + $0x58] sm:$0xf]
    %v247 = vld [vmem:[#allocation2 + $0x5c] sm:$0xf]
    %v248 = vld [vmem:[#allocation2 + $0x60] sm:$0xf]
    %v249 = vld [vmem:[#allocation2 + $0x64] sm:$0xf]
    %v250 = vld [vmem:[#allocation2 + $0x68] sm:$0xf]
    %v251 = vld [vmem:[#allocation2 + $0x6c] sm:$0xf]
    %v252 = vld [vmem:[#allocation2 + $0x70] sm:$0xf]
    %v253 = vld [vmem:[#allocation2 + $0x74] sm:$0xf]
    %v254 = vld [vmem:[#allocation2 + $0x78] sm:$0xf]
    %v255 = vld [vmem:[#allocation2 + $0x7c] sm:$0xf]
    %v256 = vpack.c.bf16 %v239, %v238
    %v273 = vunpack.c.l.b16 %v240
    %v274 = vunpack.c.l.b16 %v241
    %v275 = vunpack.c.l.b16 %v242
    %v276 = vunpack.c.l.b16 %v243
    %v277 = vunpack.c.l.b16 %v244
    %v278 = vunpack.c.l.b16 %v245
    %v279 = vunpack.c.l.b16 %v246
    %v280 = vunpack.c.l.b16 %v247
    %v281 = vunpack.c.l.b16 %v248
    %v282 = vunpack.c.l.b16 %v249
    %v283 = vunpack.c.l.b16 %v250
    %v284 = vunpack.c.l.b16 %v251
    %v285 = vunpack.c.l.b16 %v252
    %v286 = vunpack.c.l.b16 %v253
    %v287 = vunpack.c.l.b16 %v254
    %v288 = vunpack.c.l.b16 %v255
    %v289 = vpack.c.b16 %v274, %v273
    %v290 = vpack.c.b16 %v276, %v275
    %v291 = vpack.c.b16 %v278, %v277
    %v292 = vpack.c.b16 %v280, %v279
    %v293 = vpack.c.b16 %v282, %v281
    %v294 = vpack.c.b16 %v284, %v283
    %v295 = vpack.c.b16 %v286, %v285
    %v296 = vpack.c.b16 %v288, %v287
    %305 = vmatpush.bf16.msra.mxu0 %v296
    %306 = vmatpush.bf16.msra.mxu0 %v295
    %307 = vmatpush.bf16.msra.mxu0 %v294
    %308 = vmatpush.bf16.msra.mxu0 %v293
    %309 = vmatpush.bf16.msra.mxu0 %v292
    %310 = vmatpush.bf16.msra.mxu0 %v291
    %311 = vmatpush.bf16.msra.mxu0 %v290
    %312 = vmatpush.bf16.msra.mxu0 %v289
    %313 = vmatmul.bf16.gmra.mxu0 %v256
    %v314 = vpop.f32.mrf.mxu0
    %v315 = vadd.f32 0.0, %v314
    %v316 = vpop.f32.mrf.mxu0
    %v317 = vadd.f32 0.0, %v316
    %318 = vdwg.mxu0
    %v319 = vadd.f32 %v234, %v315
    %v320 = vadd.f32 %v236, %v317
    %v321 = vrot.slane %v76, 1
    %v322 = vrot.slane %v77, 1
    %v323 = vld [vmem:[#allocation2 + $0xc0] sm:$0xf]
    %v324 = vld [vmem:[#allocation2 + $0xc4] sm:$0xf]
    %v325 = vld [vmem:[#allocation2 + $0xc8] sm:$0xf]
    %v326 = vld [vmem:[#allocation2 + $0xcc] sm:$0xf]
    %v327 = vld [vmem:[#allocation2 + $0xd0] sm:$0xf]
    %v328 = vld [vmem:[#allocation2 + $0xd4] sm:$0xf]
    %v329 = vld [vmem:[#allocation2 + $0xd8] sm:$0xf]
    %v330 = vld [vmem:[#allocation2 + $0xdc] sm:$0xf]
    %v331 = vld [vmem:[#allocation2 + $0xe0] sm:$0xf]
    %v332 = vld [vmem:[#allocation2 + $0xe4] sm:$0xf]
    %v333 = vld [vmem:[#allocation2 + $0xe8] sm:$0xf]
    %v334 = vld [vmem:[#allocation2 + $0xec] sm:$0xf]
    %v335 = vld [vmem:[#allocation2 + $0xf0] sm:$0xf]
    %v336 = vld [vmem:[#allocation2 + $0xf4] sm:$0xf]
    %v337 = vld [vmem:[#allocation2 + $0xf8] sm:$0xf]
    %v338 = vld [vmem:[#allocation2 + $0xfc] sm:$0xf]
    %v339 = vpack.c.bf16 %v322, %v321
    %v356 = vunpack.c.l.b16 %v323
    %v357 = vunpack.c.l.b16 %v324
    %v358 = vunpack.c.l.b16 %v325
    %v359 = vunpack.c.l.b16 %v326
    %v360 = vunpack.c.l.b16 %v327
    %v361 = vunpack.c.l.b16 %v328
    %v362 = vunpack.c.l.b16 %v329
    %v363 = vunpack.c.l.b16 %v330
    %v364 = vunpack.c.l.b16 %v331
    %v365 = vunpack.c.l.b16 %v332
    %v366 = vunpack.c.l.b16 %v333
    %v367 = vunpack.c.l.b16 %v334
    %v368 = vunpack.c.l.b16 %v335
    %v369 = vunpack.c.l.b16 %v336
    %v370 = vunpack.c.l.b16 %v337
    %v371 = vunpack.c.l.b16 %v338
    %v372 = vpack.c.b16 %v357, %v356
    %v373 = vpack.c.b16 %v359, %v358
    %v374 = vpack.c.b16 %v361, %v360
    %v375 = vpack.c.b16 %v363, %v362
    %v376 = vpack.c.b16 %v365, %v364
    %v377 = vpack.c.b16 %v367, %v366
    %v378 = vpack.c.b16 %v369, %v368
    %v379 = vpack.c.b16 %v371, %v370
    %388 = vmatpush.bf16.msra.mxu0 %v379
    %389 = vmatpush.bf16.msra.mxu0 %v378
    %390 = vmatpush.bf16.msra.mxu0 %v377
    %391 = vmatpush.bf16.msra.mxu0 %v376
    %392 = vmatpush.bf16.msra.mxu0 %v375
    %393 = vmatpush.bf16.msra.mxu0 %v374
    %394 = vmatpush.bf16.msra.mxu0 %v373
    %395 = vmatpush.bf16.msra.mxu0 %v372
    %396 = vmatmul.bf16.gmra.mxu0 %v339
    %v397 = vpop.f32.mrf.mxu0
    %v398 = vadd.f32 0.0, %v397
    %v399 = vpop.f32.mrf.mxu0
    %v400 = vadd.f32 0.0, %v399
    %401 = vdwg.mxu0
    %v402 = vadd.f32 %v319, %v398
    %v403 = vadd.f32 %v320, %v400
    %v404 = vrot.slane %v76, 2
    %v405 = vrot.slane %v77, 2
    %v406 = vld [vmem:[#allocation2 + $0x100] sm:$0xf]
    %v407 = vld [vmem:[#allocation2 + $0x104] sm:$0xf]
    %v408 = vld [vmem:[#allocation2 + $0x108] sm:$0xf]
    %v409 = vld [vmem:[#allocation2 + $0x10c] sm:$0xf]
    %v410 = vld [vmem:[#allocation2 + $0x110] sm:$0xf]
    %v411 = vld [vmem:[#allocation2 + $0x114] sm:$0xf]
    %v412 = vld [vmem:[#allocation2 + $0x118] sm:$0xf]
    %v413 = vld [vmem:[#allocation2 + $0x11c] sm:$0xf]
    %v414 = vld [vmem:[#allocation2 + $0x120] sm:$0xf]
    %v415 = vld [vmem:[#allocation2 + $0x124] sm:$0xf]
    %v416 = vld [vmem:[#allocation2 + $0x128] sm:$0xf]
    %v417 = vld [vmem:[#allocation2 + $0x12c] sm:$0xf]
    %v418 = vld [vmem:[#allocation2 + $0x130] sm:$0xf]
    %v419 = vld [vmem:[#allocation2 + $0x134] sm:$0xf]
    %v420 = vld [vmem:[#allocation2 + $0x138] sm:$0xf]
    %v421 = vld [vmem:[#allocation2 + $0x13c] sm:$0xf]
    %v422 = vpack.c.bf16 %v405, %v404
    %v439 = vunpack.c.l.b16 %v406
    %v440 = vunpack.c.l.b16 %v407
    %v441 = vunpack.c.l.b16 %v408
    %v442 = vunpack.c.l.b16 %v409
    %v443 = vunpack.c.l.b16 %v410
    %v444 = vunpack.c.l.b16 %v411
    %v445 = vunpack.c.l.b16 %v412
    %v446 = vunpack.c.l.b16 %v413
    %v447 = vunpack.c.l.b16 %v414
    %v448 = vunpack.c.l.b16 %v415
    %v449 = vunpack.c.l.b16 %v416
    %v450 = vunpack.c.l.b16 %v417
    %v451 = vunpack.c.l.b16 %v418
    %v452 = vunpack.c.l.b16 %v419
    %v453 = vunpack.c.l.b16 %v420
    %v454 = vunpack.c.l.b16 %v421
    %v455 = vpack.c.b16 %v440, %v439
    %v456 = vpack.c.b16 %v442, %v441
    %v457 = vpack.c.b16 %v444, %v443
    %v458 = vpack.c.b16 %v446, %v445
    %v459 = vpack.c.b16 %v448, %v447
    %v460 = vpack.c.b16 %v450, %v449
    %v461 = vpack.c.b16 %v452, %v451
    %v462 = vpack.c.b16 %v454, %v453
    %471 = vmatpush.bf16.msra.mxu0 %v462
    %472 = vmatpush.bf16.msra.mxu0 %v461
    %473 = vmatpush.bf16.msra.mxu0 %v460
    %474 = vmatpush.bf16.msra.mxu0 %v459
    %475 = vmatpush.bf16.msra.mxu0 %v458
    %476 = vmatpush.bf16.msra.mxu0 %v457
    %477 = vmatpush.bf16.msra.mxu0 %v456
    %478 = vmatpush.bf16.msra.mxu0 %v455
    %479 = vmatmul.bf16.gmra.mxu0 %v422
    %v480 = vpop.f32.mrf.mxu0
    %v481 = vadd.f32 0.0, %v480
    %v482 = vpop.f32.mrf.mxu0
    %v483 = vadd.f32 0.0, %v482
    %484 = vdwg.mxu0
    %v485 = vadd.f32 %v402, %v481
    %v486 = vadd.f32 %v403, %v483
    %v487 = vperm.slane %v34, 1
    %v488 = vadd.f32 %v485, %v487
    %v489 = vadd.f32 %v486, %v487
    %v490 = vmul.f32 %v488, 0.01
    %v491 = vmul.f32 %v489, 0.01
    %v492 = vmax.f32 %v488, %v490
    %v493 = vmax.f32 %v489, %v491
    %v494 = vld [vmem:[#allocation2 + $0x500] sm:$0xf]
    %v495 = vld [vmem:[#allocation2 + $0x504] sm:$0xf]
    %v496 = vld [vmem:[#allocation2 + $0x508] sm:$0xf]
    %v497 = vld [vmem:[#allocation2 + $0x50c] sm:$0xf]
    %v498 = vld [vmem:[#allocation2 + $0x510] sm:$0xf]
    %v499 = vld [vmem:[#allocation2 + $0x514] sm:$0xf]
    %v500 = vld [vmem:[#allocation2 + $0x518] sm:$0xf]
    %v501 = vld [vmem:[#allocation2 + $0x51c] sm:$0xf]
    %v502 = vld [vmem:[#allocation2 + $0x520] sm:$0xf]
    %v503 = vld [vmem:[#allocation2 + $0x524] sm:$0xf]
    %v504 = vld [vmem:[#allocation2 + $0x528] sm:$0xf]
    %v505 = vld [vmem:[#allocation2 + $0x52c] sm:$0xf]
    %v506 = vld [vmem:[#allocation2 + $0x530] sm:$0xf]
    %v507 = vld [vmem:[#allocation2 + $0x534] sm:$0xf]
    %v508 = vld [vmem:[#allocation2 + $0x538] sm:$0xf]
    %v509 = vld [vmem:[#allocation2 + $0x53c] sm:$0xf]
    %v510 = vpack.c.bf16 %v493, %v492
    %v511 = vperm.slane %v34, 2
    %v528 = vunpack.c.l.b16 %v494
    %v529 = vunpack.c.l.b16 %v495
    %v530 = vunpack.c.l.b16 %v496
    %v531 = vunpack.c.l.b16 %v497
    %v532 = vunpack.c.l.b16 %v498
    %v533 = vunpack.c.l.b16 %v499
    %v534 = vunpack.c.l.b16 %v500
    %v535 = vunpack.c.l.b16 %v501
    %v536 = vunpack.c.l.b16 %v502
    %v537 = vunpack.c.l.b16 %v503
    %v538 = vunpack.c.l.b16 %v504
    %v539 = vunpack.c.l.b16 %v505
    %v540 = vunpack.c.l.b16 %v506
    %v541 = vunpack.c.l.b16 %v507
    %v542 = vunpack.c.l.b16 %v508
    %v543 = vunpack.c.l.b16 %v509
    %v544 = vpack.c.b16 %v529, %v528
    %v545 = vpack.c.b16 %v531, %v530
    %v546 = vpack.c.b16 %v533, %v532
    %v547 = vpack.c.b16 %v535, %v534
    %v548 = vpack.c.b16 %v537, %v536
    %v549 = vpack.c.b16 %v539, %v538
    %v550 = vpack.c.b16 %v541, %v540
    %v551 = vpack.c.b16 %v543, %v542
    %560 = vmatpush.bf16.msra.mxu0 %v551
    %561 = vmatpush.bf16.msra.mxu0 %v550
    %562 = vmatpush.bf16.msra.mxu0 %v549
    %563 = vmatpush.bf16.msra.mxu0 %v548
    %564 = vmatpush.bf16.msra.mxu0 %v547
    %565 = vmatpush.bf16.msra.mxu0 %v546
    %566 = vmatpush.bf16.msra.mxu0 %v545
    %567 = vmatpush.bf16.msra.mxu0 %v544
    %568 = vmatmul.bf16.gmra.mxu0 %v510
    %v569 = vpop.f32.mrf.mxu0
    %v570 = vadd.f32 %v511, %v569
    %v571 = vpop.f32.mrf.mxu0
    %v572 = vadd.f32 %v511, %v571
    %573 = vdwg.mxu0
    %v574 = vmul.f32 %v570, 0.01
    %v575 = vmul.f32 %v572, 0.01
    %v576 = vmax.f32 %v570, %v574
    %v577 = vmax.f32 %v572, %v575
    %v578 = vld [vmem:[#allocation2 + $0x1c0] sm:$0xf]
    %v579 = vld [vmem:[#allocation2 + $0x1c4] sm:$0xf]
    %v580 = vld [vmem:[#allocation2 + $0x1c8] sm:$0xf]
    %v581 = vld [vmem:[#allocation2 + $0x1cc] sm:$0xf]
    %v582 = vld [vmem:[#allocation2 + $0x1d0] sm:$0xf]
    %v583 = vld [vmem:[#allocation2 + $0x1d4] sm:$0xf]
    %v584 = vld [vmem:[#allocation2 + $0x1d8] sm:$0xf]
    %v585 = vld [vmem:[#allocation2 + $0x1dc] sm:$0xf]
    %v586 = vld [vmem:[#allocation2 + $0x1e0] sm:$0xf]
    %v587 = vld [vmem:[#allocation2 + $0x1e4] sm:$0xf]
    %v588 = vld [vmem:[#allocation2 + $0x1e8] sm:$0xf]
    %v589 = vld [vmem:[#allocation2 + $0x1ec] sm:$0xf]
    %v590 = vld [vmem:[#allocation2 + $0x1f0] sm:$0xf]
    %v591 = vld [vmem:[#allocation2 + $0x1f4] sm:$0xf]
    %v592 = vld [vmem:[#allocation2 + $0x1f8] sm:$0xf]
    %v593 = vld [vmem:[#allocation2 + $0x1fc] sm:$0xf]
    %v594 = vpack.c.bf16 %v577, %v576
    %v595 = vrot.slane %v576, 6
    %v596 = vrot.slane %v577, 6
    %v597 = vld [vmem:[#allocation2 + $0x140] sm:$0xf]
    %v598 = vld [vmem:[#allocation2 + $0x144] sm:$0xf]
    %v599 = vld [vmem:[#allocation2 + $0x148] sm:$0xf]
    %v600 = vld [vmem:[#allocation2 + $0x14c] sm:$0xf]
    %v601 = vld [vmem:[#allocation2 + $0x150] sm:$0xf]
    %v602 = vld [vmem:[#allocation2 + $0x154] sm:$0xf]
    %v603 = vld [vmem:[#allocation2 + $0x158] sm:$0xf]
    %v604 = vld [vmem:[#allocation2 + $0x15c] sm:$0xf]
    %v605 = vld [vmem:[#allocation2 + $0x160] sm:$0xf]
    %v606 = vld [vmem:[#allocation2 + $0x164] sm:$0xf]
    %v607 = vld [vmem:[#allocation2 + $0x168] sm:$0xf]
    %v608 = vld [vmem:[#allocation2 + $0x16c] sm:$0xf]
    %v609 = vld [vmem:[#allocation2 + $0x170] sm:$0xf]
    %v610 = vld [vmem:[#allocation2 + $0x174] sm:$0xf]
    %v611 = vld [vmem:[#allocation2 + $0x178] sm:$0xf]
    %v612 = vld [vmem:[#allocation2 + $0x17c] sm:$0xf]
    %v613 = vpack.c.bf16 %v596, %v595
    %v630 = vunpack.c.l.b16 %v597
    %v631 = vunpack.c.l.b16 %v598
    %v632 = vunpack.c.l.b16 %v599
    %v633 = vunpack.c.l.b16 %v600
    %v634 = vunpack.c.l.b16 %v601
    %v635 = vunpack.c.l.b16 %v602
    %v636 = vunpack.c.l.b16 %v603
    %v637 = vunpack.c.l.b16 %v604
    %v638 = vunpack.c.l.b16 %v605
    %v639 = vunpack.c.l.b16 %v606
    %v640 = vunpack.c.l.b16 %v607
    %v641 = vunpack.c.l.b16 %v608
    %v642 = vunpack.c.l.b16 %v609
    %v643 = vunpack.c.l.b16 %v610
    %v644 = vunpack.c.l.b16 %v611
    %v645 = vunpack.c.l.b16 %v612
    %v646 = vpack.c.b16 %v631, %v630
    %v647 = vpack.c.b16 %v633, %v632
    %v648 = vpack.c.b16 %v635, %v634
    %v649 = vpack.c.b16 %v637, %v636
    %v650 = vpack.c.b16 %v639, %v638
    %v651 = vpack.c.b16 %v641, %v640
    %v652 = vpack.c.b16 %v643, %v642
    %v653 = vpack.c.b16 %v645, %v644
    %662 = vmatpush.bf16.msra.mxu0 %v653
    %663 = vmatpush.bf16.msra.mxu0 %v652
    %664 = vmatpush.bf16.msra.mxu0 %v651
    %665 = vmatpush.bf16.msra.mxu0 %v650
    %666 = vmatpush.bf16.msra.mxu0 %v649
    %667 = vmatpush.bf16.msra.mxu0 %v648
    %668 = vmatpush.bf16.msra.mxu0 %v647
    %669 = vmatpush.bf16.msra.mxu0 %v646
    %670 = vmatmul.bf16.gmra.mxu0 %v613
    %v671 = vpop.f32.mrf.mxu0
    %v672 = vadd.f32 0.0, %v671
    %v673 = vpop.f32.mrf.mxu0
    %v674 = vadd.f32 0.0, %v673
    %675 = vdwg.mxu0
    %v692 = vunpack.c.l.b16 %v578
    %v693 = vunpack.c.l.b16 %v579
    %v694 = vunpack.c.l.b16 %v580
    %v695 = vunpack.c.l.b16 %v581
    %v696 = vunpack.c.l.b16 %v582
    %v697 = vunpack.c.l.b16 %v583
    %v698 = vunpack.c.l.b16 %v584
    %v699 = vunpack.c.l.b16 %v585
    %v700 = vunpack.c.l.b16 %v586
    %v701 = vunpack.c.l.b16 %v587
    %v702 = vunpack.c.l.b16 %v588
    %v703 = vunpack.c.l.b16 %v589
    %v704 = vunpack.c.l.b16 %v590
    %v705 = vunpack.c.l.b16 %v591
    %v706 = vunpack.c.l.b16 %v592
    %v707 = vunpack.c.l.b16 %v593
    %v708 = vpack.c.b16 %v693, %v692
    %v709 = vpack.c.b16 %v695, %v694
    %v710 = vpack.c.b16 %v697, %v696
    %v711 = vpack.c.b16 %v699, %v698
    %v712 = vpack.c.b16 %v701, %v700
    %v713 = vpack.c.b16 %v703, %v702
    %v714 = vpack.c.b16 %v705, %v704
    %v715 = vpack.c.b16 %v707, %v706
    %724 = vmatpush.bf16.msra.mxu0 %v715
    %725 = vmatpush.bf16.msra.mxu0 %v714
    %726 = vmatpush.bf16.msra.mxu0 %v713
    %727 = vmatpush.bf16.msra.mxu0 %v712
    %728 = vmatpush.bf16.msra.mxu0 %v711
    %729 = vmatpush.bf16.msra.mxu0 %v710
    %730 = vmatpush.bf16.msra.mxu0 %v709
    %731 = vmatpush.bf16.msra.mxu0 %v708
    %732 = vmatmul.bf16.gmra.mxu0 %v594
    %v733 = vpop.f32.mrf.mxu0
    %v734 = vadd.f32 %v672, %v733
    %v735 = vpop.f32.mrf.mxu0
    %v736 = vadd.f32 %v674, %v735
    %737 = vdwg.mxu0
    %v738 = vrot.slane %v576, 7
    %v739 = vrot.slane %v577, 7
    %v740 = vld [vmem:[#allocation2 + $0x180] sm:$0xf]
    %v741 = vld [vmem:[#allocation2 + $0x184] sm:$0xf]
    %v742 = vld [vmem:[#allocation2 + $0x188] sm:$0xf]
    %v743 = vld [vmem:[#allocation2 + $0x18c] sm:$0xf]
    %v744 = vld [vmem:[#allocation2 + $0x190] sm:$0xf]
    %v745 = vld [vmem:[#allocation2 + $0x194] sm:$0xf]
    %v746 = vld [vmem:[#allocation2 + $0x198] sm:$0xf]
    %v747 = vld [vmem:[#allocation2 + $0x19c] sm:$0xf]
    %v748 = vld [vmem:[#allocation2 + $0x1a0] sm:$0xf]
    %v749 = vld [vmem:[#allocation2 + $0x1a4] sm:$0xf]
    %v750 = vld [vmem:[#allocation2 + $0x1a8] sm:$0xf]
    %v751 = vld [vmem:[#allocation2 + $0x1ac] sm:$0xf]
    %v752 = vld [vmem:[#allocation2 + $0x1b0] sm:$0xf]
    %v753 = vld [vmem:[#allocation2 + $0x1b4] sm:$0xf]
    %v754 = vld [vmem:[#allocation2 + $0x1b8] sm:$0xf]
    %v755 = vld [vmem:[#allocation2 + $0x1bc] sm:$0xf]
    %v756 = vpack.c.bf16 %v739, %v738
    %v773 = vunpack.c.l.b16 %v740
    %v774 = vunpack.c.l.b16 %v741
    %v775 = vunpack.c.l.b16 %v742
    %v776 = vunpack.c.l.b16 %v743
    %v777 = vunpack.c.l.b16 %v744
    %v778 = vunpack.c.l.b16 %v745
    %v779 = vunpack.c.l.b16 %v746
    %v780 = vunpack.c.l.b16 %v747
    %v781 = vunpack.c.l.b16 %v748
    %v782 = vunpack.c.l.b16 %v749
    %v783 = vunpack.c.l.b16 %v750
    %v784 = vunpack.c.l.b16 %v751
    %v785 = vunpack.c.l.b16 %v752
    %v786 = vunpack.c.l.b16 %v753
    %v787 = vunpack.c.l.b16 %v754
    %v788 = vunpack.c.l.b16 %v755
    %v789 = vpack.c.b16 %v774, %v773
    %v790 = vpack.c.b16 %v776, %v775
    %v791 = vpack.c.b16 %v778, %v777
    %v792 = vpack.c.b16 %v780, %v779
    %v793 = vpack.c.b16 %v782, %v781
    %v794 = vpack.c.b16 %v784, %v783
    %v795 = vpack.c.b16 %v786, %v785
    %v796 = vpack.c.b16 %v788, %v787
    %805 = vmatpush.bf16.msra.mxu0 %v796
    %806 = vmatpush.bf16.msra.mxu0 %v795
    %807 = vmatpush.bf16.msra.mxu0 %v794
    %808 = vmatpush.bf16.msra.mxu0 %v793
    %809 = vmatpush.bf16.msra.mxu0 %v792
    %810 = vmatpush.bf16.msra.mxu0 %v791
    %811 = vmatpush.bf16.msra.mxu0 %v790
    %812 = vmatpush.bf16.msra.mxu0 %v789
    %813 = vmatmul.bf16.gmra.mxu0 %v756
    %v814 = vpop.f32.mrf.mxu0
    %v815 = vadd.f32 0.0, %v814
    %v816 = vpop.f32.mrf.mxu0
    %v817 = vadd.f32 0.0, %v816
    %818 = vdwg.mxu0
    %v819 = vadd.f32 %v734, %v815
    %v820 = vadd.f32 %v736, %v817
    %v821 = vrot.slane %v576, 1
    %v822 = vrot.slane %v577, 1
    %v823 = vld [vmem:[#allocation2 + $0x200] sm:$0xf]
    %v824 = vld [vmem:[#allocation2 + $0x204] sm:$0xf]
    %v825 = vld [vmem:[#allocation2 + $0x208] sm:$0xf]
    %v826 = vld [vmem:[#allocation2 + $0x20c] sm:$0xf]
    %v827 = vld [vmem:[#allocation2 + $0x210] sm:$0xf]
    %v828 = vld [vmem:[#allocation2 + $0x214] sm:$0xf]
    %v829 = vld [vmem:[#allocation2 + $0x218] sm:$0xf]
    %v830 = vld [vmem:[#allocation2 + $0x21c] sm:$0xf]
    %v831 = vld [vmem:[#allocation2 + $0x220] sm:$0xf]
    %v832 = vld [vmem:[#allocation2 + $0x224] sm:$0xf]
    %v833 = vld [vmem:[#allocation2 + $0x228] sm:$0xf]
    %v834 = vld [vmem:[#allocation2 + $0x22c] sm:$0xf]
    %v835 = vld [vmem:[#allocation2 + $0x230] sm:$0xf]
    %v836 = vld [vmem:[#allocation2 + $0x234] sm:$0xf]
    %v837 = vld [vmem:[#allocation2 + $0x238] sm:$0xf]
    %v838 = vld [vmem:[#allocation2 + $0x23c] sm:$0xf]
    %v839 = vpack.c.bf16 %v822, %v821
    %v856 = vunpack.c.l.b16 %v823
    %v857 = vunpack.c.l.b16 %v824
    %v858 = vunpack.c.l.b16 %v825
    %v859 = vunpack.c.l.b16 %v826
    %v860 = vunpack.c.l.b16 %v827
    %v861 = vunpack.c.l.b16 %v828
    %v862 = vunpack.c.l.b16 %v829
    %v863 = vunpack.c.l.b16 %v830
    %v864 = vunpack.c.l.b16 %v831
    %v865 = vunpack.c.l.b16 %v832
    %v866 = vunpack.c.l.b16 %v833
    %v867 = vunpack.c.l.b16 %v834
    %v868 = vunpack.c.l.b16 %v835
    %v869 = vunpack.c.l.b16 %v836
    %v870 = vunpack.c.l.b16 %v837
    %v871 = vunpack.c.l.b16 %v838
    %v872 = vpack.c.b16 %v857, %v856
    %v873 = vpack.c.b16 %v859, %v858
    %v874 = vpack.c.b16 %v861, %v860
    %v875 = vpack.c.b16 %v863, %v862
    %v876 = vpack.c.b16 %v865, %v864
    %v877 = vpack.c.b16 %v867, %v866
    %v878 = vpack.c.b16 %v869, %v868
    %v879 = vpack.c.b16 %v871, %v870
    %888 = vmatpush.bf16.msra.mxu0 %v879
    %889 = vmatpush.bf16.msra.mxu0 %v878
    %890 = vmatpush.bf16.msra.mxu0 %v877
    %891 = vmatpush.bf16.msra.mxu0 %v876
    %892 = vmatpush.bf16.msra.mxu0 %v875
    %893 = vmatpush.bf16.msra.mxu0 %v874
    %894 = vmatpush.bf16.msra.mxu0 %v873
    %895 = vmatpush.bf16.msra.mxu0 %v872
    %896 = vmatmul.bf16.gmra.mxu0 %v839
    %v897 = vpop.f32.mrf.mxu0
    %v898 = vadd.f32 0.0, %v897
    %v899 = vpop.f32.mrf.mxu0
    %v900 = vadd.f32 0.0, %v899
    %901 = vdwg.mxu0
    %v902 = vadd.f32 %v819, %v898
    %v903 = vadd.f32 %v820, %v900
    %v904 = vrot.slane %v576, 2
    %v905 = vrot.slane %v577, 2
    %v906 = vld [vmem:[#allocation2 + $0x240] sm:$0xf]
    %v907 = vld [vmem:[#allocation2 + $0x244] sm:$0xf]
    %v908 = vld [vmem:[#allocation2 + $0x248] sm:$0xf]
    %v909 = vld [vmem:[#allocation2 + $0x24c] sm:$0xf]
    %v910 = vld [vmem:[#allocation2 + $0x250] sm:$0xf]
    %v911 = vld [vmem:[#allocation2 + $0x254] sm:$0xf]
    %v912 = vld [vmem:[#allocation2 + $0x258] sm:$0xf]
    %v913 = vld [vmem:[#allocation2 + $0x25c] sm:$0xf]
    %v914 = vld [vmem:[#allocation2 + $0x260] sm:$0xf]
    %v915 = vld [vmem:[#allocation2 + $0x264] sm:$0xf]
    %v916 = vld [vmem:[#allocation2 + $0x268] sm:$0xf]
    %v917 = vld [vmem:[#allocation2 + $0x26c] sm:$0xf]
    %v918 = vld [vmem:[#allocation2 + $0x270] sm:$0xf]
    %v919 = vld [vmem:[#allocation2 + $0x274] sm:$0xf]
    %v920 = vld [vmem:[#allocation2 + $0x278] sm:$0xf]
    %v921 = vld [vmem:[#allocation2 + $0x27c] sm:$0xf]
    %v922 = vpack.c.bf16 %v905, %v904
    %v939 = vunpack.c.l.b16 %v906
    %v940 = vunpack.c.l.b16 %v907
    %v941 = vunpack.c.l.b16 %v908
    %v942 = vunpack.c.l.b16 %v909
    %v943 = vunpack.c.l.b16 %v910
    %v944 = vunpack.c.l.b16 %v911
    %v945 = vunpack.c.l.b16 %v912
    %v946 = vunpack.c.l.b16 %v913
    %v947 = vunpack.c.l.b16 %v914
    %v948 = vunpack.c.l.b16 %v915
    %v949 = vunpack.c.l.b16 %v916
    %v950 = vunpack.c.l.b16 %v917
    %v951 = vunpack.c.l.b16 %v918
    %v952 = vunpack.c.l.b16 %v919
    %v953 = vunpack.c.l.b16 %v920
    %v954 = vunpack.c.l.b16 %v921
    %v955 = vpack.c.b16 %v940, %v939
    %v956 = vpack.c.b16 %v942, %v941
    %v957 = vpack.c.b16 %v944, %v943
    %v958 = vpack.c.b16 %v946, %v945
    %v959 = vpack.c.b16 %v948, %v947
    %v960 = vpack.c.b16 %v950, %v949
    %v961 = vpack.c.b16 %v952, %v951
    %v962 = vpack.c.b16 %v954, %v953
    %971 = vmatpush.bf16.msra.mxu0 %v962
    %972 = vmatpush.bf16.msra.mxu0 %v961
    %973 = vmatpush.bf16.msra.mxu0 %v960
    %974 = vmatpush.bf16.msra.mxu0 %v959
    %975 = vmatpush.bf16.msra.mxu0 %v958
    %976 = vmatpush.bf16.msra.mxu0 %v957
    %977 = vmatpush.bf16.msra.mxu0 %v956
    %978 = vmatpush.bf16.msra.mxu0 %v955
    %979 = vmatmul.bf16.gmra.mxu0 %v922
    %v980 = vpop.f32.mrf.mxu0
    %v981 = vadd.f32 0.0, %v980
    %v982 = vpop.f32.mrf.mxu0
    %v983 = vadd.f32 0.0, %v982
    %984 = vdwg.mxu0
    %v985 = vadd.f32 %v902, %v981
    %v986 = vadd.f32 %v903, %v983
    %v987 = vperm.slane %v34, 3
    %v988 = vadd.f32 %v985, %v987
    %v989 = vadd.f32 %v986, %v987
    %v990 = vmul.f32 %v988, 0.01
    %v991 = vmul.f32 %v989, 0.01
    %v992 = vmax.f32 %v988, %v990
    %v993 = vmax.f32 %v989, %v991
    %v994 = vld [vmem:[#allocation2 + $0x540] sm:$0xf]
    %v995 = vld [vmem:[#allocation2 + $0x544] sm:$0xf]
    %v996 = vld [vmem:[#allocation2 + $0x548] sm:$0xf]
    %v997 = vld [vmem:[#allocation2 + $0x54c] sm:$0xf]
    %v998 = vld [vmem:[#allocation2 + $0x550] sm:$0xf]
    %v999 = vld [vmem:[#allocation2 + $0x554] sm:$0xf]
    %v1000 = vld [vmem:[#allocation2 + $0x558] sm:$0xf]
    %v1001 = vld [vmem:[#allocation2 + $0x55c] sm:$0xf]
    %v1002 = vld [vmem:[#allocation2 + $0x560] sm:$0xf]
    %v1003 = vld [vmem:[#allocation2 + $0x564] sm:$0xf]
    %v1004 = vld [vmem:[#allocation2 + $0x568] sm:$0xf]
    %v1005 = vld [vmem:[#allocation2 + $0x56c] sm:$0xf]
    %v1006 = vld [vmem:[#allocation2 + $0x570] sm:$0xf]
    %v1007 = vld [vmem:[#allocation2 + $0x574] sm:$0xf]
    %v1008 = vld [vmem:[#allocation2 + $0x578] sm:$0xf]
    %v1009 = vld [vmem:[#allocation2 + $0x57c] sm:$0xf]
    %v1010 = vpack.c.bf16 %v993, %v992
    %v1011 = vperm.slane %v34, 4
    %v1028 = vunpack.c.l.b16 %v994
    %v1029 = vunpack.c.l.b16 %v995
    %v1030 = vunpack.c.l.b16 %v996
    %v1031 = vunpack.c.l.b16 %v997
    %v1032 = vunpack.c.l.b16 %v998
    %v1033 = vunpack.c.l.b16 %v999
    %v1034 = vunpack.c.l.b16 %v1000
    %v1035 = vunpack.c.l.b16 %v1001
    %v1036 = vunpack.c.l.b16 %v1002
    %v1037 = vunpack.c.l.b16 %v1003
    %v1038 = vunpack.c.l.b16 %v1004
    %v1039 = vunpack.c.l.b16 %v1005
    %v1040 = vunpack.c.l.b16 %v1006
    %v1041 = vunpack.c.l.b16 %v1007
    %v1042 = vunpack.c.l.b16 %v1008
    %v1043 = vunpack.c.l.b16 %v1009
    %v1044 = vpack.c.b16 %v1029, %v1028
    %v1045 = vpack.c.b16 %v1031, %v1030
    %v1046 = vpack.c.b16 %v1033, %v1032
    %v1047 = vpack.c.b16 %v1035, %v1034
    %v1048 = vpack.c.b16 %v1037, %v1036
    %v1049 = vpack.c.b16 %v1039, %v1038
    %v1050 = vpack.c.b16 %v1041, %v1040
    %v1051 = vpack.c.b16 %v1043, %v1042
    %1060 = vmatpush.bf16.msra.mxu0 %v1051
    %1061 = vmatpush.bf16.msra.mxu0 %v1050
    %1062 = vmatpush.bf16.msra.mxu0 %v1049
    %1063 = vmatpush.bf16.msra.mxu0 %v1048
    %1064 = vmatpush.bf16.msra.mxu0 %v1047
    %1065 = vmatpush.bf16.msra.mxu0 %v1046
    %1066 = vmatpush.bf16.msra.mxu0 %v1045
    %1067 = vmatpush.bf16.msra.mxu0 %v1044
    %1068 = vmatmul.bf16.gmra.mxu0 %v1010
    %v1069 = vpop.f32.mrf.mxu0
    %v1070 = vadd.f32 %v1011, %v1069
    %v1071 = vpop.f32.mrf.mxu0
    %v1072 = vadd.f32 %v1011, %v1071
    %1073 = vdwg.mxu0
    %v1074 = vmul.f32 %v1070, 0.01
    %v1075 = vmul.f32 %v1072, 0.01
    %v1076 = vmax.f32 %v1070, %v1074
    %v1077 = vmax.f32 %v1072, %v1075
    %v1078 = vld [vmem:[#allocation2 + $0x600] sm:$0xf]
    %v1079 = vld [vmem:[#allocation2 + $0x604] sm:$0xf]
    %v1080 = vld [vmem:[#allocation2 + $0x608] sm:$0xf]
    %v1081 = vld [vmem:[#allocation2 + $0x60c] sm:$0xf]
    %v1082 = vld [vmem:[#allocation2 + $0x610] sm:$0xf]
    %v1083 = vld [vmem:[#allocation2 + $0x614] sm:$0xf]
    %v1084 = vld [vmem:[#allocation2 + $0x618] sm:$0xf]
    %v1085 = vld [vmem:[#allocation2 + $0x61c] sm:$0xf]
    %v1086 = vld [vmem:[#allocation2 + $0x620] sm:$0xf]
    %v1087 = vld [vmem:[#allocation2 + $0x624] sm:$0xf]
    %v1088 = vld [vmem:[#allocation2 + $0x628] sm:$0xf]
    %v1089 = vld [vmem:[#allocation2 + $0x62c] sm:$0xf]
    %v1090 = vld [vmem:[#allocation2 + $0x630] sm:$0xf]
    %v1091 = vld [vmem:[#allocation2 + $0x634] sm:$0xf]
    %v1092 = vld [vmem:[#allocation2 + $0x638] sm:$0xf]
    %v1093 = vld [vmem:[#allocation2 + $0x63c] sm:$0xf]
    %v1094 = vld [vmem:[#allocation2 + $0x640] sm:$0xf]
    %v1095 = vld [vmem:[#allocation2 + $0x644] sm:$0xf]
    %v1096 = vld [vmem:[#allocation2 + $0x648] sm:$0xf]
    %v1097 = vld [vmem:[#allocation2 + $0x64c] sm:$0xf]
    %v1098 = vld [vmem:[#allocation2 + $0x650] sm:$0xf]
    %v1099 = vld [vmem:[#allocation2 + $0x654] sm:$0xf]
    %v1100 = vld [vmem:[#allocation2 + $0x658] sm:$0xf]
    %v1101 = vld [vmem:[#allocation2 + $0x65c] sm:$0xf]
    %v1102 = vld [vmem:[#allocation2 + $0x660] sm:$0xf]
    %v1103 = vld [vmem:[#allocation2 + $0x664] sm:$0xf]
    %v1104 = vld [vmem:[#allocation2 + $0x668] sm:$0xf]
    %v1105 = vld [vmem:[#allocation2 + $0x66c] sm:$0xf]
    %v1106 = vld [vmem:[#allocation2 + $0x670] sm:$0xf]
    %v1107 = vld [vmem:[#allocation2 + $0x674] sm:$0xf]
    %v1108 = vld [vmem:[#allocation2 + $0x678] sm:$0xf]
    %v1109 = vld [vmem:[#allocation2 + $0x67c] sm:$0xf]
    %v1126 = vunpack.c.l.b16 %v1094
    %v1127 = vunpack.c.l.b16 %v1095
    %v1128 = vunpack.c.l.b16 %v1096
    %v1129 = vunpack.c.l.b16 %v1097
    %v1130 = vunpack.c.l.b16 %v1098
    %v1131 = vunpack.c.l.b16 %v1099
    %v1132 = vunpack.c.l.b16 %v1100
    %v1133 = vunpack.c.l.b16 %v1101
    %v1134 = vunpack.c.l.b16 %v1102
    %v1135 = vunpack.c.l.b16 %v1103
    %v1136 = vunpack.c.l.b16 %v1104
    %v1137 = vunpack.c.l.b16 %v1105
    %v1138 = vunpack.c.l.b16 %v1106
    %v1139 = vunpack.c.l.b16 %v1107
    %v1140 = vunpack.c.l.b16 %v1108
    %v1141 = vunpack.c.l.b16 %v1109
    %v1142 = vpack.c.b16 %v1127, %v1126
    %v1143 = vpack.c.b16 %v1129, %v1128
    %v1144 = vpack.c.b16 %v1131, %v1130
    %v1145 = vpack.c.b16 %v1133, %v1132
    %v1146 = vpack.c.b16 %v1135, %v1134
    %v1147 = vpack.c.b16 %v1137, %v1136
    %v1148 = vpack.c.b16 %v1139, %v1138
    %v1149 = vpack.c.b16 %v1141, %v1140
    %1158 = vmatpush.bf16.msra.mxu0 %v1149
    %1159 = vmatpush.bf16.msra.mxu0 %v1148
    %1160 = vmatpush.bf16.msra.mxu0 %v1147
    %1161 = vmatpush.bf16.msra.mxu0 %v1146
    %1162 = vmatpush.bf16.msra.mxu0 %v1145
    %1163 = vmatpush.bf16.msra.mxu0 %v1144
    %1164 = vmatpush.bf16.msra.mxu0 %v1143
    %1165 = vmatpush.bf16.msra.mxu0 %v1142
    %1166 = vmatmul.bf16.gmra.mxu0 %v510
    %v1167 = vpop.f32.mrf.mxu0
    %v1168 = vadd.f32 0.0, %v1167
    %v1169 = vpop.f32.mrf.mxu0
    %v1170 = vadd.f32 0.0, %v1169
    %1171 = vdwg.mxu0
    %v1188 = vunpack.c.l.b16 %v1078
    %v1189 = vunpack.c.l.b16 %v1079
    %v1190 = vunpack.c.l.b16 %v1080
    %v1191 = vunpack.c.l.b16 %v1081
    %v1192 = vunpack.c.l.b16 %v1082
    %v1193 = vunpack.c.l.b16 %v1083
    %v1194 = vunpack.c.l.b16 %v1084
    %v1195 = vunpack.c.l.b16 %v1085
    %v1196 = vunpack.c.l.b16 %v1086
    %v1197 = vunpack.c.l.b16 %v1087
    %v1198 = vunpack.c.l.b16 %v1088
    %v1199 = vunpack.c.l.b16 %v1089
    %v1200 = vunpack.c.l.b16 %v1090
    %v1201 = vunpack.c.l.b16 %v1091
    %v1202 = vunpack.c.l.b16 %v1092
    %v1203 = vunpack.c.l.b16 %v1093
    %v1204 = vpack.c.b16 %v1189, %v1188
    %v1205 = vpack.c.b16 %v1191, %v1190
    %v1206 = vpack.c.b16 %v1193, %v1192
    %v1207 = vpack.c.b16 %v1195, %v1194
    %v1208 = vpack.c.b16 %v1197, %v1196
    %v1209 = vpack.c.b16 %v1199, %v1198
    %v1210 = vpack.c.b16 %v1201, %v1200
    %v1211 = vpack.c.b16 %v1203, %v1202
    %1220 = vmatpush.bf16.msra.mxu0 %v1211
    %1221 = vmatpush.bf16.msra.mxu0 %v1210
    %1222 = vmatpush.bf16.msra.mxu0 %v1209
    %1223 = vmatpush.bf16.msra.mxu0 %v1208
    %1224 = vmatpush.bf16.msra.mxu0 %v1207
    %1225 = vmatpush.bf16.msra.mxu0 %v1206
    %1226 = vmatpush.bf16.msra.mxu0 %v1205
    %1227 = vmatpush.bf16.msra.mxu0 %v1204
    %1228 = vmatmul.bf16.gmra.mxu0 %v94
    %v1229 = vpop.f32.mrf.mxu0
    %v1230 = vadd.f32 %v1168, %v1229
    %v1231 = vpop.f32.mrf.mxu0
    %v1232 = vadd.f32 %v1170, %v1231
    %1233 = vdwg.mxu0
    %v1234 = vld [vmem:[#allocation2 + $0x680] sm:$0xf]
    %v1235 = vld [vmem:[#allocation2 + $0x684] sm:$0xf]
    %v1236 = vld [vmem:[#allocation2 + $0x688] sm:$0xf]
    %v1237 = vld [vmem:[#allocation2 + $0x68c] sm:$0xf]
    %v1238 = vld [vmem:[#allocation2 + $0x690] sm:$0xf]
    %v1239 = vld [vmem:[#allocation2 + $0x694] sm:$0xf]
    %v1240 = vld [vmem:[#allocation2 + $0x698] sm:$0xf]
    %v1241 = vld [vmem:[#allocation2 + $0x69c] sm:$0xf]
    %v1242 = vld [vmem:[#allocation2 + $0x6a0] sm:$0xf]
    %v1243 = vld [vmem:[#allocation2 + $0x6a4] sm:$0xf]
    %v1244 = vld [vmem:[#allocation2 + $0x6a8] sm:$0xf]
    %v1245 = vld [vmem:[#allocation2 + $0x6ac] sm:$0xf]
    %v1246 = vld [vmem:[#allocation2 + $0x6b0] sm:$0xf]
    %v1247 = vld [vmem:[#allocation2 + $0x6b4] sm:$0xf]
    %v1248 = vld [vmem:[#allocation2 + $0x6b8] sm:$0xf]
    %v1249 = vld [vmem:[#allocation2 + $0x6bc] sm:$0xf]
    %v1266 = vunpack.c.l.b16 %v1234
    %v1267 = vunpack.c.l.b16 %v1235
    %v1268 = vunpack.c.l.b16 %v1236
    %v1269 = vunpack.c.l.b16 %v1237
    %v1270 = vunpack.c.l.b16 %v1238
    %v1271 = vunpack.c.l.b16 %v1239
    %v1272 = vunpack.c.l.b16 %v1240
    %v1273 = vunpack.c.l.b16 %v1241
    %v1274 = vunpack.c.l.b16 %v1242
    %v1275 = vunpack.c.l.b16 %v1243
    %v1276 = vunpack.c.l.b16 %v1244
    %v1277 = vunpack.c.l.b16 %v1245
    %v1278 = vunpack.c.l.b16 %v1246
    %v1279 = vunpack.c.l.b16 %v1247
    %v1280 = vunpack.c.l.b16 %v1248
    %v1281 = vunpack.c.l.b16 %v1249
    %v1282 = vpack.c.b16 %v1267, %v1266
    %v1283 = vpack.c.b16 %v1269, %v1268
    %v1284 = vpack.c.b16 %v1271, %v1270
    %v1285 = vpack.c.b16 %v1273, %v1272
    %v1286 = vpack.c.b16 %v1275, %v1274
    %v1287 = vpack.c.b16 %v1277, %v1276
    %v1288 = vpack.c.b16 %v1279, %v1278
    %v1289 = vpack.c.b16 %v1281, %v1280
    %1298 = vmatpush.bf16.msra.mxu0 %v1289
    %1299 = vmatpush.bf16.msra.mxu0 %v1288
    %1300 = vmatpush.bf16.msra.mxu0 %v1287
    %1301 = vmatpush.bf16.msra.mxu0 %v1286
    %1302 = vmatpush.bf16.msra.mxu0 %v1285
    %1303 = vmatpush.bf16.msra.mxu0 %v1284
    %1304 = vmatpush.bf16.msra.mxu0 %v1283
    %1305 = vmatpush.bf16.msra.mxu0 %v1282
    %1306 = vmatmul.bf16.gmra.mxu0 %v594
    %v1307 = vpop.f32.mrf.mxu0
    %v1308 = vadd.f32 0.0, %v1307
    %v1309 = vpop.f32.mrf.mxu0
    %v1310 = vadd.f32 0.0, %v1309
    %1311 = vdwg.mxu0
    %v1312 = vadd.f32 %v1230, %v1308
    %v1313 = vadd.f32 %v1232, %v1310
    %v1314 = vld [vmem:[#allocation2 + $0x6c0] sm:$0xf]
    %v1315 = vld [vmem:[#allocation2 + $0x6c4] sm:$0xf]
    %v1316 = vld [vmem:[#allocation2 + $0x6c8] sm:$0xf]
    %v1317 = vld [vmem:[#allocation2 + $0x6cc] sm:$0xf]
    %v1318 = vld [vmem:[#allocation2 + $0x6d0] sm:$0xf]
    %v1319 = vld [vmem:[#allocation2 + $0x6d4] sm:$0xf]
    %v1320 = vld [vmem:[#allocation2 + $0x6d8] sm:$0xf]
    %v1321 = vld [vmem:[#allocation2 + $0x6dc] sm:$0xf]
    %v1322 = vld [vmem:[#allocation2 + $0x6e0] sm:$0xf]
    %v1323 = vld [vmem:[#allocation2 + $0x6e4] sm:$0xf]
    %v1324 = vld [vmem:[#allocation2 + $0x6e8] sm:$0xf]
    %v1325 = vld [vmem:[#allocation2 + $0x6ec] sm:$0xf]
    %v1326 = vld [vmem:[#allocation2 + $0x6f0] sm:$0xf]
    %v1327 = vld [vmem:[#allocation2 + $0x6f4] sm:$0xf]
    %v1328 = vld [vmem:[#allocation2 + $0x6f8] sm:$0xf]
    %v1329 = vld [vmem:[#allocation2 + $0x6fc] sm:$0xf]
    %v1346 = vunpack.c.l.b16 %v1314
    %v1347 = vunpack.c.l.b16 %v1315
    %v1348 = vunpack.c.l.b16 %v1316
    %v1349 = vunpack.c.l.b16 %v1317
    %v1350 = vunpack.c.l.b16 %v1318
    %v1351 = vunpack.c.l.b16 %v1319
    %v1352 = vunpack.c.l.b16 %v1320
    %v1353 = vunpack.c.l.b16 %v1321
    %v1354 = vunpack.c.l.b16 %v1322
    %v1355 = vunpack.c.l.b16 %v1323
    %v1356 = vunpack.c.l.b16 %v1324
    %v1357 = vunpack.c.l.b16 %v1325
    %v1358 = vunpack.c.l.b16 %v1326
    %v1359 = vunpack.c.l.b16 %v1327
    %v1360 = vunpack.c.l.b16 %v1328
    %v1361 = vunpack.c.l.b16 %v1329
    %v1362 = vpack.c.b16 %v1347, %v1346
    %v1363 = vpack.c.b16 %v1349, %v1348
    %v1364 = vpack.c.b16 %v1351, %v1350
    %v1365 = vpack.c.b16 %v1353, %v1352
    %v1366 = vpack.c.b16 %v1355, %v1354
    %v1367 = vpack.c.b16 %v1357, %v1356
    %v1368 = vpack.c.b16 %v1359, %v1358
    %v1369 = vpack.c.b16 %v1361, %v1360
    %1378 = vmatpush.bf16.msra.mxu0 %v1369
    %1379 = vmatpush.bf16.msra.mxu0 %v1368
    %1380 = vmatpush.bf16.msra.mxu0 %v1367
    %1381 = vmatpush.bf16.msra.mxu0 %v1366
    %1382 = vmatpush.bf16.msra.mxu0 %v1365
    %1383 = vmatpush.bf16.msra.mxu0 %v1364
    %1384 = vmatpush.bf16.msra.mxu0 %v1363
    %1385 = vmatpush.bf16.msra.mxu0 %v1362
    %1386 = vmatmul.bf16.gmra.mxu0 %v1010
    %v1387 = vpop.f32.mrf.mxu0
    %v1388 = vadd.f32 0.0, %v1387
    %v1389 = vpop.f32.mrf.mxu0
    %v1390 = vadd.f32 0.0, %v1389
    %1391 = vdwg.mxu0
    %v1392 = vadd.f32 %v1312, %v1388
    %v1393 = vadd.f32 %v1313, %v1390
    %v1394 = vld [vmem:[#allocation2 + $0x700] sm:$0xf]
    %v1395 = vld [vmem:[#allocation2 + $0x704] sm:$0xf]
    %v1396 = vld [vmem:[#allocation2 + $0x708] sm:$0xf]
    %v1397 = vld [vmem:[#allocation2 + $0x70c] sm:$0xf]
    %v1398 = vld [vmem:[#allocation2 + $0x710] sm:$0xf]
    %v1399 = vld [vmem:[#allocation2 + $0x714] sm:$0xf]
    %v1400 = vld [vmem:[#allocation2 + $0x718] sm:$0xf]
    %v1401 = vld [vmem:[#allocation2 + $0x71c] sm:$0xf]
    %v1402 = vld [vmem:[#allocation2 + $0x720] sm:$0xf]
    %v1403 = vld [vmem:[#allocation2 + $0x724] sm:$0xf]
    %v1404 = vld [vmem:[#allocation2 + $0x728] sm:$0xf]
    %v1405 = vld [vmem:[#allocation2 + $0x72c] sm:$0xf]
    %v1406 = vld [vmem:[#allocation2 + $0x730] sm:$0xf]
    %v1407 = vld [vmem:[#allocation2 + $0x734] sm:$0xf]
    %v1408 = vld [vmem:[#allocation2 + $0x738] sm:$0xf]
    %v1409 = vld [vmem:[#allocation2 + $0x73c] sm:$0xf]
    %v1410 = vpack.c.bf16 %v1077, %v1076
    %v1427 = vunpack.c.l.b16 %v1394
    %v1428 = vunpack.c.l.b16 %v1395
    %v1429 = vunpack.c.l.b16 %v1396
    %v1430 = vunpack.c.l.b16 %v1397
    %v1431 = vunpack.c.l.b16 %v1398
    %v1432 = vunpack.c.l.b16 %v1399
    %v1433 = vunpack.c.l.b16 %v1400
    %v1434 = vunpack.c.l.b16 %v1401
    %v1435 = vunpack.c.l.b16 %v1402
    %v1436 = vunpack.c.l.b16 %v1403
    %v1437 = vunpack.c.l.b16 %v1404
    %v1438 = vunpack.c.l.b16 %v1405
    %v1439 = vunpack.c.l.b16 %v1406
    %v1440 = vunpack.c.l.b16 %v1407
    %v1441 = vunpack.c.l.b16 %v1408
    %v1442 = vunpack.c.l.b16 %v1409
    %v1443 = vpack.c.b16 %v1428, %v1427
    %v1444 = vpack.c.b16 %v1430, %v1429
    %v1445 = vpack.c.b16 %v1432, %v1431
    %v1446 = vpack.c.b16 %v1434, %v1433
    %v1447 = vpack.c.b16 %v1436, %v1435
    %v1448 = vpack.c.b16 %v1438, %v1437
    %v1449 = vpack.c.b16 %v1440, %v1439
    %v1450 = vpack.c.b16 %v1442, %v1441
    %1459 = vmatpush.bf16.msra.mxu0 %v1450
    %1460 = vmatpush.bf16.msra.mxu0 %v1449
    %1461 = vmatpush.bf16.msra.mxu0 %v1448
    %1462 = vmatpush.bf16.msra.mxu0 %v1447
    %1463 = vmatpush.bf16.msra.mxu0 %v1446
    %1464 = vmatpush.bf16.msra.mxu0 %v1445
    %1465 = vmatpush.bf16.msra.mxu0 %v1444
    %1466 = vmatpush.bf16.msra.mxu0 %v1443
    %1467 = vmatmul.bf16.gmra.mxu0 %v1410
    %v1468 = vpop.f32.mrf.mxu0
    %v1469 = vadd.f32 0.0, %v1468
    %v1470 = vpop.f32.mrf.mxu0
    %v1471 = vadd.f32 0.0, %v1470
    %1472 = vdwg.mxu0
    %v1473 = vadd.f32 %v1392, %v1469
    %v1474 = vadd.f32 %v1393, %v1471
    %v1475 = vperm.slane %v34, 5
    %v1476 = vadd.f32 %v1473, %v1475
    %v1477 = vadd.f32 %v1474, %v1475
    %v1478 = vmul.f32 %v1476, 0.01
    %v1479 = vmul.f32 %v1477, 0.01
    %v1480 = vmax.f32 %v1476, %v1478
    %v1481 = vmax.f32 %v1477, %v1479
    %v1482 = vld [vmem:[#allocation2 + $0x300] sm:$0xf]
    %v1483 = vld [vmem:[#allocation2 + $0x304] sm:$0xf]
    %v1484 = vld [vmem:[#allocation2 + $0x308] sm:$0xf]
    %v1485 = vld [vmem:[#allocation2 + $0x30c] sm:$0xf]
    %v1486 = vld [vmem:[#allocation2 + $0x310] sm:$0xf]
    %v1487 = vld [vmem:[#allocation2 + $0x314] sm:$0xf]
    %v1488 = vld [vmem:[#allocation2 + $0x318] sm:$0xf]
    %v1489 = vld [vmem:[#allocation2 + $0x31c] sm:$0xf]
    %v1490 = vld [vmem:[#allocation2 + $0x320] sm:$0xf]
    %v1491 = vld [vmem:[#allocation2 + $0x324] sm:$0xf]
    %v1492 = vld [vmem:[#allocation2 + $0x328] sm:$0xf]
    %v1493 = vld [vmem:[#allocation2 + $0x32c] sm:$0xf]
    %v1494 = vld [vmem:[#allocation2 + $0x330] sm:$0xf]
    %v1495 = vld [vmem:[#allocation2 + $0x334] sm:$0xf]
    %v1496 = vld [vmem:[#allocation2 + $0x338] sm:$0xf]
    %v1497 = vld [vmem:[#allocation2 + $0x33c] sm:$0xf]
    %v1498 = vpack.c.bf16 %v1481, %v1480
    %v1499 = vrot.slane %v1480, 6
    %v1500 = vrot.slane %v1481, 6
    %v1501 = vld [vmem:[#allocation2 + $0x280] sm:$0xf]
    %v1502 = vld [vmem:[#allocation2 + $0x284] sm:$0xf]
    %v1503 = vld [vmem:[#allocation2 + $0x288] sm:$0xf]
    %v1504 = vld [vmem:[#allocation2 + $0x28c] sm:$0xf]
    %v1505 = vld [vmem:[#allocation2 + $0x290] sm:$0xf]
    %v1506 = vld [vmem:[#allocation2 + $0x294] sm:$0xf]
    %v1507 = vld [vmem:[#allocation2 + $0x298] sm:$0xf]
    %v1508 = vld [vmem:[#allocation2 + $0x29c] sm:$0xf]
    %v1509 = vld [vmem:[#allocation2 + $0x2a0] sm:$0xf]
    %v1510 = vld [vmem:[#allocation2 + $0x2a4] sm:$0xf]
    %v1511 = vld [vmem:[#allocation2 + $0x2a8] sm:$0xf]
    %v1512 = vld [vmem:[#allocation2 + $0x2ac] sm:$0xf]
    %v1513 = vld [vmem:[#allocation2 + $0x2b0] sm:$0xf]
    %v1514 = vld [vmem:[#allocation2 + $0x2b4] sm:$0xf]
    %v1515 = vld [vmem:[#allocation2 + $0x2b8] sm:$0xf]
    %v1516 = vld [vmem:[#allocation2 + $0x2bc] sm:$0xf]
    %v1517 = vpack.c.bf16 %v1500, %v1499
    %v1534 = vunpack.c.l.b16 %v1501
    %v1535 = vunpack.c.l.b16 %v1502
    %v1536 = vunpack.c.l.b16 %v1503
    %v1537 = vunpack.c.l.b16 %v1504
    %v1538 = vunpack.c.l.b16 %v1505
    %v1539 = vunpack.c.l.b16 %v1506
    %v1540 = vunpack.c.l.b16 %v1507
    %v1541 = vunpack.c.l.b16 %v1508
    %v1542 = vunpack.c.l.b16 %v1509
    %v1543 = vunpack.c.l.b16 %v1510
    %v1544 = vunpack.c.l.b16 %v1511
    %v1545 = vunpack.c.l.b16 %v1512
    %v1546 = vunpack.c.l.b16 %v1513
    %v1547 = vunpack.c.l.b16 %v1514
    %v1548 = vunpack.c.l.b16 %v1515
    %v1549 = vunpack.c.l.b16 %v1516
    %v1550 = vpack.c.b16 %v1535, %v1534
    %v1551 = vpack.c.b16 %v1537, %v1536
    %v1552 = vpack.c.b16 %v1539, %v1538
    %v1553 = vpack.c.b16 %v1541, %v1540
    %v1554 = vpack.c.b16 %v1543, %v1542
    %v1555 = vpack.c.b16 %v1545, %v1544
    %v1556 = vpack.c.b16 %v1547, %v1546
    %v1557 = vpack.c.b16 %v1549, %v1548
    %1566 = vmatpush.bf16.msra.mxu0 %v1557
    %1567 = vmatpush.bf16.msra.mxu0 %v1556
    %1568 = vmatpush.bf16.msra.mxu0 %v1555
    %1569 = vmatpush.bf16.msra.mxu0 %v1554
    %1570 = vmatpush.bf16.msra.mxu0 %v1553
    %1571 = vmatpush.bf16.msra.mxu0 %v1552
    %1572 = vmatpush.bf16.msra.mxu0 %v1551
    %1573 = vmatpush.bf16.msra.mxu0 %v1550
    %1574 = vmatmul.bf16.gmra.mxu0 %v1517
    %v1575 = vpop.f32.mrf.mxu0
    %v1576 = vadd.f32 0.0, %v1575
    %v1577 = vpop.f32.mrf.mxu0
    %v1578 = vadd.f32 0.0, %v1577
    %1579 = vdwg.mxu0
    %v1596 = vunpack.c.l.b16 %v1482
    %v1597 = vunpack.c.l.b16 %v1483
    %v1598 = vunpack.c.l.b16 %v1484
    %v1599 = vunpack.c.l.b16 %v1485
    %v1600 = vunpack.c.l.b16 %v1486
    %v1601 = vunpack.c.l.b16 %v1487
    %v1602 = vunpack.c.l.b16 %v1488
    %v1603 = vunpack.c.l.b16 %v1489
    %v1604 = vunpack.c.l.b16 %v1490
    %v1605 = vunpack.c.l.b16 %v1491
    %v1606 = vunpack.c.l.b16 %v1492
    %v1607 = vunpack.c.l.b16 %v1493
    %v1608 = vunpack.c.l.b16 %v1494
    %v1609 = vunpack.c.l.b16 %v1495
    %v1610 = vunpack.c.l.b16 %v1496
    %v1611 = vunpack.c.l.b16 %v1497
    %v1612 = vpack.c.b16 %v1597, %v1596
    %v1613 = vpack.c.b16 %v1599, %v1598
    %v1614 = vpack.c.b16 %v1601, %v1600
    %v1615 = vpack.c.b16 %v1603, %v1602
    %v1616 = vpack.c.b16 %v1605, %v1604
    %v1617 = vpack.c.b16 %v1607, %v1606
    %v1618 = vpack.c.b16 %v1609, %v1608
    %v1619 = vpack.c.b16 %v1611, %v1610
    %1628 = vmatpush.bf16.msra.mxu0 %v1619
    %1629 = vmatpush.bf16.msra.mxu0 %v1618
    %1630 = vmatpush.bf16.msra.mxu0 %v1617
    %1631 = vmatpush.bf16.msra.mxu0 %v1616
    %1632 = vmatpush.bf16.msra.mxu0 %v1615
    %1633 = vmatpush.bf16.msra.mxu0 %v1614
    %1634 = vmatpush.bf16.msra.mxu0 %v1613
    %1635 = vmatpush.bf16.msra.mxu0 %v1612
    %1636 = vmatmul.bf16.gmra.mxu0 %v1498
    %v1637 = vpop.f32.mrf.mxu0
    %v1638 = vadd.f32 %v1576, %v1637
    %v1639 = vpop.f32.mrf.mxu0
    %v1640 = vadd.f32 %v1578, %v1639
    %1641 = vdwg.mxu0
    %v1642 = vrot.slane %v1480, 7
    %v1643 = vrot.slane %v1481, 7
    %v1644 = vld [vmem:[#allocation2 + $0x2c0] sm:$0xf]
    %v1645 = vld [vmem:[#allocation2 + $0x2c4] sm:$0xf]
    %v1646 = vld [vmem:[#allocation2 + $0x2c8] sm:$0xf]
    %v1647 = vld [vmem:[#allocation2 + $0x2cc] sm:$0xf]
    %v1648 = vld [vmem:[#allocation2 + $0x2d0] sm:$0xf]
    %v1649 = vld [vmem:[#allocation2 + $0x2d4] sm:$0xf]
    %v1650 = vld [vmem:[#allocation2 + $0x2d8] sm:$0xf]
    %v1651 = vld [vmem:[#allocation2 + $0x2dc] sm:$0xf]
    %v1652 = vld [vmem:[#allocation2 + $0x2e0] sm:$0xf]
    %v1653 = vld [vmem:[#allocation2 + $0x2e4] sm:$0xf]
    %v1654 = vld [vmem:[#allocation2 + $0x2e8] sm:$0xf]
    %v1655 = vld [vmem:[#allocation2 + $0x2ec] sm:$0xf]
    %v1656 = vld [vmem:[#allocation2 + $0x2f0] sm:$0xf]
    %v1657 = vld [vmem:[#allocation2 + $0x2f4] sm:$0xf]
    %v1658 = vld [vmem:[#allocation2 + $0x2f8] sm:$0xf]
    %v1659 = vld [vmem:[#allocation2 + $0x2fc] sm:$0xf]
    %v1660 = vpack.c.bf16 %v1643, %v1642
    %v1677 = vunpack.c.l.b16 %v1644
    %v1678 = vunpack.c.l.b16 %v1645
    %v1679 = vunpack.c.l.b16 %v1646
    %v1680 = vunpack.c.l.b16 %v1647
    %v1681 = vunpack.c.l.b16 %v1648
    %v1682 = vunpack.c.l.b16 %v1649
    %v1683 = vunpack.c.l.b16 %v1650
    %v1684 = vunpack.c.l.b16 %v1651
    %v1685 = vunpack.c.l.b16 %v1652
    %v1686 = vunpack.c.l.b16 %v1653
    %v1687 = vunpack.c.l.b16 %v1654
    %v1688 = vunpack.c.l.b16 %v1655
    %v1689 = vunpack.c.l.b16 %v1656
    %v1690 = vunpack.c.l.b16 %v1657
    %v1691 = vunpack.c.l.b16 %v1658
    %v1692 = vunpack.c.l.b16 %v1659
    %v1693 = vpack.c.b16 %v1678, %v1677
    %v1694 = vpack.c.b16 %v1680, %v1679
    %v1695 = vpack.c.b16 %v1682, %v1681
    %v1696 = vpack.c.b16 %v1684, %v1683
    %v1697 = vpack.c.b16 %v1686, %v1685
    %v1698 = vpack.c.b16 %v1688, %v1687
    %v1699 = vpack.c.b16 %v1690, %v1689
    %v1700 = vpack.c.b16 %v1692, %v1691
    %1709 = vmatpush.bf16.msra.mxu0 %v1700
    %1710 = vmatpush.bf16.msra.mxu0 %v1699
    %1711 = vmatpush.bf16.msra.mxu0 %v1698
    %1712 = vmatpush.bf16.msra.mxu0 %v1697
    %1713 = vmatpush.bf16.msra.mxu0 %v1696
    %1714 = vmatpush.bf16.msra.mxu0 %v1695
    %1715 = vmatpush.bf16.msra.mxu0 %v1694
    %1716 = vmatpush.bf16.msra.mxu0 %v1693
    %1717 = vmatmul.bf16.gmra.mxu0 %v1660
    %v1718 = vpop.f32.mrf.mxu0
    %v1719 = vadd.f32 0.0, %v1718
    %v1720 = vpop.f32.mrf.mxu0
    %v1721 = vadd.f32 0.0, %v1720
    %1722 = vdwg.mxu0
    %v1723 = vadd.f32 %v1638, %v1719
    %v1724 = vadd.f32 %v1640, %v1721
    %v1725 = vrot.slane %v1480, 1
    %v1726 = vrot.slane %v1481, 1
    %v1727 = vld [vmem:[#allocation2 + $0x340] sm:$0xf]
    %v1728 = vld [vmem:[#allocation2 + $0x344] sm:$0xf]
    %v1729 = vld [vmem:[#allocation2 + $0x348] sm:$0xf]
    %v1730 = vld [vmem:[#allocation2 + $0x34c] sm:$0xf]
    %v1731 = vld [vmem:[#allocation2 + $0x350] sm:$0xf]
    %v1732 = vld [vmem:[#allocation2 + $0x354] sm:$0xf]
    %v1733 = vld [vmem:[#allocation2 + $0x358] sm:$0xf]
    %v1734 = vld [vmem:[#allocation2 + $0x35c] sm:$0xf]
    %v1735 = vld [vmem:[#allocation2 + $0x360] sm:$0xf]
    %v1736 = vld [vmem:[#allocation2 + $0x364] sm:$0xf]
    %v1737 = vld [vmem:[#allocation2 + $0x368] sm:$0xf]
    %v1738 = vld [vmem:[#allocation2 + $0x36c] sm:$0xf]
    %v1739 = vld [vmem:[#allocation2 + $0x370] sm:$0xf]
    %v1740 = vld [vmem:[#allocation2 + $0x374] sm:$0xf]
    %v1741 = vld [vmem:[#allocation2 + $0x378] sm:$0xf]
    %v1742 = vld [vmem:[#allocation2 + $0x37c] sm:$0xf]
    %v1743 = vpack.c.bf16 %v1726, %v1725
    %v1760 = vunpack.c.l.b16 %v1727
    %v1761 = vunpack.c.l.b16 %v1728
    %v1762 = vunpack.c.l.b16 %v1729
    %v1763 = vunpack.c.l.b16 %v1730
    %v1764 = vunpack.c.l.b16 %v1731
    %v1765 = vunpack.c.l.b16 %v1732
    %v1766 = vunpack.c.l.b16 %v1733
    %v1767 = vunpack.c.l.b16 %v1734
    %v1768 = vunpack.c.l.b16 %v1735
    %v1769 = vunpack.c.l.b16 %v1736
    %v1770 = vunpack.c.l.b16 %v1737
    %v1771 = vunpack.c.l.b16 %v1738
    %v1772 = vunpack.c.l.b16 %v1739
    %v1773 = vunpack.c.l.b16 %v1740
    %v1774 = vunpack.c.l.b16 %v1741
    %v1775 = vunpack.c.l.b16 %v1742
    %v1776 = vpack.c.b16 %v1761, %v1760
    %v1777 = vpack.c.b16 %v1763, %v1762
    %v1778 = vpack.c.b16 %v1765, %v1764
    %v1779 = vpack.c.b16 %v1767, %v1766
    %v1780 = vpack.c.b16 %v1769, %v1768
    %v1781 = vpack.c.b16 %v1771, %v1770
    %v1782 = vpack.c.b16 %v1773, %v1772
    %v1783 = vpack.c.b16 %v1775, %v1774
    %1792 = vmatpush.bf16.msra.mxu0 %v1783
    %1793 = vmatpush.bf16.msra.mxu0 %v1782
    %1794 = vmatpush.bf16.msra.mxu0 %v1781
    %1795 = vmatpush.bf16.msra.mxu0 %v1780
    %1796 = vmatpush.bf16.msra.mxu0 %v1779
    %1797 = vmatpush.bf16.msra.mxu0 %v1778
    %1798 = vmatpush.bf16.msra.mxu0 %v1777
    %1799 = vmatpush.bf16.msra.mxu0 %v1776
    %1800 = vmatmul.bf16.gmra.mxu0 %v1743
    %v1801 = vpop.f32.mrf.mxu0
    %v1802 = vadd.f32 0.0, %v1801
    %v1803 = vpop.f32.mrf.mxu0
    %v1804 = vadd.f32 0.0, %v1803
    %1805 = vdwg.mxu0
    %v1806 = vadd.f32 %v1723, %v1802
    %v1807 = vadd.f32 %v1724, %v1804
    %v1808 = vrot.slane %v1480, 2
    %v1809 = vrot.slane %v1481, 2
    %v1810 = vld [vmem:[#allocation2 + $0x380] sm:$0xf]
    %v1811 = vld [vmem:[#allocation2 + $0x384] sm:$0xf]
    %v1812 = vld [vmem:[#allocation2 + $0x388] sm:$0xf]
    %v1813 = vld [vmem:[#allocation2 + $0x38c] sm:$0xf]
    %v1814 = vld [vmem:[#allocation2 + $0x390] sm:$0xf]
    %v1815 = vld [vmem:[#allocation2 + $0x394] sm:$0xf]
    %v1816 = vld [vmem:[#allocation2 + $0x398] sm:$0xf]
    %v1817 = vld [vmem:[#allocation2 + $0x39c] sm:$0xf]
    %v1818 = vld [vmem:[#allocation2 + $0x3a0] sm:$0xf]
    %v1819 = vld [vmem:[#allocation2 + $0x3a4] sm:$0xf]
    %v1820 = vld [vmem:[#allocation2 + $0x3a8] sm:$0xf]
    %v1821 = vld [vmem:[#allocation2 + $0x3ac] sm:$0xf]
    %v1822 = vld [vmem:[#allocation2 + $0x3b0] sm:$0xf]
    %v1823 = vld [vmem:[#allocation2 + $0x3b4] sm:$0xf]
    %v1824 = vld [vmem:[#allocation2 + $0x3b8] sm:$0xf]
    %v1825 = vld [vmem:[#allocation2 + $0x3bc] sm:$0xf]
    %v1826 = vpack.c.bf16 %v1809, %v1808
    %v1843 = vunpack.c.l.b16 %v1810
    %v1844 = vunpack.c.l.b16 %v1811
    %v1845 = vunpack.c.l.b16 %v1812
    %v1846 = vunpack.c.l.b16 %v1813
    %v1847 = vunpack.c.l.b16 %v1814
    %v1848 = vunpack.c.l.b16 %v1815
    %v1849 = vunpack.c.l.b16 %v1816
    %v1850 = vunpack.c.l.b16 %v1817
    %v1851 = vunpack.c.l.b16 %v1818
    %v1852 = vunpack.c.l.b16 %v1819
    %v1853 = vunpack.c.l.b16 %v1820
    %v1854 = vunpack.c.l.b16 %v1821
    %v1855 = vunpack.c.l.b16 %v1822
    %v1856 = vunpack.c.l.b16 %v1823
    %v1857 = vunpack.c.l.b16 %v1824
    %v1858 = vunpack.c.l.b16 %v1825
    %v1859 = vpack.c.b16 %v1844, %v1843
    %v1860 = vpack.c.b16 %v1846, %v1845
    %v1861 = vpack.c.b16 %v1848, %v1847
    %v1862 = vpack.c.b16 %v1850, %v1849
    %v1863 = vpack.c.b16 %v1852, %v1851
    %v1864 = vpack.c.b16 %v1854, %v1853
    %v1865 = vpack.c.b16 %v1856, %v1855
    %v1866 = vpack.c.b16 %v1858, %v1857
    %1875 = vmatpush.bf16.msra.mxu0 %v1866
    %1876 = vmatpush.bf16.msra.mxu0 %v1865
    %1877 = vmatpush.bf16.msra.mxu0 %v1864
    %1878 = vmatpush.bf16.msra.mxu0 %v1863
    %1879 = vmatpush.bf16.msra.mxu0 %v1862
    %1880 = vmatpush.bf16.msra.mxu0 %v1861
    %1881 = vmatpush.bf16.msra.mxu0 %v1860
    %1882 = vmatpush.bf16.msra.mxu0 %v1859
    %1883 = vmatmul.bf16.gmra.mxu0 %v1826
    %v1884 = vpop.f32.mrf.mxu0
    %v1885 = vadd.f32 0.0, %v1884
    %v1886 = vpop.f32.mrf.mxu0
    %v1887 = vadd.f32 0.0, %v1886
    %1888 = vdwg.mxu0
    %v1889 = vadd.f32 %v1806, %v1885
    %v1890 = vadd.f32 %v1807, %v1887
    %v1891 = vperm.slane %v34, 6
    %v1892 = vadd.f32 %v1889, %v1891
    %v1893 = vadd.f32 %v1890, %v1891
    %v1894 = vmul.f32 %v1892, 0.01
    %v1895 = vmul.f32 %v1893, 0.01
    %v1896 = vmax.f32 %v1892, %v1894
    %v1897 = vmax.f32 %v1893, %v1895
    %v1898 = vld [vmem:[%s3] sm:$0xff]
    %v1899 = vld [vmem:[%s3 + $0x8] sm:$0xff]
    %v1900 = vld [vmem:[%s3 + $0x10] sm:$0xff]
    %v1901 = vld [vmem:[%s3 + $0x18] sm:$0xff]
    %v1902 = vld [vmem:[%s3 + $0x20] sm:$0xff]
    %v1903 = vld [vmem:[%s3 + $0x28] sm:$0xff]
    %v1904 = vmul.f32 %v992, %v1898
    %v1905 = vmul.f32 %v993, %v1899
    %v1906 = vrot.slane %v1904, 4
    %v1907 = vadd.f32 %v1904, %v1906
    %v1908 = vrot.slane %v1907, 2
    %v1909 = vadd.f32 %v1907, %v1908
    %v1910 = vrot.slane %v1909, 1
    %v1911 = vadd.f32 %v1909, %v1910
    %v1912 = vrot.slane %v1905, 4
    %v1913 = vadd.f32 %v1905, %v1912
    %v1914 = vrot.slane %v1913, 2
    %v1915 = vadd.f32 %v1913, %v1914
    %v1916 = vrot.slane %v1915, 1
    %v1917 = vadd.f32 %v1915, %v1916
    %vm1918 = vcmask 1040384
    %v1919 = vsel %vm1918, %v1911, %v1917
    %v1920 = vld [vmem:[#allocation2 + $0x740] sm:$0xf]
    %v1921 = vld [vmem:[#allocation2 + $0x744] sm:$0xf]
    %v1922 = vld [vmem:[#allocation2 + $0x748] sm:$0xf]
    %v1923 = vld [vmem:[#allocation2 + $0x74c] sm:$0xf]
    %v1924 = vld [vmem:[#allocation2 + $0x750] sm:$0xf]
    %v1925 = vld [vmem:[#allocation2 + $0x754] sm:$0xf]
    %v1926 = vld [vmem:[#allocation2 + $0x758] sm:$0xf]
    %v1927 = vld [vmem:[#allocation2 + $0x75c] sm:$0xf]
    %v1928 = vld [vmem:[#allocation2 + $0x760] sm:$0xf]
    %v1929 = vld [vmem:[#allocation2 + $0x764] sm:$0xf]
    %v1930 = vld [vmem:[#allocation2 + $0x768] sm:$0xf]
    %v1931 = vld [vmem:[#allocation2 + $0x76c] sm:$0xf]
    %v1932 = vld [vmem:[#allocation2 + $0x770] sm:$0xf]
    %v1933 = vld [vmem:[#allocation2 + $0x774] sm:$0xf]
    %v1934 = vld [vmem:[#allocation2 + $0x778] sm:$0xf]
    %v1935 = vld [vmem:[#allocation2 + $0x77c] sm:$0xf]
    %v1936 = vpack.c.bf16 %v1919, %v1919
    %v1937 = vperm.slane %v35, 2
    %v1954 = vunpack.c.l.b16 %v1920
    %v1955 = vunpack.c.l.b16 %v1921
    %v1956 = vunpack.c.l.b16 %v1922
    %v1957 = vunpack.c.l.b16 %v1923
    %v1958 = vunpack.c.l.b16 %v1924
    %v1959 = vunpack.c.l.b16 %v1925
    %v1960 = vunpack.c.l.b16 %v1926
    %v1961 = vunpack.c.l.b16 %v1927
    %v1962 = vunpack.c.l.b16 %v1928
    %v1963 = vunpack.c.l.b16 %v1929
    %v1964 = vunpack.c.l.b16 %v1930
    %v1965 = vunpack.c.l.b16 %v1931
    %v1966 = vunpack.c.l.b16 %v1932
    %v1967 = vunpack.c.l.b16 %v1933
    %v1968 = vunpack.c.l.b16 %v1934
    %v1969 = vunpack.c.l.b16 %v1935
    %v1970 = vpack.c.b16 %v1955, %v1954
    %v1971 = vpack.c.b16 %v1957, %v1956
    %v1972 = vpack.c.b16 %v1959, %v1958
    %v1973 = vpack.c.b16 %v1961, %v1960
    %v1974 = vpack.c.b16 %v1963, %v1962
    %v1975 = vpack.c.b16 %v1965, %v1964
    %v1976 = vpack.c.b16 %v1967, %v1966
    %v1977 = vpack.c.b16 %v1969, %v1968
    %1986 = vmatpush.bf16.msra.mxu0 %v1977
    %1987 = vmatpush.bf16.msra.mxu0 %v1976
    %1988 = vmatpush.bf16.msra.mxu0 %v1975
    %1989 = vmatpush.bf16.msra.mxu0 %v1974
    %1990 = vmatpush.bf16.msra.mxu0 %v1973
    %1991 = vmatpush.bf16.msra.mxu0 %v1972
    %1992 = vmatpush.bf16.msra.mxu0 %v1971
    %1993 = vmatpush.bf16.msra.mxu0 %v1970
    %1994 = vmatmul.bf16.gmra.mxu0 %v1936
    %v1995 = vpop.f32.mrf.mxu0
    %v1996 = vadd.f32 %v1937, %v1995
    %v1997 = vpop.f32.mrf.mxu0
    %1998 = vdwg.mxu0
    %v1999 = vmul.f32 %v1996, 0.01
    %v2000 = vmax.f32 %v1996, %v1999
    %v2001 = vperm.slane %v2000, 0
    %v2002 = vperm.slane %v2000, 1
    %v2003 = vmul.f32 %v2001, %v1900
    %v2004 = vmul.f32 %v2002, %v1901
    %v2005 = vld [vmem:[%s2 + $0x140] sm:$0xf]
    %v2006 = vld [vmem:[%s2 + $0x144] sm:$0xf]
    %v2007 = vld [vmem:[%s2 + $0x148] sm:$0xf]
    %v2008 = vld [vmem:[%s2 + $0x14c] sm:$0xf]
    %v2009 = vld [vmem:[%s2 + $0x150] sm:$0xf]
    %v2010 = vld [vmem:[%s2 + $0x154] sm:$0xf]
    %v2011 = vld [vmem:[%s2 + $0x158] sm:$0xf]
    %v2012 = vld [vmem:[%s2 + $0x15c] sm:$0xf]
    %v2013 = vld [vmem:[%s2 + $0x160] sm:$0xf]
    %v2014 = vld [vmem:[%s2 + $0x164] sm:$0xf]
    %v2015 = vld [vmem:[%s2 + $0x168] sm:$0xf]
    %v2016 = vld [vmem:[%s2 + $0x16c] sm:$0xf]
    %v2017 = vld [vmem:[%s2 + $0x170] sm:$0xf]
    %v2018 = vld [vmem:[%s2 + $0x174] sm:$0xf]
    %v2019 = vld [vmem:[%s2 + $0x178] sm:$0xf]
    %v2020 = vld [vmem:[%s2 + $0x17c] sm:$0xf]
    %v2021 = vpack.c.bf16 %v2004, %v2003
    %v2038 = vunpack.c.l.b16 %v2005
    %v2039 = vunpack.c.l.b16 %v2006
    %v2040 = vunpack.c.l.b16 %v2007
    %v2041 = vunpack.c.l.b16 %v2008
    %v2042 = vunpack.c.l.b16 %v2009
    %v2043 = vunpack.c.l.b16 %v2010
    %v2044 = vunpack.c.l.b16 %v2011
    %v2045 = vunpack.c.l.b16 %v2012
    %v2046 = vunpack.c.l.b16 %v2013
    %v2047 = vunpack.c.l.b16 %v2014
    %v2048 = vunpack.c.l.b16 %v2015
    %v2049 = vunpack.c.l.b16 %v2016
    %v2050 = vunpack.c.l.b16 %v2017
    %v2051 = vunpack.c.l.b16 %v2018
    %v2052 = vunpack.c.l.b16 %v2019
    %v2053 = vunpack.c.l.b16 %v2020
    %v2054 = vpack.c.b16 %v2039, %v2038
    %v2055 = vpack.c.b16 %v2041, %v2040
    %v2056 = vpack.c.b16 %v2043, %v2042
    %v2057 = vpack.c.b16 %v2045, %v2044
    %v2058 = vpack.c.b16 %v2047, %v2046
    %v2059 = vpack.c.b16 %v2049, %v2048
    %v2060 = vpack.c.b16 %v2051, %v2050
    %v2061 = vpack.c.b16 %v2053, %v2052
    %2070 = vmatpush.bf16.msra.mxu0 %v2061
    %2071 = vmatpush.bf16.msra.mxu0 %v2060
    %2072 = vmatpush.bf16.msra.mxu0 %v2059
    %2073 = vmatpush.bf16.msra.mxu0 %v2058
    %2074 = vmatpush.bf16.msra.mxu0 %v2057
    %2075 = vmatpush.bf16.msra.mxu0 %v2056
    %2076 = vmatpush.bf16.msra.mxu0 %v2055
    %2077 = vmatpush.bf16.msra.mxu0 %v2054
    %2078 = vmatmul.bf16.gmra.mxu0 %v2021
    %v2079 = vpop.f32.mrf.mxu0
    %v2080 = vadd.f32 %v1902, %v2079
    %v2081 = vpop.f32.mrf.mxu0
    %v2082 = vadd.f32 %v1903, %v2081
    %2083 = vdwg.mxu0
    %v2084 = vmul.f32 %v2080, 0.01
    %v2085 = vmul.f32 %v2082, 0.01
    %v2086 = vmax.f32 %v2080, %v2084
    %v2087 = vmax.f32 %v2082, %v2085
    %v2088 = vld [vmem:[#allocation2 + $0x5c0] sm:$0xf]
    %v2089 = vld [vmem:[#allocation2 + $0x5c4] sm:$0xf]
    %v2090 = vld [vmem:[#allocation2 + $0x5c8] sm:$0xf]
    %v2091 = vld [vmem:[#allocation2 + $0x5cc] sm:$0xf]
    %v2092 = vld [vmem:[#allocation2 + $0x5d0] sm:$0xf]
    %v2093 = vld [vmem:[#allocation2 + $0x5d4] sm:$0xf]
    %v2094 = vld [vmem:[#allocation2 + $0x5d8] sm:$0xf]
    %v2095 = vld [vmem:[#allocation2 + $0x5dc] sm:$0xf]
    %v2096 = vld [vmem:[#allocation2 + $0x5e0] sm:$0xf]
    %v2097 = vld [vmem:[#allocation2 + $0x5e4] sm:$0xf]
    %v2098 = vld [vmem:[#allocation2 + $0x5e8] sm:$0xf]
    %v2099 = vld [vmem:[#allocation2 + $0x5ec] sm:$0xf]
    %v2100 = vld [vmem:[#allocation2 + $0x5f0] sm:$0xf]
    %v2101 = vld [vmem:[#allocation2 + $0x5f4] sm:$0xf]
    %v2102 = vld [vmem:[#allocation2 + $0x5f8] sm:$0xf]
    %v2103 = vld [vmem:[#allocation2 + $0x5fc] sm:$0xf]
    %v2104 = vpack.c.bf16 %v1897, %v1896
    %v2105 = vld [vmem:[#allocation2 + $0x790] sm:$0xf]
    %v2106 = vld [vmem:[#allocation2 + $0x794] sm:$0xf]
    %v2107 = vpack.c.bf16 %v2087, %v2086
    %v2110 = vunpack.c.l.b16 %v2105
    %v2111 = vunpack.c.l.b16 %v2106
    %v2112 = vpack.c.b16 %v2111, %v2110
    %vm2114 = vcmask 130048
    %v2116 = vsel %vm2114, %v2107, 0
    %2118 = vmatpush.bf16.msra.mxu0 0
    %2119 = vmatpush.bf16.msra.mxu0 0
    %2120 = vmatpush.bf16.msra.mxu0 0
    %2121 = vmatpush.bf16.msra.mxu0 0
    %2122 = vmatpush.bf16.msra.mxu0 0
    %2123 = vmatpush.bf16.msra.mxu0 0
    %2124 = vmatpush.bf16.msra.mxu0 0
    %2125 = vmatpush.bf16.msra.mxu0 %v2112
    %2126 = vmatmul.bf16.gmra.mxu0 %v2116
    %v2127 = vpop.f32.mrf.mxu0
    %v2128 = vadd.f32 0.0, %v2127
    %v2129 = vpop.f32.mrf.mxu0
    %v2130 = vadd.f32 0.0, %v2129
    %2131 = vdwg.mxu0
    %v2148 = vunpack.c.l.b16 %v2088
    %v2149 = vunpack.c.l.b16 %v2089
    %v2150 = vunpack.c.l.b16 %v2090
    %v2151 = vunpack.c.l.b16 %v2091
    %v2152 = vunpack.c.l.b16 %v2092
    %v2153 = vunpack.c.l.b16 %v2093
    %v2154 = vunpack.c.l.b16 %v2094
    %v2155 = vunpack.c.l.b16 %v2095
    %v2156 = vunpack.c.l.b16 %v2096
    %v2157 = vunpack.c.l.b16 %v2097
    %v2158 = vunpack.c.l.b16 %v2098
    %v2159 = vunpack.c.l.b16 %v2099
    %v2160 = vunpack.c.l.b16 %v2100
    %v2161 = vunpack.c.l.b16 %v2101
    %v2162 = vunpack.c.l.b16 %v2102
    %v2163 = vunpack.c.l.b16 %v2103
    %v2164 = vpack.c.b16 %v2149, %v2148
    %v2165 = vpack.c.b16 %v2151, %v2150
    %v2166 = vpack.c.b16 %v2153, %v2152
    %v2167 = vpack.c.b16 %v2155, %v2154
    %v2168 = vpack.c.b16 %v2157, %v2156
    %v2169 = vpack.c.b16 %v2159, %v2158
    %v2170 = vpack.c.b16 %v2161, %v2160
    %v2171 = vpack.c.b16 %v2163, %v2162
    %2180 = vmatpush.bf16.msra.mxu0 %v2171
    %2181 = vmatpush.bf16.msra.mxu0 %v2170
    %2182 = vmatpush.bf16.msra.mxu0 %v2169
    %2183 = vmatpush.bf16.msra.mxu0 %v2168
    %2184 = vmatpush.bf16.msra.mxu0 %v2167
    %2185 = vmatpush.bf16.msra.mxu0 %v2166
    %2186 = vmatpush.bf16.msra.mxu0 %v2165
    %2187 = vmatpush.bf16.msra.mxu0 %v2164
    %2188 = vmatmul.bf16.gmra.mxu0 %v2104
    %v2189 = vpop.f32.mrf.mxu0
    %v2190 = vadd.f32 %v2128, %v2189
    %v2191 = vpop.f32.mrf.mxu0
    %v2192 = vadd.f32 %v2130, %v2191
    %2193 = vdwg.mxu0
    %v2194 = vperm.slane %v34, 7
    %v2195 = vadd.f32 %v2190, %v2194
    %v2196 = vadd.f32 %v2192, %v2194
    %v2197 = vmul.f32 %v2195, 0.01
    %v2198 = vmul.f32 %v2196, 0.01
    %v2199 = vmax.f32 %v2195, %v2197
    %v2200 = vmax.f32 %v2196, %v2198
    %v2201 = vld [vmem:[#allocation2 + $0x440] sm:$0xf]
    %v2202 = vld [vmem:[#allocation2 + $0x444] sm:$0xf]
    %v2203 = vld [vmem:[#allocation2 + $0x448] sm:$0xf]
    %v2204 = vld [vmem:[#allocation2 + $0x44c] sm:$0xf]
    %v2205 = vld [vmem:[#allocation2 + $0x450] sm:$0xf]
    %v2206 = vld [vmem:[#allocation2 + $0x454] sm:$0xf]
    %v2207 = vld [vmem:[#allocation2 + $0x458] sm:$0xf]
    %v2208 = vld [vmem:[#allocation2 + $0x45c] sm:$0xf]
    %v2209 = vld [vmem:[#allocation2 + $0x460] sm:$0xf]
    %v2210 = vld [vmem:[#allocation2 + $0x464] sm:$0xf]
    %v2211 = vld [vmem:[#allocation2 + $0x468] sm:$0xf]
    %v2212 = vld [vmem:[#allocation2 + $0x46c] sm:$0xf]
    %v2213 = vld [vmem:[#allocation2 + $0x470] sm:$0xf]
    %v2214 = vld [vmem:[#allocation2 + $0x474] sm:$0xf]
    %v2215 = vld [vmem:[#allocation2 + $0x478] sm:$0xf]
    %v2216 = vld [vmem:[#allocation2 + $0x47c] sm:$0xf]
    %v2217 = vpack.c.bf16 %v2200, %v2199
    %v2218 = vrot.slane %v2199, 6
    %v2219 = vrot.slane %v2200, 6
    %v2220 = vld [vmem:[#allocation2 + $0x3c0] sm:$0xf]
    %v2221 = vld [vmem:[#allocation2 + $0x3c4] sm:$0xf]
    %v2222 = vld [vmem:[#allocation2 + $0x3c8] sm:$0xf]
    %v2223 = vld [vmem:[#allocation2 + $0x3cc] sm:$0xf]
    %v2224 = vld [vmem:[#allocation2 + $0x3d0] sm:$0xf]
    %v2225 = vld [vmem:[#allocation2 + $0x3d4] sm:$0xf]
    %v2226 = vld [vmem:[#allocation2 + $0x3d8] sm:$0xf]
    %v2227 = vld [vmem:[#allocation2 + $0x3dc] sm:$0xf]
    %v2228 = vld [vmem:[#allocation2 + $0x3e0] sm:$0xf]
    %v2229 = vld [vmem:[#allocation2 + $0x3e4] sm:$0xf]
    %v2230 = vld [vmem:[#allocation2 + $0x3e8] sm:$0xf]
    %v2231 = vld [vmem:[#allocation2 + $0x3ec] sm:$0xf]
    %v2232 = vld [vmem:[#allocation2 + $0x3f0] sm:$0xf]
    %v2233 = vld [vmem:[#allocation2 + $0x3f4] sm:$0xf]
    %v2234 = vld [vmem:[#allocation2 + $0x3f8] sm:$0xf]
    %v2235 = vld [vmem:[#allocation2 + $0x3fc] sm:$0xf]
    %v2236 = vpack.c.bf16 %v2219, %v2218
    %v2253 = vunpack.c.l.b16 %v2220
    %v2254 = vunpack.c.l.b16 %v2221
    %v2255 = vunpack.c.l.b16 %v2222
    %v2256 = vunpack.c.l.b16 %v2223
    %v2257 = vunpack.c.l.b16 %v2224
    %v2258 = vunpack.c.l.b16 %v2225
    %v2259 = vunpack.c.l.b16 %v2226
    %v2260 = vunpack.c.l.b16 %v2227
    %v2261 = vunpack.c.l.b16 %v2228
    %v2262 = vunpack.c.l.b16 %v2229
    %v2263 = vunpack.c.l.b16 %v2230
    %v2264 = vunpack.c.l.b16 %v2231
    %v2265 = vunpack.c.l.b16 %v2232
    %v2266 = vunpack.c.l.b16 %v2233
    %v2267 = vunpack.c.l.b16 %v2234
    %v2268 = vunpack.c.l.b16 %v2235
    %v2269 = vpack.c.b16 %v2254, %v2253
    %v2270 = vpack.c.b16 %v2256, %v2255
    %v2271 = vpack.c.b16 %v2258, %v2257
    %v2272 = vpack.c.b16 %v2260, %v2259
    %v2273 = vpack.c.b16 %v2262, %v2261
    %v2274 = vpack.c.b16 %v2264, %v2263
    %v2275 = vpack.c.b16 %v2266, %v2265
    %v2276 = vpack.c.b16 %v2268, %v2267
    %2285 = vmatpush.bf16.msra.mxu0 %v2276
    %2286 = vmatpush.bf16.msra.mxu0 %v2275
    %2287 = vmatpush.bf16.msra.mxu0 %v2274
    %2288 = vmatpush.bf16.msra.mxu0 %v2273
    %2289 = vmatpush.bf16.msra.mxu0 %v2272
    %2290 = vmatpush.bf16.msra.mxu0 %v2271
    %2291 = vmatpush.bf16.msra.mxu0 %v2270
    %2292 = vmatpush.bf16.msra.mxu0 %v2269
    %2293 = vmatmul.bf16.gmra.mxu0 %v2236
    %v2294 = vpop.f32.mrf.mxu0
    %v2295 = vadd.f32 0.0, %v2294
    %v2296 = vpop.f32.mrf.mxu0
    %v2297 = vadd.f32 0.0, %v2296
    %2298 = vdwg.mxu0
    %v2315 = vunpack.c.l.b16 %v2201
    %v2316 = vunpack.c.l.b16 %v2202
    %v2317 = vunpack.c.l.b16 %v2203
    %v2318 = vunpack.c.l.b16 %v2204
    %v2319 = vunpack.c.l.b16 %v2205
    %v2320 = vunpack.c.l.b16 %v2206
    %v2321 = vunpack.c.l.b16 %v2207
    %v2322 = vunpack.c.l.b16 %v2208
    %v2323 = vunpack.c.l.b16 %v2209
    %v2324 = vunpack.c.l.b16 %v2210
    %v2325 = vunpack.c.l.b16 %v2211
    %v2326 = vunpack.c.l.b16 %v2212
    %v2327 = vunpack.c.l.b16 %v2213
    %v2328 = vunpack.c.l.b16 %v2214
    %v2329 = vunpack.c.l.b16 %v2215
    %v2330 = vunpack.c.l.b16 %v2216
    %v2331 = vpack.c.b16 %v2316, %v2315
    %v2332 = vpack.c.b16 %v2318, %v2317
    %v2333 = vpack.c.b16 %v2320, %v2319
    %v2334 = vpack.c.b16 %v2322, %v2321
    %v2335 = vpack.c.b16 %v2324, %v2323
    %v2336 = vpack.c.b16 %v2326, %v2325
    %v2337 = vpack.c.b16 %v2328, %v2327
    %v2338 = vpack.c.b16 %v2330, %v2329
    %2347 = vmatpush.bf16.msra.mxu0 %v2338
    %2348 = vmatpush.bf16.msra.mxu0 %v2337
    %2349 = vmatpush.bf16.msra.mxu0 %v2336
    %2350 = vmatpush.bf16.msra.mxu0 %v2335
    %2351 = vmatpush.bf16.msra.mxu0 %v2334
    %2352 = vmatpush.bf16.msra.mxu0 %v2333
    %2353 = vmatpush.bf16.msra.mxu0 %v2332
    %2354 = vmatpush.bf16.msra.mxu0 %v2331
    %2355 = vmatmul.bf16.gmra.mxu0 %v2217
    %v2356 = vpop.f32.mrf.mxu0
    %v2357 = vadd.f32 %v2295, %v2356
    %v2358 = vpop.f32.mrf.mxu0
    %v2359 = vadd.f32 %v2297, %v2358
    %2360 = vdwg.mxu0
    %v2361 = vrot.slane %v2199, 7
    %v2362 = vrot.slane %v2200, 7
    %v2363 = vld [vmem:[#allocation2 + $0x400] sm:$0xf]
    %v2364 = vld [vmem:[#allocation2 + $0x404] sm:$0xf]
    %v2365 = vld [vmem:[#allocation2 + $0x408] sm:$0xf]
    %v2366 = vld [vmem:[#allocation2 + $0x40c] sm:$0xf]
    %v2367 = vld [vmem:[#allocation2 + $0x410] sm:$0xf]
    %v2368 = vld [vmem:[#allocation2 + $0x414] sm:$0xf]
    %v2369 = vld [vmem:[#allocation2 + $0x418] sm:$0xf]
    %v2370 = vld [vmem:[#allocation2 + $0x41c] sm:$0xf]
    %v2371 = vld [vmem:[#allocation2 + $0x420] sm:$0xf]
    %v2372 = vld [vmem:[#allocation2 + $0x424] sm:$0xf]
    %v2373 = vld [vmem:[#allocation2 + $0x428] sm:$0xf]
    %v2374 = vld [vmem:[#allocation2 + $0x42c] sm:$0xf]
    %v2375 = vld [vmem:[#allocation2 + $0x430] sm:$0xf]
    %v2376 = vld [vmem:[#allocation2 + $0x434] sm:$0xf]
    %v2377 = vld [vmem:[#allocation2 + $0x438] sm:$0xf]
    %v2378 = vld [vmem:[#allocation2 + $0x43c] sm:$0xf]
    %v2379 = vpack.c.bf16 %v2362, %v2361
    %v2396 = vunpack.c.l.b16 %v2363
    %v2397 = vunpack.c.l.b16 %v2364
    %v2398 = vunpack.c.l.b16 %v2365
    %v2399 = vunpack.c.l.b16 %v2366
    %v2400 = vunpack.c.l.b16 %v2367
    %v2401 = vunpack.c.l.b16 %v2368
    %v2402 = vunpack.c.l.b16 %v2369
    %v2403 = vunpack.c.l.b16 %v2370
    %v2404 = vunpack.c.l.b16 %v2371
    %v2405 = vunpack.c.l.b16 %v2372
    %v2406 = vunpack.c.l.b16 %v2373
    %v2407 = vunpack.c.l.b16 %v2374
    %v2408 = vunpack.c.l.b16 %v2375
    %v2409 = vunpack.c.l.b16 %v2376
    %v2410 = vunpack.c.l.b16 %v2377
    %v2411 = vunpack.c.l.b16 %v2378
    %v2412 = vpack.c.b16 %v2397, %v2396
    %v2413 = vpack.c.b16 %v2399, %v2398
    %v2414 = vpack.c.b16 %v2401, %v2400
    %v2415 = vpack.c.b16 %v2403, %v2402
    %v2416 = vpack.c.b16 %v2405, %v2404
    %v2417 = vpack.c.b16 %v2407, %v2406
    %v2418 = vpack.c.b16 %v2409, %v2408
    %v2419 = vpack.c.b16 %v2411, %v2410
    %2428 = vmatpush.bf16.msra.mxu0 %v2419
    %2429 = vmatpush.bf16.msra.mxu0 %v2418
    %2430 = vmatpush.bf16.msra.mxu0 %v2417
    %2431 = vmatpush.bf16.msra.mxu0 %v2416
    %2432 = vmatpush.bf16.msra.mxu0 %v2415
    %2433 = vmatpush.bf16.msra.mxu0 %v2414
    %2434 = vmatpush.bf16.msra.mxu0 %v2413
    %2435 = vmatpush.bf16.msra.mxu0 %v2412
    %2436 = vmatmul.bf16.gmra.mxu0 %v2379
    %v2437 = vpop.f32.mrf.mxu0
    %v2438 = vadd.f32 0.0, %v2437
    %v2439 = vpop.f32.mrf.mxu0
    %v2440 = vadd.f32 0.0, %v2439
    %2441 = vdwg.mxu0
    %v2442 = vadd.f32 %v2357, %v2438
    %v2443 = vadd.f32 %v2359, %v2440
    %v2444 = vrot.slane %v2199, 1
    %v2445 = vrot.slane %v2200, 1
    %v2446 = vld [vmem:[#allocation2 + $0x480] sm:$0xf]
    %v2447 = vld [vmem:[#allocation2 + $0x484] sm:$0xf]
    %v2448 = vld [vmem:[#allocation2 + $0x488] sm:$0xf]
    %v2449 = vld [vmem:[#allocation2 + $0x48c] sm:$0xf]
    %v2450 = vld [vmem:[#allocation2 + $0x490] sm:$0xf]
    %v2451 = vld [vmem:[#allocation2 + $0x494] sm:$0xf]
    %v2452 = vld [vmem:[#allocation2 + $0x498] sm:$0xf]
    %v2453 = vld [vmem:[#allocation2 + $0x49c] sm:$0xf]
    %v2454 = vld [vmem:[#allocation2 + $0x4a0] sm:$0xf]
    %v2455 = vld [vmem:[#allocation2 + $0x4a4] sm:$0xf]
    %v2456 = vld [vmem:[#allocation2 + $0x4a8] sm:$0xf]
    %v2457 = vld [vmem:[#allocation2 + $0x4ac] sm:$0xf]
    %v2458 = vld [vmem:[#allocation2 + $0x4b0] sm:$0xf]
    %v2459 = vld [vmem:[#allocation2 + $0x4b4] sm:$0xf]
    %v2460 = vld [vmem:[#allocation2 + $0x4b8] sm:$0xf]
    %v2461 = vld [vmem:[#allocation2 + $0x4bc] sm:$0xf]
    %v2462 = vpack.c.bf16 %v2445, %v2444
    %v2479 = vunpack.c.l.b16 %v2446
    %v2480 = vunpack.c.l.b16 %v2447
    %v2481 = vunpack.c.l.b16 %v2448
    %v2482 = vunpack.c.l.b16 %v2449
    %v2483 = vunpack.c.l.b16 %v2450
    %v2484 = vunpack.c.l.b16 %v2451
    %v2485 = vunpack.c.l.b16 %v2452
    %v2486 = vunpack.c.l.b16 %v2453
    %v2487 = vunpack.c.l.b16 %v2454
    %v2488 = vunpack.c.l.b16 %v2455
    %v2489 = vunpack.c.l.b16 %v2456
    %v2490 = vunpack.c.l.b16 %v2457
    %v2491 = vunpack.c.l.b16 %v2458
    %v2492 = vunpack.c.l.b16 %v2459
    %v2493 = vunpack.c.l.b16 %v2460
    %v2494 = vunpack.c.l.b16 %v2461
    %v2495 = vpack.c.b16 %v2480, %v2479
    %v2496 = vpack.c.b16 %v2482, %v2481
    %v2497 = vpack.c.b16 %v2484, %v2483
    %v2498 = vpack.c.b16 %v2486, %v2485
    %v2499 = vpack.c.b16 %v2488, %v2487
    %v2500 = vpack.c.b16 %v2490, %v2489
    %v2501 = vpack.c.b16 %v2492, %v2491
    %v2502 = vpack.c.b16 %v2494, %v2493
    %2511 = vmatpush.bf16.msra.mxu0 %v2502
    %2512 = vmatpush.bf16.msra.mxu0 %v2501
    %2513 = vmatpush.bf16.msra.mxu0 %v2500
    %2514 = vmatpush.bf16.msra.mxu0 %v2499
    %2515 = vmatpush.bf16.msra.mxu0 %v2498
    %2516 = vmatpush.bf16.msra.mxu0 %v2497
    %2517 = vmatpush.bf16.msra.mxu0 %v2496
    %2518 = vmatpush.bf16.msra.mxu0 %v2495
    %2519 = vmatmul.bf16.gmra.mxu0 %v2462
    %v2520 = vpop.f32.mrf.mxu0
    %v2521 = vadd.f32 0.0, %v2520
    %v2522 = vpop.f32.mrf.mxu0
    %v2523 = vadd.f32 0.0, %v2522
    %2524 = vdwg.mxu0
    %v2525 = vadd.f32 %v2442, %v2521
    %v2526 = vadd.f32 %v2443, %v2523
    %v2527 = vrot.slane %v2199, 2
    %v2528 = vrot.slane %v2200, 2
    %v2529 = vld [vmem:[#allocation2 + $0x4c0] sm:$0xf]
    %v2530 = vld [vmem:[#allocation2 + $0x4c4] sm:$0xf]
    %v2531 = vld [vmem:[#allocation2 + $0x4c8] sm:$0xf]
    %v2532 = vld [vmem:[#allocation2 + $0x4cc] sm:$0xf]
    %v2533 = vld [vmem:[#allocation2 + $0x4d0] sm:$0xf]
    %v2534 = vld [vmem:[#allocation2 + $0x4d4] sm:$0xf]
    %v2535 = vld [vmem:[#allocation2 + $0x4d8] sm:$0xf]
    %v2536 = vld [vmem:[#allocation2 + $0x4dc] sm:$0xf]
    %v2537 = vld [vmem:[#allocation2 + $0x4e0] sm:$0xf]
    %v2538 = vld [vmem:[#allocation2 + $0x4e4] sm:$0xf]
    %v2539 = vld [vmem:[#allocation2 + $0x4e8] sm:$0xf]
    %v2540 = vld [vmem:[#allocation2 + $0x4ec] sm:$0xf]
    %v2541 = vld [vmem:[#allocation2 + $0x4f0] sm:$0xf]
    %v2542 = vld [vmem:[#allocation2 + $0x4f4] sm:$0xf]
    %v2543 = vld [vmem:[#allocation2 + $0x4f8] sm:$0xf]
    %v2544 = vld [vmem:[#allocation2 + $0x4fc] sm:$0xf]
    %v2545 = vpack.c.bf16 %v2528, %v2527
    %v2562 = vunpack.c.l.b16 %v2529
    %v2563 = vunpack.c.l.b16 %v2530
    %v2564 = vunpack.c.l.b16 %v2531
    %v2565 = vunpack.c.l.b16 %v2532
    %v2566 = vunpack.c.l.b16 %v2533
    %v2567 = vunpack.c.l.b16 %v2534
    %v2568 = vunpack.c.l.b16 %v2535
    %v2569 = vunpack.c.l.b16 %v2536
    %v2570 = vunpack.c.l.b16 %v2537
    %v2571 = vunpack.c.l.b16 %v2538
    %v2572 = vunpack.c.l.b16 %v2539
    %v2573 = vunpack.c.l.b16 %v2540
    %v2574 = vunpack.c.l.b16 %v2541
    %v2575 = vunpack.c.l.b16 %v2542
    %v2576 = vunpack.c.l.b16 %v2543
    %v2577 = vunpack.c.l.b16 %v2544
    %v2578 = vpack.c.b16 %v2563, %v2562
    %v2579 = vpack.c.b16 %v2565, %v2564
    %v2580 = vpack.c.b16 %v2567, %v2566
    %v2581 = vpack.c.b16 %v2569, %v2568
    %v2582 = vpack.c.b16 %v2571, %v2570
    %v2583 = vpack.c.b16 %v2573, %v2572
    %v2584 = vpack.c.b16 %v2575, %v2574
    %v2585 = vpack.c.b16 %v2577, %v2576
    %2594 = vmatpush.bf16.msra.mxu0 %v2585
    %2595 = vmatpush.bf16.msra.mxu0 %v2584
    %2596 = vmatpush.bf16.msra.mxu0 %v2583
    %2597 = vmatpush.bf16.msra.mxu0 %v2582
    %2598 = vmatpush.bf16.msra.mxu0 %v2581
    %2599 = vmatpush.bf16.msra.mxu0 %v2580
    %2600 = vmatpush.bf16.msra.mxu0 %v2579
    %2601 = vmatpush.bf16.msra.mxu0 %v2578
    %2602 = vmatmul.bf16.gmra.mxu0 %v2545
    %v2603 = vpop.f32.mrf.mxu0
    %v2604 = vadd.f32 0.0, %v2603
    %v2605 = vpop.f32.mrf.mxu0
    %v2606 = vadd.f32 0.0, %v2605
    %2607 = vdwg.mxu0
    %v2608 = vadd.f32 %v2525, %v2604
    %v2609 = vadd.f32 %v2526, %v2606
    %v2610 = vperm.slane %v35, 0
    %v2611 = vadd.f32 %v2608, %v2610
    %v2612 = vadd.f32 %v2609, %v2610
    %v2613 = vmul.f32 %v2611, 0.01
    %v2614 = vmul.f32 %v2612, 0.01
    %v2615 = vmax.f32 %v2611, %v2613
    %v2616 = vmax.f32 %v2612, %v2614
    %v2617 = vld [vmem:[#allocation2 + $0x580] sm:$0xf]
    %v2618 = vld [vmem:[#allocation2 + $0x584] sm:$0xf]
    %v2619 = vld [vmem:[#allocation2 + $0x588] sm:$0xf]
    %v2620 = vld [vmem:[#allocation2 + $0x58c] sm:$0xf]
    %v2621 = vld [vmem:[#allocation2 + $0x590] sm:$0xf]
    %v2622 = vld [vmem:[#allocation2 + $0x594] sm:$0xf]
    %v2623 = vld [vmem:[#allocation2 + $0x598] sm:$0xf]
    %v2624 = vld [vmem:[#allocation2 + $0x59c] sm:$0xf]
    %v2625 = vld [vmem:[#allocation2 + $0x5a0] sm:$0xf]
    %v2626 = vld [vmem:[#allocation2 + $0x5a4] sm:$0xf]
    %v2627 = vld [vmem:[#allocation2 + $0x5a8] sm:$0xf]
    %v2628 = vld [vmem:[#allocation2 + $0x5ac] sm:$0xf]
    %v2629 = vld [vmem:[#allocation2 + $0x5b0] sm:$0xf]
    %v2630 = vld [vmem:[#allocation2 + $0x5b4] sm:$0xf]
    %v2631 = vld [vmem:[#allocation2 + $0x5b8] sm:$0xf]
    %v2632 = vld [vmem:[#allocation2 + $0x5bc] sm:$0xf]
    %v2633 = vpack.c.bf16 %v2616, %v2615
    %v2634 = vperm.slane %v35, 1
    %v2651 = vunpack.c.l.b16 %v2617
    %v2652 = vunpack.c.l.b16 %v2618
    %v2653 = vunpack.c.l.b16 %v2619
    %v2654 = vunpack.c.l.b16 %v2620
    %v2655 = vunpack.c.l.b16 %v2621
    %v2656 = vunpack.c.l.b16 %v2622
    %v2657 = vunpack.c.l.b16 %v2623
    %v2658 = vunpack.c.l.b16 %v2624
    %v2659 = vunpack.c.l.b16 %v2625
    %v2660 = vunpack.c.l.b16 %v2626
    %v2661 = vunpack.c.l.b16 %v2627
    %v2662 = vunpack.c.l.b16 %v2628
    %v2663 = vunpack.c.l.b16 %v2629
    %v2664 = vunpack.c.l.b16 %v2630
    %v2665 = vunpack.c.l.b16 %v2631
    %v2666 = vunpack.c.l.b16 %v2632
    %v2667 = vpack.c.b16 %v2652, %v2651
    %v2668 = vpack.c.b16 %v2654, %v2653
    %v2669 = vpack.c.b16 %v2656, %v2655
    %v2670 = vpack.c.b16 %v2658, %v2657
    %v2671 = vpack.c.b16 %v2660, %v2659
    %v2672 = vpack.c.b16 %v2662, %v2661
    %v2673 = vpack.c.b16 %v2664, %v2663
    %v2674 = vpack.c.b16 %v2666, %v2665
    %2683 = vmatpush.bf16.msra.mxu0 %v2674
    %2684 = vmatpush.bf16.msra.mxu0 %v2673
    %2685 = vmatpush.bf16.msra.mxu0 %v2672
    %2686 = vmatpush.bf16.msra.mxu0 %v2671
    %2687 = vmatpush.bf16.msra.mxu0 %v2670
    %2688 = vmatpush.bf16.msra.mxu0 %v2669
    %2689 = vmatpush.bf16.msra.mxu0 %v2668
    %2690 = vmatpush.bf16.msra.mxu0 %v2667
    %2691 = vmatmul.bf16.gmra.mxu0 %v2633
    %v2692 = vpop.f32.mrf.mxu0
    %v2693 = vadd.f32 %v2634, %v2692
    %v2694 = vpop.f32.mrf.mxu0
    %v2695 = vadd.f32 %v2634, %v2694
    %2696 = vdwg.mxu0
    %v2697 = vmul.f32 %v2693, 0.01
    %v2698 = vmul.f32 %v2695, 0.01
    %v2699 = vmax.f32 %v2693, %v2697
    %v2700 = vmax.f32 %v2695, %v2698
    %v2701 = vld [vmem:[%s2] sm:$0xf]
    %v2702 = vld [vmem:[%s2 + $0x4] sm:$0xf]
    %v2703 = vld [vmem:[%s2 + $0x8] sm:$0xf]
    %v2704 = vld [vmem:[%s2 + $0xc] sm:$0xf]
    %v2705 = vld [vmem:[%s2 + $0x10] sm:$0xf]
    %v2706 = vld [vmem:[%s2 + $0x14] sm:$0xf]
    %v2707 = vld [vmem:[%s2 + $0x18] sm:$0xf]
    %v2708 = vld [vmem:[%s2 + $0x1c] sm:$0xf]
    %v2709 = vld [vmem:[%s2 + $0x20] sm:$0xf]
    %v2710 = vld [vmem:[%s2 + $0x24] sm:$0xf]
    %v2711 = vld [vmem:[%s2 + $0x28] sm:$0xf]
    %v2712 = vld [vmem:[%s2 + $0x2c] sm:$0xf]
    %v2713 = vld [vmem:[%s2 + $0x30] sm:$0xf]
    %v2714 = vld [vmem:[%s2 + $0x34] sm:$0xf]
    %v2715 = vld [vmem:[%s2 + $0x38] sm:$0xf]
    %v2716 = vld [vmem:[%s2 + $0x3c] sm:$0xf]
    %v2717 = vld [vmem:[%s2 + $0x40] sm:$0xf]
    %v2718 = vld [vmem:[%s2 + $0x44] sm:$0xf]
    %v2719 = vld [vmem:[%s2 + $0x48] sm:$0xf]
    %v2720 = vld [vmem:[%s2 + $0x4c] sm:$0xf]
    %v2721 = vld [vmem:[%s2 + $0x50] sm:$0xf]
    %v2722 = vld [vmem:[%s2 + $0x54] sm:$0xf]
    %v2723 = vld [vmem:[%s2 + $0x58] sm:$0xf]
    %v2724 = vld [vmem:[%s2 + $0x5c] sm:$0xf]
    %v2725 = vld [vmem:[%s2 + $0x60] sm:$0xf]
    %v2726 = vld [vmem:[%s2 + $0x64] sm:$0xf]
    %v2727 = vld [vmem:[%s2 + $0x68] sm:$0xf]
    %v2728 = vld [vmem:[%s2 + $0x6c] sm:$0xf]
    %v2729 = vld [vmem:[%s2 + $0x70] sm:$0xf]
    %v2730 = vld [vmem:[%s2 + $0x74] sm:$0xf]
    %v2731 = vld [vmem:[%s2 + $0x78] sm:$0xf]
    %v2732 = vld [vmem:[%s2 + $0x7c] sm:$0xf]
    %v2749 = vunpack.c.l.b16 %v2717
    %v2750 = vunpack.c.l.b16 %v2718
    %v2751 = vunpack.c.l.b16 %v2719
    %v2752 = vunpack.c.l.b16 %v2720
    %v2753 = vunpack.c.l.b16 %v2721
    %v2754 = vunpack.c.l.b16 %v2722
    %v2755 = vunpack.c.l.b16 %v2723
    %v2756 = vunpack.c.l.b16 %v2724
    %v2757 = vunpack.c.l.b16 %v2725
    %v2758 = vunpack.c.l.b16 %v2726
    %v2759 = vunpack.c.l.b16 %v2727
    %v2760 = vunpack.c.l.b16 %v2728
    %v2761 = vunpack.c.l.b16 %v2729
    %v2762 = vunpack.c.l.b16 %v2730
    %v2763 = vunpack.c.l.b16 %v2731
    %v2764 = vunpack.c.l.b16 %v2732
    %v2765 = vpack.c.b16 %v2750, %v2749
    %v2766 = vpack.c.b16 %v2752, %v2751
    %v2767 = vpack.c.b16 %v2754, %v2753
    %v2768 = vpack.c.b16 %v2756, %v2755
    %v2769 = vpack.c.b16 %v2758, %v2757
    %v2770 = vpack.c.b16 %v2760, %v2759
    %v2771 = vpack.c.b16 %v2762, %v2761
    %v2772 = vpack.c.b16 %v2764, %v2763
    %2781 = vmatpush.bf16.msra.mxu0 %v2772
    %2782 = vmatpush.bf16.msra.mxu0 %v2771
    %2783 = vmatpush.bf16.msra.mxu0 %v2770
    %2784 = vmatpush.bf16.msra.mxu0 %v2769
    %2785 = vmatpush.bf16.msra.mxu0 %v2768
    %2786 = vmatpush.bf16.msra.mxu0 %v2767
    %2787 = vmatpush.bf16.msra.mxu0 %v2766
    %2788 = vmatpush.bf16.msra.mxu0 %v2765
    %2789 = vmatmul.bf16.gmra.mxu0 %v594
    %v2790 = vpop.f32.mrf.mxu0
    %v2791 = vadd.f32 0.0, %v2790
    %v2792 = vpop.f32.mrf.mxu0
    %v2793 = vadd.f32 0.0, %v2792
    %2794 = vdwg.mxu0
    %v2811 = vunpack.c.l.b16 %v2701
    %v2812 = vunpack.c.l.b16 %v2702
    %v2813 = vunpack.c.l.b16 %v2703
    %v2814 = vunpack.c.l.b16 %v2704
    %v2815 = vunpack.c.l.b16 %v2705
    %v2816 = vunpack.c.l.b16 %v2706
    %v2817 = vunpack.c.l.b16 %v2707
    %v2818 = vunpack.c.l.b16 %v2708
    %v2819 = vunpack.c.l.b16 %v2709
    %v2820 = vunpack.c.l.b16 %v2710
    %v2821 = vunpack.c.l.b16 %v2711
    %v2822 = vunpack.c.l.b16 %v2712
    %v2823 = vunpack.c.l.b16 %v2713
    %v2824 = vunpack.c.l.b16 %v2714
    %v2825 = vunpack.c.l.b16 %v2715
    %v2826 = vunpack.c.l.b16 %v2716
    %v2827 = vpack.c.b16 %v2812, %v2811
    %v2828 = vpack.c.b16 %v2814, %v2813
    %v2829 = vpack.c.b16 %v2816, %v2815
    %v2830 = vpack.c.b16 %v2818, %v2817
    %v2831 = vpack.c.b16 %v2820, %v2819
    %v2832 = vpack.c.b16 %v2822, %v2821
    %v2833 = vpack.c.b16 %v2824, %v2823
    %v2834 = vpack.c.b16 %v2826, %v2825
    %2843 = vmatpush.bf16.msra.mxu0 %v2834
    %2844 = vmatpush.bf16.msra.mxu0 %v2833
    %2845 = vmatpush.bf16.msra.mxu0 %v2832
    %2846 = vmatpush.bf16.msra.mxu0 %v2831
    %2847 = vmatpush.bf16.msra.mxu0 %v2830
    %2848 = vmatpush.bf16.msra.mxu0 %v2829
    %2849 = vmatpush.bf16.msra.mxu0 %v2828
    %2850 = vmatpush.bf16.msra.mxu0 %v2827
    %2851 = vmatmul.bf16.gmra.mxu0 %v94
    %v2852 = vpop.f32.mrf.mxu0
    %v2853 = vadd.f32 %v2791, %v2852
    %v2854 = vpop.f32.mrf.mxu0
    %v2855 = vadd.f32 %v2793, %v2854
    %2856 = vdwg.mxu0
    %v2857 = vld [vmem:[%s2 + $0x80] sm:$0xf]
    %v2858 = vld [vmem:[%s2 + $0x84] sm:$0xf]
    %v2859 = vld [vmem:[%s2 + $0x88] sm:$0xf]
    %v2860 = vld [vmem:[%s2 + $0x8c] sm:$0xf]
    %v2861 = vld [vmem:[%s2 + $0x90] sm:$0xf]
    %v2862 = vld [vmem:[%s2 + $0x94] sm:$0xf]
    %v2863 = vld [vmem:[%s2 + $0x98] sm:$0xf]
    %v2864 = vld [vmem:[%s2 + $0x9c] sm:$0xf]
    %v2865 = vld [vmem:[%s2 + $0xa0] sm:$0xf]
    %v2866 = vld [vmem:[%s2 + $0xa4] sm:$0xf]
    %v2867 = vld [vmem:[%s2 + $0xa8] sm:$0xf]
    %v2868 = vld [vmem:[%s2 + $0xac] sm:$0xf]
    %v2869 = vld [vmem:[%s2 + $0xb0] sm:$0xf]
    %v2870 = vld [vmem:[%s2 + $0xb4] sm:$0xf]
    %v2871 = vld [vmem:[%s2 + $0xb8] sm:$0xf]
    %v2872 = vld [vmem:[%s2 + $0xbc] sm:$0xf]
    %v2889 = vunpack.c.l.b16 %v2857
    %v2890 = vunpack.c.l.b16 %v2858
    %v2891 = vunpack.c.l.b16 %v2859
    %v2892 = vunpack.c.l.b16 %v2860
    %v2893 = vunpack.c.l.b16 %v2861
    %v2894 = vunpack.c.l.b16 %v2862
    %v2895 = vunpack.c.l.b16 %v2863
    %v2896 = vunpack.c.l.b16 %v2864
    %v2897 = vunpack.c.l.b16 %v2865
    %v2898 = vunpack.c.l.b16 %v2866
    %v2899 = vunpack.c.l.b16 %v2867
    %v2900 = vunpack.c.l.b16 %v2868
    %v2901 = vunpack.c.l.b16 %v2869
    %v2902 = vunpack.c.l.b16 %v2870
    %v2903 = vunpack.c.l.b16 %v2871
    %v2904 = vunpack.c.l.b16 %v2872
    %v2905 = vpack.c.b16 %v2890, %v2889
    %v2906 = vpack.c.b16 %v2892, %v2891
    %v2907 = vpack.c.b16 %v2894, %v2893
    %v2908 = vpack.c.b16 %v2896, %v2895
    %v2909 = vpack.c.b16 %v2898, %v2897
    %v2910 = vpack.c.b16 %v2900, %v2899
    %v2911 = vpack.c.b16 %v2902, %v2901
    %v2912 = vpack.c.b16 %v2904, %v2903
    %2921 = vmatpush.bf16.msra.mxu0 %v2912
    %2922 = vmatpush.bf16.msra.mxu0 %v2911
    %2923 = vmatpush.bf16.msra.mxu0 %v2910
    %2924 = vmatpush.bf16.msra.mxu0 %v2909
    %2925 = vmatpush.bf16.msra.mxu0 %v2908
    %2926 = vmatpush.bf16.msra.mxu0 %v2907
    %2927 = vmatpush.bf16.msra.mxu0 %v2906
    %2928 = vmatpush.bf16.msra.mxu0 %v2905
    %2929 = vmatmul.bf16.gmra.mxu0 %v1498
    %v2930 = vpop.f32.mrf.mxu0
    %v2931 = vadd.f32 0.0, %v2930
    %v2932 = vpop.f32.mrf.mxu0
    %v2933 = vadd.f32 0.0, %v2932
    %2934 = vdwg.mxu0
    %v2935 = vadd.f32 %v2853, %v2931
    %v2936 = vadd.f32 %v2855, %v2933
    %v2937 = vld [vmem:[%s2 + $0xc0] sm:$0xf]
    %v2938 = vld [vmem:[%s2 + $0xc4] sm:$0xf]
    %v2939 = vld [vmem:[%s2 + $0xc8] sm:$0xf]
    %v2940 = vld [vmem:[%s2 + $0xcc] sm:$0xf]
    %v2941 = vld [vmem:[%s2 + $0xd0] sm:$0xf]
    %v2942 = vld [vmem:[%s2 + $0xd4] sm:$0xf]
    %v2943 = vld [vmem:[%s2 + $0xd8] sm:$0xf]
    %v2944 = vld [vmem:[%s2 + $0xdc] sm:$0xf]
    %v2945 = vld [vmem:[%s2 + $0xe0] sm:$0xf]
    %v2946 = vld [vmem:[%s2 + $0xe4] sm:$0xf]
    %v2947 = vld [vmem:[%s2 + $0xe8] sm:$0xf]
    %v2948 = vld [vmem:[%s2 + $0xec] sm:$0xf]
    %v2949 = vld [vmem:[%s2 + $0xf0] sm:$0xf]
    %v2950 = vld [vmem:[%s2 + $0xf4] sm:$0xf]
    %v2951 = vld [vmem:[%s2 + $0xf8] sm:$0xf]
    %v2952 = vld [vmem:[%s2 + $0xfc] sm:$0xf]
    %v2969 = vunpack.c.l.b16 %v2937
    %v2970 = vunpack.c.l.b16 %v2938
    %v2971 = vunpack.c.l.b16 %v2939
    %v2972 = vunpack.c.l.b16 %v2940
    %v2973 = vunpack.c.l.b16 %v2941
    %v2974 = vunpack.c.l.b16 %v2942
    %v2975 = vunpack.c.l.b16 %v2943
    %v2976 = vunpack.c.l.b16 %v2944
    %v2977 = vunpack.c.l.b16 %v2945
    %v2978 = vunpack.c.l.b16 %v2946
    %v2979 = vunpack.c.l.b16 %v2947
    %v2980 = vunpack.c.l.b16 %v2948
    %v2981 = vunpack.c.l.b16 %v2949
    %v2982 = vunpack.c.l.b16 %v2950
    %v2983 = vunpack.c.l.b16 %v2951
    %v2984 = vunpack.c.l.b16 %v2952
    %v2985 = vpack.c.b16 %v2970, %v2969
    %v2986 = vpack.c.b16 %v2972, %v2971
    %v2987 = vpack.c.b16 %v2974, %v2973
    %v2988 = vpack.c.b16 %v2976, %v2975
    %v2989 = vpack.c.b16 %v2978, %v2977
    %v2990 = vpack.c.b16 %v2980, %v2979
    %v2991 = vpack.c.b16 %v2982, %v2981
    %v2992 = vpack.c.b16 %v2984, %v2983
    %3001 = vmatpush.bf16.msra.mxu0 %v2992
    %3002 = vmatpush.bf16.msra.mxu0 %v2991
    %3003 = vmatpush.bf16.msra.mxu0 %v2990
    %3004 = vmatpush.bf16.msra.mxu0 %v2989
    %3005 = vmatpush.bf16.msra.mxu0 %v2988
    %3006 = vmatpush.bf16.msra.mxu0 %v2987
    %3007 = vmatpush.bf16.msra.mxu0 %v2986
    %3008 = vmatpush.bf16.msra.mxu0 %v2985
    %3009 = vmatmul.bf16.gmra.mxu0 %v2217
    %v3010 = vpop.f32.mrf.mxu0
    %v3011 = vadd.f32 0.0, %v3010
    %v3012 = vpop.f32.mrf.mxu0
    %v3013 = vadd.f32 0.0, %v3012
    %3014 = vdwg.mxu0
    %v3015 = vadd.f32 %v2935, %v3011
    %v3016 = vadd.f32 %v2936, %v3013
    %v3017 = vld [vmem:[%s2 + $0x100] sm:$0xf]
    %v3018 = vld [vmem:[%s2 + $0x104] sm:$0xf]
    %v3019 = vld [vmem:[%s2 + $0x108] sm:$0xf]
    %v3020 = vld [vmem:[%s2 + $0x10c] sm:$0xf]
    %v3021 = vld [vmem:[%s2 + $0x110] sm:$0xf]
    %v3022 = vld [vmem:[%s2 + $0x114] sm:$0xf]
    %v3023 = vld [vmem:[%s2 + $0x118] sm:$0xf]
    %v3024 = vld [vmem:[%s2 + $0x11c] sm:$0xf]
    %v3025 = vld [vmem:[%s2 + $0x120] sm:$0xf]
    %v3026 = vld [vmem:[%s2 + $0x124] sm:$0xf]
    %v3027 = vld [vmem:[%s2 + $0x128] sm:$0xf]
    %v3028 = vld [vmem:[%s2 + $0x12c] sm:$0xf]
    %v3029 = vld [vmem:[%s2 + $0x130] sm:$0xf]
    %v3030 = vld [vmem:[%s2 + $0x134] sm:$0xf]
    %v3031 = vld [vmem:[%s2 + $0x138] sm:$0xf]
    %v3032 = vld [vmem:[%s2 + $0x13c] sm:$0xf]
    %v3033 = vpack.c.bf16 %v2700, %v2699
    %v3050 = vunpack.c.l.b16 %v3017
    %v3051 = vunpack.c.l.b16 %v3018
    %v3052 = vunpack.c.l.b16 %v3019
    %v3053 = vunpack.c.l.b16 %v3020
    %v3054 = vunpack.c.l.b16 %v3021
    %v3055 = vunpack.c.l.b16 %v3022
    %v3056 = vunpack.c.l.b16 %v3023
    %v3057 = vunpack.c.l.b16 %v3024
    %v3058 = vunpack.c.l.b16 %v3025
    %v3059 = vunpack.c.l.b16 %v3026
    %v3060 = vunpack.c.l.b16 %v3027
    %v3061 = vunpack.c.l.b16 %v3028
    %v3062 = vunpack.c.l.b16 %v3029
    %v3063 = vunpack.c.l.b16 %v3030
    %v3064 = vunpack.c.l.b16 %v3031
    %v3065 = vunpack.c.l.b16 %v3032
    %v3066 = vpack.c.b16 %v3051, %v3050
    %v3067 = vpack.c.b16 %v3053, %v3052
    %v3068 = vpack.c.b16 %v3055, %v3054
    %v3069 = vpack.c.b16 %v3057, %v3056
    %v3070 = vpack.c.b16 %v3059, %v3058
    %v3071 = vpack.c.b16 %v3061, %v3060
    %v3072 = vpack.c.b16 %v3063, %v3062
    %v3073 = vpack.c.b16 %v3065, %v3064
    %3082 = vmatpush.bf16.msra.mxu0 %v3073
    %3083 = vmatpush.bf16.msra.mxu0 %v3072
    %3084 = vmatpush.bf16.msra.mxu0 %v3071
    %3085 = vmatpush.bf16.msra.mxu0 %v3070
    %3086 = vmatpush.bf16.msra.mxu0 %v3069
    %3087 = vmatpush.bf16.msra.mxu0 %v3068
    %3088 = vmatpush.bf16.msra.mxu0 %v3067
    %3089 = vmatpush.bf16.msra.mxu0 %v3066
    %3090 = vmatmul.bf16.gmra.mxu0 %v3033
    %v3091 = vpop.f32.mrf.mxu0
    %v3092 = vadd.f32 0.0, %v3091
    %v3093 = vpop.f32.mrf.mxu0
    %v3094 = vadd.f32 0.0, %v3093
    %3095 = vdwg.mxu0
    %v3096 = vadd.f32 %v3015, %v3092
    %v3097 = vadd.f32 %v3016, %v3094
    %v3098 = vperm.slane %v35, 3
    %v3099 = vadd.f32 %v3096, %v3098
    %v3100 = vadd.f32 %v3097, %v3098
    %v3101 = vmul.f32 %v3099, 0.01
    %v3102 = vmul.f32 %v3100, 0.01
    %v3103 = vmax.f32 %v3099, %v3101
    %v3104 = vmax.f32 %v3100, %v3102
    %3105 = vst.msk [vmem:[%s4] sm:$0xff] %vm2114, %v3103
    %3106 = vst.msk [vmem:[%s4 + $0x8] sm:$0xff] %vm2114, %v3104
    // Predicated region
    $region22: #{sgnet_forward.1} parent=1 // pred_check
      _
    $region23: #{sgnet_forward.1} parent=1 // pred_check_branch
      %3108 = sbr.rel (0) target = $region25
    $region24: #{sgnet_forward.1} parent=1 // pred_region
      _
    $region25: #{sgnet_forward.1} parent=1 // pred_fallthru
      _
    // Predicated region
    $region26: #{sgnet_forward.1} parent=1 // pred_check
      _
    $region27: #{sgnet_forward.1} parent=1 // pred_check_branch
      %3110 = sbr.rel (0) target = $region29
    $region28: #{sgnet_forward.1} parent=1 // pred_region
      _
    $region29: #{sgnet_forward.1} parent=1 // pred_fallthru
      _
    %3111 = vsyncpa [#allocation3], 1

</llo_original>
